<compile_context>
chip_gen: v6e
topology: v6e:2x2x1
jax: 0.10.0
libtpu: 0.0.40
codegen_flags: <defaults>
</compile_context>

<pallas_src>
import jax
import jax.numpy as jnp
from jax import lax
from jax.experimental import pallas as pl
from jax.experimental.pallas import tpu as pltpu

INPUT_SIZE = 5
HIDDEN = 50          # logical hidden size (matches the torch module)
HP = 128             # hidden padded to one full 128-lane vreg per gate
G = 4 * HP           # 4 gates (i, f, g, o), each in its own 128-lane slot
IPAD = 128           # input-feature dim zero-padded to MXU contraction width


def _lstm_fc_kernel(x_ref,     # (S*B, IPAD) f32  time-major flattened, zero-padded input
                    wih1_ref,  # (IPAD, G)   f32  layer-0 input weights (padded)
                    b1_ref,    # (1, G)      f32  layer-0 bias (padded lanes = 0)
                    whh1_ref,  # (HP, G)     bf16 layer-0 recurrent weights (padded)
                    w2_ref,    # (2*HP, G)   bf16 layer-1 [input; recurrent] weights, row-fused
                    b2_ref,    # (1, G)      f32  layer-1 bias (padded lanes = 0)
                    wfc_ref,   # (1, HP)     f32  fc weight row (padded lanes = 0)
                    bfc_ref,   # (1, 1)      f32
                    out_ref,   # (B, 1)      f32
                    g1_scr):   # (S, B, G)   f32  scratch: per-step layer-0 input projections
    S, B, _ = g1_scr.shape

    # ---- prologue: layer-0 input projection for ALL timesteps, one MXU matmul ----
    g1 = (jnp.dot(x_ref[...], wih1_ref[...], preferred_element_type=jnp.float32)
          + b1_ref[...])                                        # (S*B, G)
    for t in range(S):                                          # static scatter to (S, B, G)
        g1_scr[t] = g1[t * B:(t + 1) * B, :]

    # Hoisted small bias: 4 vregs, read/broadcast once instead of per unrolled step.
    b2 = b2_ref[...]

    def gates(g):
        # lane-aligned slices: each gate occupies exactly one 128-lane block
        i_g = jax.nn.sigmoid(g[:, 0 * HP:1 * HP])
        f_g = jax.nn.sigmoid(g[:, 1 * HP:2 * HP])
        g_g = jnp.tanh(g[:, 2 * HP:3 * HP])
        o_g = jax.nn.sigmoid(g[:, 3 * HP:4 * HP])
        return i_g, f_g, g_g, o_g

    def step(t, carry):
        h1, c1, h2, c2 = carry

        # ---- layer 0: only the recurrent matmul sits on the serial path ----
        g_l0 = g1_scr[t] + jnp.dot(h1.astype(jnp.bfloat16), whh1_ref[...],
                                   preferred_element_type=jnp.float32)
        i_g, f_g, g_g, o_g = gates(g_l0)
        c1 = f_g * c1 + i_g * g_g
        h1 = o_g * jnp.tanh(c1)

        # ---- layer 1: single fused 256-deep contraction (input + recurrent) ----
        h12 = jnp.concatenate([h1, h2], axis=-1).astype(jnp.bfloat16)   # (B, 2*HP)
        g_l1 = jnp.dot(h12, w2_ref[...], preferred_element_type=jnp.float32) + b2
        i_g, f_g, g_g, o_g = gates(g_l1)
        c2 = f_g * c2 + i_g * g_g
        h2 = o_g * jnp.tanh(c2)

        return (h1, c1, h2, c2)

    z = jnp.zeros((B, HP), jnp.float32)
    _, _, h2, _ = lax.fori_loop(0, S, step, (z, z, z, z), unroll=True)

    # fc(h[-1]): VPU multiply + lane reduce instead of an N=1 MXU matmul.
    # Padded h2 lanes and padded wfc lanes are both exactly zero -> sum is exact.
    out_ref[...] = (jnp.sum(h2 * wfc_ref[...], axis=-1, keepdims=True)
                    + bfc_ref[...])


def power_model_forward(x, params):
    """x: (B, S, INPUT_SIZE) float32, batch_first like the torch module."""
    B, S, I = x.shape
    assert I == INPUT_SIZE
    # Tiny wrapper-side prep only: time-major flatten + zero-pad the 5 input
    # features to a lane-friendly contraction width.  (S*B, IPAD) f32 is a few
    # KiB; the heavy projection matmul itself happens inside the kernel.
    xt = jnp.transpose(x.astype(jnp.float32), (1, 0, 2)).reshape(S * B, I)
    xp = jnp.zeros((S * B, IPAD), jnp.float32).at[:, :I].set(xt)

    vmem = pl.BlockSpec(memory_space=pltpu.MemorySpace.VMEM)
    kernel = pl.pallas_call(
        _lstm_fc_kernel,
        out_shape=jax.ShapeDtypeStruct((B, 1), jnp.float32),
        in_specs=[vmem] * 8,
        out_specs=vmem,
        scratch_shapes=[pltpu.VMEM((S, B, G), jnp.float32)],
    )
    return kernel(xp, params['wih1_p'], params['b1_p'], params['whh1_p'],
                  params['w2_p'], params['b2_p'], params['wfc_p'],
                  params['bfc_p'])


def _pad_gate_cols(w_t):
    """(K, 4*HIDDEN) -> (K, G): each 50-wide gate block is moved to its own
    zero-padded 128-lane slot so in-kernel gate slices are vreg aligned."""
    K = w_t.shape[0]
    out = jnp.zeros((K, G), w_t.dtype)
    for gi in range(4):
        out = out.at[:, gi * HP:gi * HP + HIDDEN].set(
            w_t[:, gi * HIDDEN:(gi + 1) * HIDDEN])
    return out


def _pad_rows(w, rows):
    """Zero-pad the leading (contraction) dimension up to `rows`."""
    return jnp.zeros((rows, w.shape[1]), w.dtype).at[:w.shape[0]].set(w)


def init_params(key):
    """Deterministic init mimicking PyTorch's U(-1/sqrt(H), 1/sqrt(H)).

    Returns (kernel_params, raw_torch_layout_params)."""
    k = 1.0 / jnp.sqrt(jnp.float32(HIDDEN))
    keys = jax.random.split(key, 10)

    def u(kk, shape):
        return jax.random.uniform(kk, shape, jnp.float32, -k, k)

    raw = {
        'w_ih_l0': u(keys[0], (4 * HIDDEN, INPUT_SIZE)),
        'w_hh_l0': u(keys[1], (4 * HIDDEN, HIDDEN)),
        'b_ih_l0': u(keys[2], (4 * HIDDEN,)),
        'b_hh_l0': u(keys[3], (4 * HIDDEN,)),
        'w_ih_l1': u(keys[4], (4 * HIDDEN, HIDDEN)),
        'w_hh_l1': u(keys[5], (4 * HIDDEN, HIDDEN)),
        'b_ih_l1': u(keys[6], (4 * HIDDEN,)),
        'b_hh_l1': u(keys[7], (4 * HIDDEN,)),
        'w_fc':    u(keys[8], (1, HIDDEN)),
        'b_fc':    u(keys[9], (1,)),
    }

    b1 = (raw['b_ih_l0'] + raw['b_hh_l0']).reshape(1, 4 * HIDDEN)
    b2 = (raw['b_ih_l1'] + raw['b_hh_l1']).reshape(1, 4 * HIDDEN)

    wfc_row = jnp.zeros((1, HP), jnp.float32).at[:, :HIDDEN].set(raw['w_fc'])

    # Layer-1 weights fused row-wise: contraction rows [0, HP) multiply h1
    # (input path), rows [HP, 2*HP) multiply h2 (recurrent path).
    w2_fused = jnp.concatenate(
        [_pad_rows(_pad_gate_cols(raw['w_ih_l1'].T), HP),
         _pad_rows(_pad_gate_cols(raw['w_hh_l1'].T), HP)], axis=0)

    params = {
        # layer-0 input projection (in-kernel prologue matmul) stays f32
        'wih1_p': _pad_rows(_pad_gate_cols(raw['w_ih_l0'].T), IPAD),      # (IPAD, G)
        'b1_p':   _pad_gate_cols(b1),                                     # (1, G)
        # recurrent matmul operands: padded + bf16 for native MXU multiply
        'whh1_p': _pad_rows(_pad_gate_cols(raw['w_hh_l0'].T), HP).astype(jnp.bfloat16),
        'w2_p':   w2_fused.astype(jnp.bfloat16),                          # (2*HP, G)
        'b2_p':   _pad_gate_cols(b2),                                     # (1, G) f32
        'wfc_p':  wfc_row,                                                # (1, HP)
        'bfc_p':  raw['b_fc'].reshape(1, 1),                              # (1, 1)
    }
    return params, raw


def reference_forward(x, raw):
    """Pure-JAX f32 reference matching PyTorch LSTM semantics."""
    H = HIDDEN
    B, S, _ = x.shape
    wih1, whh1 = raw['w_ih_l0'].T, raw['w_hh_l0'].T
    wih2, whh2 = raw['w_ih_l1'].T, raw['w_hh_l1'].T
    b1 = raw['b_ih_l0'] + raw['b_hh_l0']
    b2 = raw['b_ih_l1'] + raw['b_hh_l1']

    def cell(xt, h, c, wih, whh, b):
        g = xt @ wih + h @ whh + b
        i = jax.nn.sigmoid(g[:, :H])
        f = jax.nn.sigmoid(g[:, H:2 * H])
        gg = jnp.tanh(g[:, 2 * H:3 * H])
        o = jax.nn.sigmoid(g[:, 3 * H:])
        c = f * c + i * gg
        return o * jnp.tanh(c), c

    h1 = c1 = h2 = c2 = jnp.zeros((B, H), jnp.float32)
    for t in range(S):
        h1, c1 = cell(x[:, t, :], h1, c1, wih1, whh1, b1)
        h2, c2 = cell(h1, h2, c2, wih2, whh2, b2)
    return h2 @ raw['w_fc'].T + raw['b_fc']


if __name__ == "__main__":
    key = jax.random.PRNGKey(0)
    k_param, k_x = jax.random.split(key)

    B, S = 2, 8
    x = jax.random.normal(k_x, (B, S, INPUT_SIZE), jnp.float32)
    params, raw = init_params(k_param)

    out = jax.block_until_ready(power_model_forward(x, params))
    ref = reference_forward(x, raw)

    assert out.shape == (B, 1), out.shape
    assert bool(jnp.all(jnp.isfinite(out)))
    # Recurrent matmuls run with bf16 operands (f32 accumulate) on the MXU,
    # so tolerance is loosened vs the pure-f32 reference.  At S=8 the bf16
    # state drift is well inside this bound; re-verify for much longer S.
    assert jnp.allclose(out, ref, atol=3e-2, rtol=3e-2), (out, ref)

    print("KERNEL_OK")
</pallas_src>

<mosaic_0001>
module attributes {stable_mosaic.version = 11 : i64} {
  func.func @_lstm_fc_kernel(%arg0: memref<16x128xf32, #tpu.memory_space<vmem>>, %arg1: memref<128x512xf32, #tpu.memory_space<vmem>>, %arg2: memref<1x512xf32, #tpu.memory_space<vmem>>, %arg3: memref<128x512xbf16, #tpu.memory_space<vmem>>, %arg4: memref<256x512xbf16, #tpu.memory_space<vmem>>, %arg5: memref<1x512xf32, #tpu.memory_space<vmem>>, %arg6: memref<1x128xf32, #tpu.memory_space<vmem>>, %arg7: memref<1x1xf32, #tpu.memory_space<vmem>>, %arg8: memref<2x1xf32, #tpu.memory_space<vmem>>, %arg9: memref<8x2x512xf32, #tpu.memory_space<vmem>>) attributes {dimension_semantics = [], scalar_prefetch = 0 : i64, scratch_operands = 1 : i64, tpu.core_type = #tpu.core_type<tc>} {
    %c0 = arith.constant 0 : index
    %c0_0 = arith.constant 0 : index
    %0 = vector.load %arg0[%c0, %c0_0] : memref<16x128xf32, #tpu.memory_space<vmem>>, vector<16x128xf32>
    %c0_1 = arith.constant 0 : index
    %c0_2 = arith.constant 0 : index
    %1 = vector.load %arg1[%c0_1, %c0_2] : memref<128x512xf32, #tpu.memory_space<vmem>>, vector<128x512xf32>
    %cst = arith.constant dense<0.000000e+00> : vector<16x512xf32>
    %2 = tpu.matmul %0, %1, %cst {dimension_numbers = #tpu.dot_dimension_numbers<[1], [0], [0], [1], [0, 0, 1, 1], [], []>} : vector<16x128xf32>, vector<128x512xf32>, vector<16x512xf32> -> vector<16x512xf32>
    %c0_3 = arith.constant 0 : index
    %c0_4 = arith.constant 0 : index
    %3 = vector.load %arg2[%c0_3, %c0_4] : memref<1x512xf32, #tpu.memory_space<vmem>>, vector<1x512xf32>
    %4 = vector.broadcast %3 : vector<1x512xf32> to vector<16x512xf32>
    %5 = arith.addf %2, %4 : vector<16x512xf32>
    %6 = vector.extract_strided_slice %5 {offsets = [0, 0], sizes = [2, 512], strides = [1, 1]} : vector<16x512xf32> to vector<2x512xf32>
    %c0_5 = arith.constant 0 : index
    %c0_6 = arith.constant 0 : index
    %c0_7 = arith.constant 0 : index
    %7 = vector.load %arg9[%c0_5, %c0_6, %c0_7] : memref<8x2x512xf32, #tpu.memory_space<vmem>>, vector<1x2x512xf32>
    %8 = vector.shape_cast %7 : vector<1x2x512xf32> to vector<2x512xf32>
    %9 = vector.shape_cast %6 : vector<2x512xf32> to vector<1x2x512xf32>
    tpu.vector_store %arg9[%c0_5, %c0_6, %c0_7], %9 {strides = array<i32>} : memref<8x2x512xf32, #tpu.memory_space<vmem>>, vector<1x2x512xf32>,
    %10 = vector.extract_strided_slice %5 {offsets = [2, 0], sizes = [2, 512], strides = [1, 1]} : vector<16x512xf32> to vector<2x512xf32>
    %c1 = arith.constant 1 : index
    %c0_8 = arith.constant 0 : index
    %c0_9 = arith.constant 0 : index
    %11 = vector.load %arg9[%c1, %c0_8, %c0_9] : memref<8x2x512xf32, #tpu.memory_space<vmem>>, vector<1x2x512xf32>
    %12 = vector.shape_cast %11 : vector<1x2x512xf32> to vector<2x512xf32>
    %13 = vector.shape_cast %10 : vector<2x512xf32> to vector<1x2x512xf32>
    tpu.vector_store %arg9[%c1, %c0_8, %c0_9], %13 {strides = array<i32>} : memref<8x2x512xf32, #tpu.memory_space<vmem>>, vector<1x2x512xf32>,
    %14 = vector.extract_strided_slice %5 {offsets = [4, 0], sizes = [2, 512], strides = [1, 1]} : vector<16x512xf32> to vector<2x512xf32>
    %c2 = arith.constant 2 : index
    %c0_10 = arith.constant 0 : index
    %c0_11 = arith.constant 0 : index
    %15 = vector.load %arg9[%c2, %c0_10, %c0_11] : memref<8x2x512xf32, #tpu.memory_space<vmem>>, vector<1x2x512xf32>
    %16 = vector.shape_cast %15 : vector<1x2x512xf32> to vector<2x512xf32>
    %17 = vector.shape_cast %14 : vector<2x512xf32> to vector<1x2x512xf32>
    tpu.vector_store %arg9[%c2, %c0_10, %c0_11], %17 {strides = array<i32>} : memref<8x2x512xf32, #tpu.memory_space<vmem>>, vector<1x2x512xf32>,
    %18 = vector.extract_strided_slice %5 {offsets = [6, 0], sizes = [2, 512], strides = [1, 1]} : vector<16x512xf32> to vector<2x512xf32>
    %c3 = arith.constant 3 : index
    %c0_12 = arith.constant 0 : index
    %c0_13 = arith.constant 0 : index
    %19 = vector.load %arg9[%c3, %c0_12, %c0_13] : memref<8x2x512xf32, #tpu.memory_space<vmem>>, vector<1x2x512xf32>
    %20 = vector.shape_cast %19 : vector<1x2x512xf32> to vector<2x512xf32>
    %21 = vector.shape_cast %18 : vector<2x512xf32> to vector<1x2x512xf32>
    tpu.vector_store %arg9[%c3, %c0_12, %c0_13], %21 {strides = array<i32>} : memref<8x2x512xf32, #tpu.memory_space<vmem>>, vector<1x2x512xf32>,
    %22 = vector.extract_strided_slice %5 {offsets = [8, 0], sizes = [2, 512], strides = [1, 1]} : vector<16x512xf32> to vector<2x512xf32>
    %c4 = arith.constant 4 : index
    %c0_14 = arith.constant 0 : index
    %c0_15 = arith.constant 0 : index
    %23 = vector.load %arg9[%c4, %c0_14, %c0_15] : memref<8x2x512xf32, #tpu.memory_space<vmem>>, vector<1x2x512xf32>
    %24 = vector.shape_cast %23 : vector<1x2x512xf32> to vector<2x512xf32>
    %25 = vector.shape_cast %22 : vector<2x512xf32> to vector<1x2x512xf32>
    tpu.vector_store %arg9[%c4, %c0_14, %c0_15], %25 {strides = array<i32>} : memref<8x2x512xf32, #tpu.memory_space<vmem>>, vector<1x2x512xf32>,
    %26 = vector.extract_strided_slice %5 {offsets = [10, 0], sizes = [2, 512], strides = [1, 1]} : vector<16x512xf32> to vector<2x512xf32>
    %c5 = arith.constant 5 : index
    %c0_16 = arith.constant 0 : index
    %c0_17 = arith.constant 0 : index
    %27 = vector.load %arg9[%c5, %c0_16, %c0_17] : memref<8x2x512xf32, #tpu.memory_space<vmem>>, vector<1x2x512xf32>
    %28 = vector.shape_cast %27 : vector<1x2x512xf32> to vector<2x512xf32>
    %29 = vector.shape_cast %26 : vector<2x512xf32> to vector<1x2x512xf32>
    tpu.vector_store %arg9[%c5, %c0_16, %c0_17], %29 {strides = array<i32>} : memref<8x2x512xf32, #tpu.memory_space<vmem>>, vector<1x2x512xf32>,
    %30 = vector.extract_strided_slice %5 {offsets = [12, 0], sizes = [2, 512], strides = [1, 1]} : vector<16x512xf32> to vector<2x512xf32>
    %c6 = arith.constant 6 : index
    %c0_18 = arith.constant 0 : index
    %c0_19 = arith.constant 0 : index
    %31 = vector.load %arg9[%c6, %c0_18, %c0_19] : memref<8x2x512xf32, #tpu.memory_space<vmem>>, vector<1x2x512xf32>
    %32 = vector.shape_cast %31 : vector<1x2x512xf32> to vector<2x512xf32>
    %33 = vector.shape_cast %30 : vector<2x512xf32> to vector<1x2x512xf32>
    tpu.vector_store %arg9[%c6, %c0_18, %c0_19], %33 {strides = array<i32>} : memref<8x2x512xf32, #tpu.memory_space<vmem>>, vector<1x2x512xf32>,
    %34 = vector.extract_strided_slice %5 {offsets = [14, 0], sizes = [2, 512], strides = [1, 1]} : vector<16x512xf32> to vector<2x512xf32>
    %c7 = arith.constant 7 : index
    %c0_20 = arith.constant 0 : index
    %c0_21 = arith.constant 0 : index
    %35 = vector.load %arg9[%c7, %c0_20, %c0_21] : memref<8x2x512xf32, #tpu.memory_space<vmem>>, vector<1x2x512xf32>
    %36 = vector.shape_cast %35 : vector<1x2x512xf32> to vector<2x512xf32>
    %37 = vector.shape_cast %34 : vector<2x512xf32> to vector<1x2x512xf32>
    tpu.vector_store %arg9[%c7, %c0_20, %c0_21], %37 {strides = array<i32>} : memref<8x2x512xf32, #tpu.memory_space<vmem>>, vector<1x2x512xf32>,
    %c0_22 = arith.constant 0 : index
    %c0_23 = arith.constant 0 : index
    %38 = vector.load %arg5[%c0_22, %c0_23] : memref<1x512xf32, #tpu.memory_space<vmem>>, vector<1x512xf32>
    %cst_24 = arith.constant 0.000000e+00 : f32
    %39 = vector.broadcast %cst_24 : f32 to vector<2x128xf32>
    %c0_i32 = arith.constant 0 : i32
    %40 = arith.index_cast %c0_i32 : i32 to index
    %c0_25 = arith.constant 0 : index
    %c0_26 = arith.constant 0 : index
    %41 = vector.load %arg9[%40, %c0_25, %c0_26] : memref<8x2x512xf32, #tpu.memory_space<vmem>>, vector<1x2x512xf32>
    %42 = vector.shape_cast %41 : vector<1x2x512xf32> to vector<2x512xf32>
    %43 = arith.truncf %39 : vector<2x128xf32> to vector<2x128xbf16>
    %c0_27 = arith.constant 0 : index
    %c0_28 = arith.constant 0 : index
    %44 = vector.load %arg3[%c0_27, %c0_28] : memref<128x512xbf16, #tpu.memory_space<vmem>>, vector<128x512xbf16>
    %cst_29 = arith.constant dense<0.000000e+00> : vector<2x512xf32>
    %45 = tpu.matmul %43, %44, %cst_29 {dimension_numbers = #tpu.dot_dimension_numbers<[1], [0], [0], [1], [0, 0, 1, 1], [], []>} : vector<2x128xbf16>, vector<128x512xbf16>, vector<2x512xf32> -> vector<2x512xf32>
    %46 = arith.addf %42, %45 : vector<2x512xf32>
    %47 = vector.extract_strided_slice %46 {offsets = [0, 0], sizes = [2, 128], strides = [1, 1]} : vector<2x512xf32> to vector<2x128xf32>
    %48 = arith.negf %47 : vector<2x128xf32>
    %49 = math.exp %48 : vector<2x128xf32>
    %cst_30 = arith.constant 1.000000e+00 : f32
    %50 = vector.broadcast %cst_30 : f32 to vector<2x128xf32>
    %51 = arith.addf %50, %49 : vector<2x128xf32>
    %52 = arith.divf %50, %51 : vector<2x128xf32>
    %53 = vector.extract_strided_slice %46 {offsets = [0, 128], sizes = [2, 128], strides = [1, 1]} : vector<2x512xf32> to vector<2x128xf32>
    %54 = arith.negf %53 : vector<2x128xf32>
    %55 = math.exp %54 : vector<2x128xf32>
    %cst_31 = arith.constant 1.000000e+00 : f32
    %56 = vector.broadcast %cst_31 : f32 to vector<2x128xf32>
    %57 = arith.addf %56, %55 : vector<2x128xf32>
    %58 = arith.divf %56, %57 : vector<2x128xf32>
    %59 = vector.extract_strided_slice %46 {offsets = [0, 256], sizes = [2, 128], strides = [1, 1]} : vector<2x512xf32> to vector<2x128xf32>
    %60 = math.tanh %59 : vector<2x128xf32>
    %61 = vector.extract_strided_slice %46 {offsets = [0, 384], sizes = [2, 128], strides = [1, 1]} : vector<2x512xf32> to vector<2x128xf32>
    %62 = arith.negf %61 : vector<2x128xf32>
    %63 = math.exp %62 : vector<2x128xf32>
    %cst_32 = arith.constant 1.000000e+00 : f32
    %64 = vector.broadcast %cst_32 : f32 to vector<2x128xf32>
    %65 = arith.addf %64, %63 : vector<2x128xf32>
    %66 = arith.divf %64, %65 : vector<2x128xf32>
    %67 = arith.mulf %58, %39 : vector<2x128xf32>
    %68 = arith.mulf %52, %60 : vector<2x128xf32>
    %69 = arith.addf %67, %68 : vector<2x128xf32>
    %70 = math.tanh %69 : vector<2x128xf32>
    %71 = arith.mulf %66, %70 : vector<2x128xf32>
    %72 = tpu.concatenate %71, %39 in 1 : vector<2x128xf32>, vector<2x128xf32> -> vector<2x256xf32>
    %73 = arith.truncf %72 : vector<2x256xf32> to vector<2x256xbf16>
    %c0_33 = arith.constant 0 : index
    %c0_34 = arith.constant 0 : index
    %74 = vector.load %arg4[%c0_33, %c0_34] : memref<256x512xbf16, #tpu.memory_space<vmem>>, vector<256x512xbf16>
    %cst_35 = arith.constant dense<0.000000e+00> : vector<2x512xf32>
    %75 = tpu.matmul %73, %74, %cst_35 {dimension_numbers = #tpu.dot_dimension_numbers<[1], [0], [0], [1], [0, 0, 1, 1], [], []>} : vector<2x256xbf16>, vector<256x512xbf16>, vector<2x512xf32> -> vector<2x512xf32>
    %76 = vector.broadcast %38 : vector<1x512xf32> to vector<2x512xf32>
    %77 = arith.addf %75, %76 : vector<2x512xf32>
    %78 = vector.extract_strided_slice %77 {offsets = [0, 0], sizes = [2, 128], strides = [1, 1]} : vector<2x512xf32> to vector<2x128xf32>
    %79 = arith.negf %78 : vector<2x128xf32>
    %80 = math.exp %79 : vector<2x128xf32>
    %cst_36 = arith.constant 1.000000e+00 : f32
    %81 = vector.broadcast %cst_36 : f32 to vector<2x128xf32>
    %82 = arith.addf %81, %80 : vector<2x128xf32>
    %83 = arith.divf %81, %82 : vector<2x128xf32>
    %84 = vector.extract_strided_slice %77 {offsets = [0, 128], sizes = [2, 128], strides = [1, 1]} : vector<2x512xf32> to vector<2x128xf32>
    %85 = arith.negf %84 : vector<2x128xf32>
    %86 = math.exp %85 : vector<2x128xf32>
    %cst_37 = arith.constant 1.000000e+00 : f32
    %87 = vector.broadcast %cst_37 : f32 to vector<2x128xf32>
    %88 = arith.addf %87, %86 : vector<2x128xf32>
    %89 = arith.divf %87, %88 : vector<2x128xf32>
    %90 = vector.extract_strided_slice %77 {offsets = [0, 256], sizes = [2, 128], strides = [1, 1]} : vector<2x512xf32> to vector<2x128xf32>
    %91 = math.tanh %90 : vector<2x128xf32>
    %92 = vector.extract_strided_slice %77 {offsets = [0, 384], sizes = [2, 128], strides = [1, 1]} : vector<2x512xf32> to vector<2x128xf32>
    %93 = arith.negf %92 : vector<2x128xf32>
    %94 = math.exp %93 : vector<2x128xf32>
    %cst_38 = arith.constant 1.000000e+00 : f32
    %95 = vector.broadcast %cst_38 : f32 to vector<2x128xf32>
    %96 = arith.addf %95, %94 : vector<2x128xf32>
    %97 = arith.divf %95, %96 : vector<2x128xf32>
    %98 = arith.mulf %89, %39 : vector<2x128xf32>
    %99 = arith.mulf %83, %91 : vector<2x128xf32>
    %100 = arith.addf %98, %99 : vector<2x128xf32>
    %101 = math.tanh %100 : vector<2x128xf32>
    %102 = arith.mulf %97, %101 : vector<2x128xf32>
    %c1_i32 = arith.constant 1 : i32
    %103 = arith.index_cast %c1_i32 : i32 to index
    %c0_39 = arith.constant 0 : index
    %c0_40 = arith.constant 0 : index
    %104 = vector.load %arg9[%103, %c0_39, %c0_40] : memref<8x2x512xf32, #tpu.memory_space<vmem>>, vector<1x2x512xf32>
    %105 = vector.shape_cast %104 : vector<1x2x512xf32> to vector<2x512xf32>
    %106 = arith.truncf %71 : vector<2x128xf32> to vector<2x128xbf16>
    %c0_41 = arith.constant 0 : index
    %c0_42 = arith.constant 0 : index
    %107 = vector.load %arg3[%c0_41, %c0_42] : memref<128x512xbf16, #tpu.memory_space<vmem>>, vector<128x512xbf16>
    %cst_43 = arith.constant dense<0.000000e+00> : vector<2x512xf32>
    %108 = tpu.matmul %106, %107, %cst_43 {dimension_numbers = #tpu.dot_dimension_numbers<[1], [0], [0], [1], [0, 0, 1, 1], [], []>} : vector<2x128xbf16>, vector<128x512xbf16>, vector<2x512xf32> -> vector<2x512xf32>
    %109 = arith.addf %105, %108 : vector<2x512xf32>
    %110 = vector.extract_strided_slice %109 {offsets = [0, 0], sizes = [2, 128], strides = [1, 1]} : vector<2x512xf32> to vector<2x128xf32>
    %111 = arith.negf %110 : vector<2x128xf32>
    %112 = math.exp %111 : vector<2x128xf32>
    %cst_44 = arith.constant 1.000000e+00 : f32
    %113 = vector.broadcast %cst_44 : f32 to vector<2x128xf32>
    %114 = arith.addf %113, %112 : vector<2x128xf32>
    %115 = arith.divf %113, %114 : vector<2x128xf32>
    %116 = vector.extract_strided_slice %109 {offsets = [0, 128], sizes = [2, 128], strides = [1, 1]} : vector<2x512xf32> to vector<2x128xf32>
    %117 = arith.negf %116 : vector<2x128xf32>
    %118 = math.exp %117 : vector<2x128xf32>
    %cst_45 = arith.constant 1.000000e+00 : f32
    %119 = vector.broadcast %cst_45 : f32 to vector<2x128xf32>
    %120 = arith.addf %119, %118 : vector<2x128xf32>
    %121 = arith.divf %119, %120 : vector<2x128xf32>
    %122 = vector.extract_strided_slice %109 {offsets = [0, 256], sizes = [2, 128], strides = [1, 1]} : vector<2x512xf32> to vector<2x128xf32>
    %123 = math.tanh %122 : vector<2x128xf32>
    %124 = vector.extract_strided_slice %109 {offsets = [0, 384], sizes = [2, 128], strides = [1, 1]} : vector<2x512xf32> to vector<2x128xf32>
    %125 = arith.negf %124 : vector<2x128xf32>
    %126 = math.exp %125 : vector<2x128xf32>
    %cst_46 = arith.constant 1.000000e+00 : f32
    %127 = vector.broadcast %cst_46 : f32 to vector<2x128xf32>
    %128 = arith.addf %127, %126 : vector<2x128xf32>
    %129 = arith.divf %127, %128 : vector<2x128xf32>
    %130 = arith.mulf %121, %69 : vector<2x128xf32>
    %131 = arith.mulf %115, %123 : vector<2x128xf32>
    %132 = arith.addf %130, %131 : vector<2x128xf32>
    %133 = math.tanh %132 : vector<2x128xf32>
    %134 = arith.mulf %129, %133 : vector<2x128xf32>
    %135 = tpu.concatenate %134, %102 in 1 : vector<2x128xf32>, vector<2x128xf32> -> vector<2x256xf32>
    %136 = arith.truncf %135 : vector<2x256xf32> to vector<2x256xbf16>
    %c0_47 = arith.constant 0 : index
    %c0_48 = arith.constant 0 : index
    %137 = vector.load %arg4[%c0_47, %c0_48] : memref<256x512xbf16, #tpu.memory_space<vmem>>, vector<256x512xbf16>
    %cst_49 = arith.constant dense<0.000000e+00> : vector<2x512xf32>
    %138 = tpu.matmul %136, %137, %cst_49 {dimension_numbers = #tpu.dot_dimension_numbers<[1], [0], [0], [1], [0, 0, 1, 1], [], []>} : vector<2x256xbf16>, vector<256x512xbf16>, vector<2x512xf32> -> vector<2x512xf32>
    %139 = vector.broadcast %38 : vector<1x512xf32> to vector<2x512xf32>
    %140 = arith.addf %138, %139 : vector<2x512xf32>
    %141 = vector.extract_strided_slice %140 {offsets = [0, 0], sizes = [2, 128], strides = [1, 1]} : vector<2x512xf32> to vector<2x128xf32>
    %142 = arith.negf %141 : vector<2x128xf32>
    %143 = math.exp %142 : vector<2x128xf32>
    %cst_50 = arith.constant 1.000000e+00 : f32
    %144 = vector.broadcast %cst_50 : f32 to vector<2x128xf32>
    %145 = arith.addf %144, %143 : vector<2x128xf32>
    %146 = arith.divf %144, %145 : vector<2x128xf32>
    %147 = vector.extract_strided_slice %140 {offsets = [0, 128], sizes = [2, 128], strides = [1, 1]} : vector<2x512xf32> to vector<2x128xf32>
    %148 = arith.negf %147 : vector<2x128xf32>
    %149 = math.exp %148 : vector<2x128xf32>
    %cst_51 = arith.constant 1.000000e+00 : f32
    %150 = vector.broadcast %cst_51 : f32 to vector<2x128xf32>
    %151 = arith.addf %150, %149 : vector<2x128xf32>
    %152 = arith.divf %150, %151 : vector<2x128xf32>
    %153 = vector.extract_strided_slice %140 {offsets = [0, 256], sizes = [2, 128], strides = [1, 1]} : vector<2x512xf32> to vector<2x128xf32>
    %154 = math.tanh %153 : vector<2x128xf32>
    %155 = vector.extract_strided_slice %140 {offsets = [0, 384], sizes = [2, 128], strides = [1, 1]} : vector<2x512xf32> to vector<2x128xf32>
    %156 = arith.negf %155 : vector<2x128xf32>
    %157 = math.exp %156 : vector<2x128xf32>
    %cst_52 = arith.constant 1.000000e+00 : f32
    %158 = vector.broadcast %cst_52 : f32 to vector<2x128xf32>
    %159 = arith.addf %158, %157 : vector<2x128xf32>
    %160 = arith.divf %158, %159 : vector<2x128xf32>
    %161 = arith.mulf %152, %100 : vector<2x128xf32>
    %162 = arith.mulf %146, %154 : vector<2x128xf32>
    %163 = arith.addf %161, %162 : vector<2x128xf32>
    %164 = math.tanh %163 : vector<2x128xf32>
    %165 = arith.mulf %160, %164 : vector<2x128xf32>
    %c2_i32 = arith.constant 2 : i32
    %166 = arith.index_cast %c2_i32 : i32 to index
    %c0_53 = arith.constant 0 : index
    %c0_54 = arith.constant 0 : index
    %167 = vector.load %arg9[%166, %c0_53, %c0_54] : memref<8x2x512xf32, #tpu.memory_space<vmem>>, vector<1x2x512xf32>
    %168 = vector.shape_cast %167 : vector<1x2x512xf32> to vector<2x512xf32>
    %169 = arith.truncf %134 : vector<2x128xf32> to vector<2x128xbf16>
    %c0_55 = arith.constant 0 : index
    %c0_56 = arith.constant 0 : index
    %170 = vector.load %arg3[%c0_55, %c0_56] : memref<128x512xbf16, #tpu.memory_space<vmem>>, vector<128x512xbf16>
    %cst_57 = arith.constant dense<0.000000e+00> : vector<2x512xf32>
    %171 = tpu.matmul %169, %170, %cst_57 {dimension_numbers = #tpu.dot_dimension_numbers<[1], [0], [0], [1], [0, 0, 1, 1], [], []>} : vector<2x128xbf16>, vector<128x512xbf16>, vector<2x512xf32> -> vector<2x512xf32>
    %172 = arith.addf %168, %171 : vector<2x512xf32>
    %173 = vector.extract_strided_slice %172 {offsets = [0, 0], sizes = [2, 128], strides = [1, 1]} : vector<2x512xf32> to vector<2x128xf32>
    %174 = arith.negf %173 : vector<2x128xf32>
    %175 = math.exp %174 : vector<2x128xf32>
    %cst_58 = arith.constant 1.000000e+00 : f32
    %176 = vector.broadcast %cst_58 : f32 to vector<2x128xf32>
    %177 = arith.addf %176, %175 : vector<2x128xf32>
    %178 = arith.divf %176, %177 : vector<2x128xf32>
    %179 = vector.extract_strided_slice %172 {offsets = [0, 128], sizes = [2, 128], strides = [1, 1]} : vector<2x512xf32> to vector<2x128xf32>
    %180 = arith.negf %179 : vector<2x128xf32>
    %181 = math.exp %180 : vector<2x128xf32>
    %cst_59 = arith.constant 1.000000e+00 : f32
    %182 = vector.broadcast %cst_59 : f32 to vector<2x128xf32>
    %183 = arith.addf %182, %181 : vector<2x128xf32>
    %184 = arith.divf %182, %183 : vector<2x128xf32>
    %185 = vector.extract_strided_slice %172 {offsets = [0, 256], sizes = [2, 128], strides = [1, 1]} : vector<2x512xf32> to vector<2x128xf32>
    %186 = math.tanh %185 : vector<2x128xf32>
    %187 = vector.extract_strided_slice %172 {offsets = [0, 384], sizes = [2, 128], strides = [1, 1]} : vector<2x512xf32> to vector<2x128xf32>
    %188 = arith.negf %187 : vector<2x128xf32>
    %189 = math.exp %188 : vector<2x128xf32>
    %cst_60 = arith.constant 1.000000e+00 : f32
    %190 = vector.broadcast %cst_60 : f32 to vector<2x128xf32>
    %191 = arith.addf %190, %189 : vector<2x128xf32>
    %192 = arith.divf %190, %191 : vector<2x128xf32>
    %193 = arith.mulf %184, %132 : vector<2x128xf32>
    %194 = arith.mulf %178, %186 : vector<2x128xf32>
    %195 = arith.addf %193, %194 : vector<2x128xf32>
    %196 = math.tanh %195 : vector<2x128xf32>
    %197 = arith.mulf %192, %196 : vector<2x128xf32>
    %198 = tpu.concatenate %197, %165 in 1 : vector<2x128xf32>, vector<2x128xf32> -> vector<2x256xf32>
    %199 = arith.truncf %198 : vector<2x256xf32> to vector<2x256xbf16>
    %c0_61 = arith.constant 0 : index
    %c0_62 = arith.constant 0 : index
    %200 = vector.load %arg4[%c0_61, %c0_62] : memref<256x512xbf16, #tpu.memory_space<vmem>>, vector<256x512xbf16>
    %cst_63 = arith.constant dense<0.000000e+00> : vector<2x512xf32>
    %201 = tpu.matmul %199, %200, %cst_63 {dimension_numbers = #tpu.dot_dimension_numbers<[1], [0], [0], [1], [0, 0, 1, 1], [], []>} : vector<2x256xbf16>, vector<256x512xbf16>, vector<2x512xf32> -> vector<2x512xf32>
    %202 = vector.broadcast %38 : vector<1x512xf32> to vector<2x512xf32>
    %203 = arith.addf %201, %202 : vector<2x512xf32>
    %204 = vector.extract_strided_slice %203 {offsets = [0, 0], sizes = [2, 128], strides = [1, 1]} : vector<2x512xf32> to vector<2x128xf32>
    %205 = arith.negf %204 : vector<2x128xf32>
    %206 = math.exp %205 : vector<2x128xf32>
    %cst_64 = arith.constant 1.000000e+00 : f32
    %207 = vector.broadcast %cst_64 : f32 to vector<2x128xf32>
    %208 = arith.addf %207, %206 : vector<2x128xf32>
    %209 = arith.divf %207, %208 : vector<2x128xf32>
    %210 = vector.extract_strided_slice %203 {offsets = [0, 128], sizes = [2, 128], strides = [1, 1]} : vector<2x512xf32> to vector<2x128xf32>
    %211 = arith.negf %210 : vector<2x128xf32>
    %212 = math.exp %211 : vector<2x128xf32>
    %cst_65 = arith.constant 1.000000e+00 : f32
    %213 = vector.broadcast %cst_65 : f32 to vector<2x128xf32>
    %214 = arith.addf %213, %212 : vector<2x128xf32>
    %215 = arith.divf %213, %214 : vector<2x128xf32>
    %216 = vector.extract_strided_slice %203 {offsets = [0, 256], sizes = [2, 128], strides = [1, 1]} : vector<2x512xf32> to vector<2x128xf32>
    %217 = math.tanh %216 : vector<2x128xf32>
    %218 = vector.extract_strided_slice %203 {offsets = [0, 384], sizes = [2, 128], strides = [1, 1]} : vector<2x512xf32> to vector<2x128xf32>
    %219 = arith.negf %218 : vector<2x128xf32>
    %220 = math.exp %219 : vector<2x128xf32>
    %cst_66 = arith.constant 1.000000e+00 : f32
    %221 = vector.broadcast %cst_66 : f32 to vector<2x128xf32>
    %222 = arith.addf %221, %220 : vector<2x128xf32>
    %223 = arith.divf %221, %222 : vector<2x128xf32>
    %224 = arith.mulf %215, %163 : vector<2x128xf32>
    %225 = arith.mulf %209, %217 : vector<2x128xf32>
    %226 = arith.addf %224, %225 : vector<2x128xf32>
    %227 = math.tanh %226 : vector<2x128xf32>
    %228 = arith.mulf %223, %227 : vector<2x128xf32>
    %c3_i32 = arith.constant 3 : i32
    %229 = arith.index_cast %c3_i32 : i32 to index
    %c0_67 = arith.constant 0 : index
    %c0_68 = arith.constant 0 : index
    %230 = vector.load %arg9[%229, %c0_67, %c0_68] : memref<8x2x512xf32, #tpu.memory_space<vmem>>, vector<1x2x512xf32>
    %231 = vector.shape_cast %230 : vector<1x2x512xf32> to vector<2x512xf32>
    %232 = arith.truncf %197 : vector<2x128xf32> to vector<2x128xbf16>
    %c0_69 = arith.constant 0 : index
    %c0_70 = arith.constant 0 : index
    %233 = vector.load %arg3[%c0_69, %c0_70] : memref<128x512xbf16, #tpu.memory_space<vmem>>, vector<128x512xbf16>
    %cst_71 = arith.constant dense<0.000000e+00> : vector<2x512xf32>
    %234 = tpu.matmul %232, %233, %cst_71 {dimension_numbers = #tpu.dot_dimension_numbers<[1], [0], [0], [1], [0, 0, 1, 1], [], []>} : vector<2x128xbf16>, vector<128x512xbf16>, vector<2x512xf32> -> vector<2x512xf32>
    %235 = arith.addf %231, %234 : vector<2x512xf32>
    %236 = vector.extract_strided_slice %235 {offsets = [0, 0], sizes = [2, 128], strides = [1, 1]} : vector<2x512xf32> to vector<2x128xf32>
    %237 = arith.negf %236 : vector<2x128xf32>
    %238 = math.exp %237 : vector<2x128xf32>
    %cst_72 = arith.constant 1.000000e+00 : f32
    %239 = vector.broadcast %cst_72 : f32 to vector<2x128xf32>
    %240 = arith.addf %239, %238 : vector<2x128xf32>
    %241 = arith.divf %239, %240 : vector<2x128xf32>
    %242 = vector.extract_strided_slice %235 {offsets = [0, 128], sizes = [2, 128], strides = [1, 1]} : vector<2x512xf32> to vector<2x128xf32>
    %243 = arith.negf %242 : vector<2x128xf32>
    %244 = math.exp %243 : vector<2x128xf32>
    %cst_73 = arith.constant 1.000000e+00 : f32
    %245 = vector.broadcast %cst_73 : f32 to vector<2x128xf32>
    %246 = arith.addf %245, %244 : vector<2x128xf32>
    %247 = arith.divf %245, %246 : vector<2x128xf32>
    %248 = vector.extract_strided_slice %235 {offsets = [0, 256], sizes = [2, 128], strides = [1, 1]} : vector<2x512xf32> to vector<2x128xf32>
    %249 = math.tanh %248 : vector<2x128xf32>
    %250 = vector.extract_strided_slice %235 {offsets = [0, 384], sizes = [2, 128], strides = [1, 1]} : vector<2x512xf32> to vector<2x128xf32>
    %251 = arith.negf %250 : vector<2x128xf32>
    %252 = math.exp %251 : vector<2x128xf32>
    %cst_74 = arith.constant 1.000000e+00 : f32
    %253 = vector.broadcast %cst_74 : f32 to vector<2x128xf32>
    %254 = arith.addf %253, %252 : vector<2x128xf32>
    %255 = arith.divf %253, %254 : vector<2x128xf32>
    %256 = arith.mulf %247, %195 : vector<2x128xf32>
    %257 = arith.mulf %241, %249 : vector<2x128xf32>
    %258 = arith.addf %256, %257 : vector<2x128xf32>
    %259 = math.tanh %258 : vector<2x128xf32>
    %260 = arith.mulf %255, %259 : vector<2x128xf32>
    %261 = tpu.concatenate %260, %228 in 1 : vector<2x128xf32>, vector<2x128xf32> -> vector<2x256xf32>
    %262 = arith.truncf %261 : vector<2x256xf32> to vector<2x256xbf16>
    %c0_75 = arith.constant 0 : index
    %c0_76 = arith.constant 0 : index
    %263 = vector.load %arg4[%c0_75, %c0_76] : memref<256x512xbf16, #tpu.memory_space<vmem>>, vector<256x512xbf16>
    %cst_77 = arith.constant dense<0.000000e+00> : vector<2x512xf32>
    %264 = tpu.matmul %262, %263, %cst_77 {dimension_numbers = #tpu.dot_dimension_numbers<[1], [0], [0], [1], [0, 0, 1, 1], [], []>} : vector<2x256xbf16>, vector<256x512xbf16>, vector<2x512xf32> -> vector<2x512xf32>
    %265 = vector.broadcast %38 : vector<1x512xf32> to vector<2x512xf32>
    %266 = arith.addf %264, %265 : vector<2x512xf32>
    %267 = vector.extract_strided_slice %266 {offsets = [0, 0], sizes = [2, 128], strides = [1, 1]} : vector<2x512xf32> to vector<2x128xf32>
    %268 = arith.negf %267 : vector<2x128xf32>
    %269 = math.exp %268 : vector<2x128xf32>
    %cst_78 = arith.constant 1.000000e+00 : f32
    %270 = vector.broadcast %cst_78 : f32 to vector<2x128xf32>
    %271 = arith.addf %270, %269 : vector<2x128xf32>
    %272 = arith.divf %270, %271 : vector<2x128xf32>
    %273 = vector.extract_strided_slice %266 {offsets = [0, 128], sizes = [2, 128], strides = [1, 1]} : vector<2x512xf32> to vector<2x128xf32>
    %274 = arith.negf %273 : vector<2x128xf32>
    %275 = math.exp %274 : vector<2x128xf32>
    %cst_79 = arith.constant 1.000000e+00 : f32
    %276 = vector.broadcast %cst_79 : f32 to vector<2x128xf32>
    %277 = arith.addf %276, %275 : vector<2x128xf32>
    %278 = arith.divf %276, %277 : vector<2x128xf32>
    %279 = vector.extract_strided_slice %266 {offsets = [0, 256], sizes = [2, 128], strides = [1, 1]} : vector<2x512xf32> to vector<2x128xf32>
    %280 = math.tanh %279 : vector<2x128xf32>
    %281 = vector.extract_strided_slice %266 {offsets = [0, 384], sizes = [2, 128], strides = [1, 1]} : vector<2x512xf32> to vector<2x128xf32>
    %282 = arith.negf %281 : vector<2x128xf32>
    %283 = math.exp %282 : vector<2x128xf32>
    %cst_80 = arith.constant 1.000000e+00 : f32
    %284 = vector.broadcast %cst_80 : f32 to vector<2x128xf32>
    %285 = arith.addf %284, %283 : vector<2x128xf32>
    %286 = arith.divf %284, %285 : vector<2x128xf32>
    %287 = arith.mulf %278, %226 : vector<2x128xf32>
    %288 = arith.mulf %272, %280 : vector<2x128xf32>
    %289 = arith.addf %287, %288 : vector<2x128xf32>
    %290 = math.tanh %289 : vector<2x128xf32>
    %291 = arith.mulf %286, %290 : vector<2x128xf32>
    %c4_i32 = arith.constant 4 : i32
    %292 = arith.index_cast %c4_i32 : i32 to index
    %c0_81 = arith.constant 0 : index
    %c0_82 = arith.constant 0 : index
    %293 = vector.load %arg9[%292, %c0_81, %c0_82] : memref<8x2x512xf32, #tpu.memory_space<vmem>>, vector<1x2x512xf32>
    %294 = vector.shape_cast %293 : vector<1x2x512xf32> to vector<2x512xf32>
    %295 = arith.truncf %260 : vector<2x128xf32> to vector<2x128xbf16>
    %c0_83 = arith.constant 0 : index
    %c0_84 = arith.constant 0 : index
    %296 = vector.load %arg3[%c0_83, %c0_84] : memref<128x512xbf16, #tpu.memory_space<vmem>>, vector<128x512xbf16>
    %cst_85 = arith.constant dense<0.000000e+00> : vector<2x512xf32>
    %297 = tpu.matmul %295, %296, %cst_85 {dimension_numbers = #tpu.dot_dimension_numbers<[1], [0], [0], [1], [0, 0, 1, 1], [], []>} : vector<2x128xbf16>, vector<128x512xbf16>, vector<2x512xf32> -> vector<2x512xf32>
    %298 = arith.addf %294, %297 : vector<2x512xf32>
    %299 = vector.extract_strided_slice %298 {offsets = [0, 0], sizes = [2, 128], strides = [1, 1]} : vector<2x512xf32> to vector<2x128xf32>
    %300 = arith.negf %299 : vector<2x128xf32>
    %301 = math.exp %300 : vector<2x128xf32>
    %cst_86 = arith.constant 1.000000e+00 : f32
    %302 = vector.broadcast %cst_86 : f32 to vector<2x128xf32>
    %303 = arith.addf %302, %301 : vector<2x128xf32>
    %304 = arith.divf %302, %303 : vector<2x128xf32>
    %305 = vector.extract_strided_slice %298 {offsets = [0, 128], sizes = [2, 128], strides = [1, 1]} : vector<2x512xf32> to vector<2x128xf32>
    %306 = arith.negf %305 : vector<2x128xf32>
    %307 = math.exp %306 : vector<2x128xf32>
    %cst_87 = arith.constant 1.000000e+00 : f32
    %308 = vector.broadcast %cst_87 : f32 to vector<2x128xf32>
    %309 = arith.addf %308, %307 : vector<2x128xf32>
    %310 = arith.divf %308, %309 : vector<2x128xf32>
    %311 = vector.extract_strided_slice %298 {offsets = [0, 256], sizes = [2, 128], strides = [1, 1]} : vector<2x512xf32> to vector<2x128xf32>
    %312 = math.tanh %311 : vector<2x128xf32>
    %313 = vector.extract_strided_slice %298 {offsets = [0, 384], sizes = [2, 128], strides = [1, 1]} : vector<2x512xf32> to vector<2x128xf32>
    %314 = arith.negf %313 : vector<2x128xf32>
    %315 = math.exp %314 : vector<2x128xf32>
    %cst_88 = arith.constant 1.000000e+00 : f32
    %316 = vector.broadcast %cst_88 : f32 to vector<2x128xf32>
    %317 = arith.addf %316, %315 : vector<2x128xf32>
    %318 = arith.divf %316, %317 : vector<2x128xf32>
    %319 = arith.mulf %310, %258 : vector<2x128xf32>
    %320 = arith.mulf %304, %312 : vector<2x128xf32>
    %321 = arith.addf %319, %320 : vector<2x128xf32>
    %322 = math.tanh %321 : vector<2x128xf32>
    %323 = arith.mulf %318, %322 : vector<2x128xf32>
    %324 = tpu.concatenate %323, %291 in 1 : vector<2x128xf32>, vector<2x128xf32> -> vector<2x256xf32>
    %325 = arith.truncf %324 : vector<2x256xf32> to vector<2x256xbf16>
    %c0_89 = arith.constant 0 : index
    %c0_90 = arith.constant 0 : index
    %326 = vector.load %arg4[%c0_89, %c0_90] : memref<256x512xbf16, #tpu.memory_space<vmem>>, vector<256x512xbf16>
    %cst_91 = arith.constant dense<0.000000e+00> : vector<2x512xf32>
    %327 = tpu.matmul %325, %326, %cst_91 {dimension_numbers = #tpu.dot_dimension_numbers<[1], [0], [0], [1], [0, 0, 1, 1], [], []>} : vector<2x256xbf16>, vector<256x512xbf16>, vector<2x512xf32> -> vector<2x512xf32>
    %328 = vector.broadcast %38 : vector<1x512xf32> to vector<2x512xf32>
    %329 = arith.addf %327, %328 : vector<2x512xf32>
    %330 = vector.extract_strided_slice %329 {offsets = [0, 0], sizes = [2, 128], strides = [1, 1]} : vector<2x512xf32> to vector<2x128xf32>
    %331 = arith.negf %330 : vector<2x128xf32>
    %332 = math.exp %331 : vector<2x128xf32>
    %cst_92 = arith.constant 1.000000e+00 : f32
    %333 = vector.broadcast %cst_92 : f32 to vector<2x128xf32>
    %334 = arith.addf %333, %332 : vector<2x128xf32>
    %335 = arith.divf %333, %334 : vector<2x128xf32>
    %336 = vector.extract_strided_slice %329 {offsets = [0, 128], sizes = [2, 128], strides = [1, 1]} : vector<2x512xf32> to vector<2x128xf32>
    %337 = arith.negf %336 : vector<2x128xf32>
    %338 = math.exp %337 : vector<2x128xf32>
    %cst_93 = arith.constant 1.000000e+00 : f32
    %339 = vector.broadcast %cst_93 : f32 to vector<2x128xf32>
    %340 = arith.addf %339, %338 : vector<2x128xf32>
    %341 = arith.divf %339, %340 : vector<2x128xf32>
    %342 = vector.extract_strided_slice %329 {offsets = [0, 256], sizes = [2, 128], strides = [1, 1]} : vector<2x512xf32> to vector<2x128xf32>
    %343 = math.tanh %342 : vector<2x128xf32>
    %344 = vector.extract_strided_slice %329 {offsets = [0, 384], sizes = [2, 128], strides = [1, 1]} : vector<2x512xf32> to vector<2x128xf32>
    %345 = arith.negf %344 : vector<2x128xf32>
    %346 = math.exp %345 : vector<2x128xf32>
    %cst_94 = arith.constant 1.000000e+00 : f32
    %347 = vector.broadcast %cst_94 : f32 to vector<2x128xf32>
    %348 = arith.addf %347, %346 : vector<2x128xf32>
    %349 = arith.divf %347, %348 : vector<2x128xf32>
    %350 = arith.mulf %341, %289 : vector<2x128xf32>
    %351 = arith.mulf %335, %343 : vector<2x128xf32>
    %352 = arith.addf %350, %351 : vector<2x128xf32>
    %353 = math.tanh %352 : vector<2x128xf32>
    %354 = arith.mulf %349, %353 : vector<2x128xf32>
    %c5_i32 = arith.constant 5 : i32
    %355 = arith.index_cast %c5_i32 : i32 to index
    %c0_95 = arith.constant 0 : index
    %c0_96 = arith.constant 0 : index
    %356 = vector.load %arg9[%355, %c0_95, %c0_96] : memref<8x2x512xf32, #tpu.memory_space<vmem>>, vector<1x2x512xf32>
    %357 = vector.shape_cast %356 : vector<1x2x512xf32> to vector<2x512xf32>
    %358 = arith.truncf %323 : vector<2x128xf32> to vector<2x128xbf16>
    %c0_97 = arith.constant 0 : index
    %c0_98 = arith.constant 0 : index
    %359 = vector.load %arg3[%c0_97, %c0_98] : memref<128x512xbf16, #tpu.memory_space<vmem>>, vector<128x512xbf16>
    %cst_99 = arith.constant dense<0.000000e+00> : vector<2x512xf32>
    %360 = tpu.matmul %358, %359, %cst_99 {dimension_numbers = #tpu.dot_dimension_numbers<[1], [0], [0], [1], [0, 0, 1, 1], [], []>} : vector<2x128xbf16>, vector<128x512xbf16>, vector<2x512xf32> -> vector<2x512xf32>
    %361 = arith.addf %357, %360 : vector<2x512xf32>
    %362 = vector.extract_strided_slice %361 {offsets = [0, 0], sizes = [2, 128], strides = [1, 1]} : vector<2x512xf32> to vector<2x128xf32>
    %363 = arith.negf %362 : vector<2x128xf32>
    %364 = math.exp %363 : vector<2x128xf32>
    %cst_100 = arith.constant 1.000000e+00 : f32
    %365 = vector.broadcast %cst_100 : f32 to vector<2x128xf32>
    %366 = arith.addf %365, %364 : vector<2x128xf32>
    %367 = arith.divf %365, %366 : vector<2x128xf32>
    %368 = vector.extract_strided_slice %361 {offsets = [0, 128], sizes = [2, 128], strides = [1, 1]} : vector<2x512xf32> to vector<2x128xf32>
    %369 = arith.negf %368 : vector<2x128xf32>
    %370 = math.exp %369 : vector<2x128xf32>
    %cst_101 = arith.constant 1.000000e+00 : f32
    %371 = vector.broadcast %cst_101 : f32 to vector<2x128xf32>
    %372 = arith.addf %371, %370 : vector<2x128xf32>
    %373 = arith.divf %371, %372 : vector<2x128xf32>
    %374 = vector.extract_strided_slice %361 {offsets = [0, 256], sizes = [2, 128], strides = [1, 1]} : vector<2x512xf32> to vector<2x128xf32>
    %375 = math.tanh %374 : vector<2x128xf32>
    %376 = vector.extract_strided_slice %361 {offsets = [0, 384], sizes = [2, 128], strides = [1, 1]} : vector<2x512xf32> to vector<2x128xf32>
    %377 = arith.negf %376 : vector<2x128xf32>
    %378 = math.exp %377 : vector<2x128xf32>
    %cst_102 = arith.constant 1.000000e+00 : f32
    %379 = vector.broadcast %cst_102 : f32 to vector<2x128xf32>
    %380 = arith.addf %379, %378 : vector<2x128xf32>
    %381 = arith.divf %379, %380 : vector<2x128xf32>
    %382 = arith.mulf %373, %321 : vector<2x128xf32>
    %383 = arith.mulf %367, %375 : vector<2x128xf32>
    %384 = arith.addf %382, %383 : vector<2x128xf32>
    %385 = math.tanh %384 : vector<2x128xf32>
    %386 = arith.mulf %381, %385 : vector<2x128xf32>
    %387 = tpu.concatenate %386, %354 in 1 : vector<2x128xf32>, vector<2x128xf32> -> vector<2x256xf32>
    %388 = arith.truncf %387 : vector<2x256xf32> to vector<2x256xbf16>
    %c0_103 = arith.constant 0 : index
    %c0_104 = arith.constant 0 : index
    %389 = vector.load %arg4[%c0_103, %c0_104] : memref<256x512xbf16, #tpu.memory_space<vmem>>, vector<256x512xbf16>
    %cst_105 = arith.constant dense<0.000000e+00> : vector<2x512xf32>
    %390 = tpu.matmul %388, %389, %cst_105 {dimension_numbers = #tpu.dot_dimension_numbers<[1], [0], [0], [1], [0, 0, 1, 1], [], []>} : vector<2x256xbf16>, vector<256x512xbf16>, vector<2x512xf32> -> vector<2x512xf32>
    %391 = vector.broadcast %38 : vector<1x512xf32> to vector<2x512xf32>
    %392 = arith.addf %390, %391 : vector<2x512xf32>
    %393 = vector.extract_strided_slice %392 {offsets = [0, 0], sizes = [2, 128], strides = [1, 1]} : vector<2x512xf32> to vector<2x128xf32>
    %394 = arith.negf %393 : vector<2x128xf32>
    %395 = math.exp %394 : vector<2x128xf32>
    %cst_106 = arith.constant 1.000000e+00 : f32
    %396 = vector.broadcast %cst_106 : f32 to vector<2x128xf32>
    %397 = arith.addf %396, %395 : vector<2x128xf32>
    %398 = arith.divf %396, %397 : vector<2x128xf32>
    %399 = vector.extract_strided_slice %392 {offsets = [0, 128], sizes = [2, 128], strides = [1, 1]} : vector<2x512xf32> to vector<2x128xf32>
    %400 = arith.negf %399 : vector<2x128xf32>
    %401 = math.exp %400 : vector<2x128xf32>
    %cst_107 = arith.constant 1.000000e+00 : f32
    %402 = vector.broadcast %cst_107 : f32 to vector<2x128xf32>
    %403 = arith.addf %402, %401 : vector<2x128xf32>
    %404 = arith.divf %402, %403 : vector<2x128xf32>
    %405 = vector.extract_strided_slice %392 {offsets = [0, 256], sizes = [2, 128], strides = [1, 1]} : vector<2x512xf32> to vector<2x128xf32>
    %406 = math.tanh %405 : vector<2x128xf32>
    %407 = vector.extract_strided_slice %392 {offsets = [0, 384], sizes = [2, 128], strides = [1, 1]} : vector<2x512xf32> to vector<2x128xf32>
    %408 = arith.negf %407 : vector<2x128xf32>
    %409 = math.exp %408 : vector<2x128xf32>
    %cst_108 = arith.constant 1.000000e+00 : f32
    %410 = vector.broadcast %cst_108 : f32 to vector<2x128xf32>
    %411 = arith.addf %410, %409 : vector<2x128xf32>
    %412 = arith.divf %410, %411 : vector<2x128xf32>
    %413 = arith.mulf %404, %352 : vector<2x128xf32>
    %414 = arith.mulf %398, %406 : vector<2x128xf32>
    %415 = arith.addf %413, %414 : vector<2x128xf32>
    %416 = math.tanh %415 : vector<2x128xf32>
    %417 = arith.mulf %412, %416 : vector<2x128xf32>
    %c6_i32 = arith.constant 6 : i32
    %418 = arith.index_cast %c6_i32 : i32 to index
    %c0_109 = arith.constant 0 : index
    %c0_110 = arith.constant 0 : index
    %419 = vector.load %arg9[%418, %c0_109, %c0_110] : memref<8x2x512xf32, #tpu.memory_space<vmem>>, vector<1x2x512xf32>
    %420 = vector.shape_cast %419 : vector<1x2x512xf32> to vector<2x512xf32>
    %421 = arith.truncf %386 : vector<2x128xf32> to vector<2x128xbf16>
    %c0_111 = arith.constant 0 : index
    %c0_112 = arith.constant 0 : index
    %422 = vector.load %arg3[%c0_111, %c0_112] : memref<128x512xbf16, #tpu.memory_space<vmem>>, vector<128x512xbf16>
    %cst_113 = arith.constant dense<0.000000e+00> : vector<2x512xf32>
    %423 = tpu.matmul %421, %422, %cst_113 {dimension_numbers = #tpu.dot_dimension_numbers<[1], [0], [0], [1], [0, 0, 1, 1], [], []>} : vector<2x128xbf16>, vector<128x512xbf16>, vector<2x512xf32> -> vector<2x512xf32>
    %424 = arith.addf %420, %423 : vector<2x512xf32>
    %425 = vector.extract_strided_slice %424 {offsets = [0, 0], sizes = [2, 128], strides = [1, 1]} : vector<2x512xf32> to vector<2x128xf32>
    %426 = arith.negf %425 : vector<2x128xf32>
    %427 = math.exp %426 : vector<2x128xf32>
    %cst_114 = arith.constant 1.000000e+00 : f32
    %428 = vector.broadcast %cst_114 : f32 to vector<2x128xf32>
    %429 = arith.addf %428, %427 : vector<2x128xf32>
    %430 = arith.divf %428, %429 : vector<2x128xf32>
    %431 = vector.extract_strided_slice %424 {offsets = [0, 128], sizes = [2, 128], strides = [1, 1]} : vector<2x512xf32> to vector<2x128xf32>
    %432 = arith.negf %431 : vector<2x128xf32>
    %433 = math.exp %432 : vector<2x128xf32>
    %cst_115 = arith.constant 1.000000e+00 : f32
    %434 = vector.broadcast %cst_115 : f32 to vector<2x128xf32>
    %435 = arith.addf %434, %433 : vector<2x128xf32>
    %436 = arith.divf %434, %435 : vector<2x128xf32>
    %437 = vector.extract_strided_slice %424 {offsets = [0, 256], sizes = [2, 128], strides = [1, 1]} : vector<2x512xf32> to vector<2x128xf32>
    %438 = math.tanh %437 : vector<2x128xf32>
    %439 = vector.extract_strided_slice %424 {offsets = [0, 384], sizes = [2, 128], strides = [1, 1]} : vector<2x512xf32> to vector<2x128xf32>
    %440 = arith.negf %439 : vector<2x128xf32>
    %441 = math.exp %440 : vector<2x128xf32>
    %cst_116 = arith.constant 1.000000e+00 : f32
    %442 = vector.broadcast %cst_116 : f32 to vector<2x128xf32>
    %443 = arith.addf %442, %441 : vector<2x128xf32>
    %444 = arith.divf %442, %443 : vector<2x128xf32>
    %445 = arith.mulf %436, %384 : vector<2x128xf32>
    %446 = arith.mulf %430, %438 : vector<2x128xf32>
    %447 = arith.addf %445, %446 : vector<2x128xf32>
    %448 = math.tanh %447 : vector<2x128xf32>
    %449 = arith.mulf %444, %448 : vector<2x128xf32>
    %450 = tpu.concatenate %449, %417 in 1 : vector<2x128xf32>, vector<2x128xf32> -> vector<2x256xf32>
    %451 = arith.truncf %450 : vector<2x256xf32> to vector<2x256xbf16>
    %c0_117 = arith.constant 0 : index
    %c0_118 = arith.constant 0 : index
    %452 = vector.load %arg4[%c0_117, %c0_118] : memref<256x512xbf16, #tpu.memory_space<vmem>>, vector<256x512xbf16>
    %cst_119 = arith.constant dense<0.000000e+00> : vector<2x512xf32>
    %453 = tpu.matmul %451, %452, %cst_119 {dimension_numbers = #tpu.dot_dimension_numbers<[1], [0], [0], [1], [0, 0, 1, 1], [], []>} : vector<2x256xbf16>, vector<256x512xbf16>, vector<2x512xf32> -> vector<2x512xf32>
    %454 = vector.broadcast %38 : vector<1x512xf32> to vector<2x512xf32>
    %455 = arith.addf %453, %454 : vector<2x512xf32>
    %456 = vector.extract_strided_slice %455 {offsets = [0, 0], sizes = [2, 128], strides = [1, 1]} : vector<2x512xf32> to vector<2x128xf32>
    %457 = arith.negf %456 : vector<2x128xf32>
    %458 = math.exp %457 : vector<2x128xf32>
    %cst_120 = arith.constant 1.000000e+00 : f32
    %459 = vector.broadcast %cst_120 : f32 to vector<2x128xf32>
    %460 = arith.addf %459, %458 : vector<2x128xf32>
    %461 = arith.divf %459, %460 : vector<2x128xf32>
    %462 = vector.extract_strided_slice %455 {offsets = [0, 128], sizes = [2, 128], strides = [1, 1]} : vector<2x512xf32> to vector<2x128xf32>
    %463 = arith.negf %462 : vector<2x128xf32>
    %464 = math.exp %463 : vector<2x128xf32>
    %cst_121 = arith.constant 1.000000e+00 : f32
    %465 = vector.broadcast %cst_121 : f32 to vector<2x128xf32>
    %466 = arith.addf %465, %464 : vector<2x128xf32>
    %467 = arith.divf %465, %466 : vector<2x128xf32>
    %468 = vector.extract_strided_slice %455 {offsets = [0, 256], sizes = [2, 128], strides = [1, 1]} : vector<2x512xf32> to vector<2x128xf32>
    %469 = math.tanh %468 : vector<2x128xf32>
    %470 = vector.extract_strided_slice %455 {offsets = [0, 384], sizes = [2, 128], strides = [1, 1]} : vector<2x512xf32> to vector<2x128xf32>
    %471 = arith.negf %470 : vector<2x128xf32>
    %472 = math.exp %471 : vector<2x128xf32>
    %cst_122 = arith.constant 1.000000e+00 : f32
    %473 = vector.broadcast %cst_122 : f32 to vector<2x128xf32>
    %474 = arith.addf %473, %472 : vector<2x128xf32>
    %475 = arith.divf %473, %474 : vector<2x128xf32>
    %476 = arith.mulf %467, %415 : vector<2x128xf32>
    %477 = arith.mulf %461, %469 : vector<2x128xf32>
    %478 = arith.addf %476, %477 : vector<2x128xf32>
    %479 = math.tanh %478 : vector<2x128xf32>
    %480 = arith.mulf %475, %479 : vector<2x128xf32>
    %c7_i32 = arith.constant 7 : i32
    %481 = arith.index_cast %c7_i32 : i32 to index
    %c0_123 = arith.constant 0 : index
    %c0_124 = arith.constant 0 : index
    %482 = vector.load %arg9[%481, %c0_123, %c0_124] : memref<8x2x512xf32, #tpu.memory_space<vmem>>, vector<1x2x512xf32>
    %483 = vector.shape_cast %482 : vector<1x2x512xf32> to vector<2x512xf32>
    %484 = arith.truncf %449 : vector<2x128xf32> to vector<2x128xbf16>
    %c0_125 = arith.constant 0 : index
    %c0_126 = arith.constant 0 : index
    %485 = vector.load %arg3[%c0_125, %c0_126] : memref<128x512xbf16, #tpu.memory_space<vmem>>, vector<128x512xbf16>
    %cst_127 = arith.constant dense<0.000000e+00> : vector<2x512xf32>
    %486 = tpu.matmul %484, %485, %cst_127 {dimension_numbers = #tpu.dot_dimension_numbers<[1], [0], [0], [1], [0, 0, 1, 1], [], []>} : vector<2x128xbf16>, vector<128x512xbf16>, vector<2x512xf32> -> vector<2x512xf32>
    %487 = arith.addf %483, %486 : vector<2x512xf32>
    %488 = vector.extract_strided_slice %487 {offsets = [0, 0], sizes = [2, 128], strides = [1, 1]} : vector<2x512xf32> to vector<2x128xf32>
    %489 = arith.negf %488 : vector<2x128xf32>
    %490 = math.exp %489 : vector<2x128xf32>
    %cst_128 = arith.constant 1.000000e+00 : f32
    %491 = vector.broadcast %cst_128 : f32 to vector<2x128xf32>
    %492 = arith.addf %491, %490 : vector<2x128xf32>
    %493 = arith.divf %491, %492 : vector<2x128xf32>
    %494 = vector.extract_strided_slice %487 {offsets = [0, 128], sizes = [2, 128], strides = [1, 1]} : vector<2x512xf32> to vector<2x128xf32>
    %495 = arith.negf %494 : vector<2x128xf32>
    %496 = math.exp %495 : vector<2x128xf32>
    %cst_129 = arith.constant 1.000000e+00 : f32
    %497 = vector.broadcast %cst_129 : f32 to vector<2x128xf32>
    %498 = arith.addf %497, %496 : vector<2x128xf32>
    %499 = arith.divf %497, %498 : vector<2x128xf32>
    %500 = vector.extract_strided_slice %487 {offsets = [0, 256], sizes = [2, 128], strides = [1, 1]} : vector<2x512xf32> to vector<2x128xf32>
    %501 = math.tanh %500 : vector<2x128xf32>
    %502 = vector.extract_strided_slice %487 {offsets = [0, 384], sizes = [2, 128], strides = [1, 1]} : vector<2x512xf32> to vector<2x128xf32>
    %503 = arith.negf %502 : vector<2x128xf32>
    %504 = math.exp %503 : vector<2x128xf32>
    %cst_130 = arith.constant 1.000000e+00 : f32
    %505 = vector.broadcast %cst_130 : f32 to vector<2x128xf32>
    %506 = arith.addf %505, %504 : vector<2x128xf32>
    %507 = arith.divf %505, %506 : vector<2x128xf32>
    %508 = arith.mulf %499, %447 : vector<2x128xf32>
    %509 = arith.mulf %493, %501 : vector<2x128xf32>
    %510 = arith.addf %508, %509 : vector<2x128xf32>
    %511 = math.tanh %510 : vector<2x128xf32>
    %512 = arith.mulf %507, %511 : vector<2x128xf32>
    %513 = tpu.concatenate %512, %480 in 1 : vector<2x128xf32>, vector<2x128xf32> -> vector<2x256xf32>
    %514 = arith.truncf %513 : vector<2x256xf32> to vector<2x256xbf16>
    %c0_131 = arith.constant 0 : index
    %c0_132 = arith.constant 0 : index
    %515 = vector.load %arg4[%c0_131, %c0_132] : memref<256x512xbf16, #tpu.memory_space<vmem>>, vector<256x512xbf16>
    %cst_133 = arith.constant dense<0.000000e+00> : vector<2x512xf32>
    %516 = tpu.matmul %514, %515, %cst_133 {dimension_numbers = #tpu.dot_dimension_numbers<[1], [0], [0], [1], [0, 0, 1, 1], [], []>} : vector<2x256xbf16>, vector<256x512xbf16>, vector<2x512xf32> -> vector<2x512xf32>
    %517 = vector.broadcast %38 : vector<1x512xf32> to vector<2x512xf32>
    %518 = arith.addf %516, %517 : vector<2x512xf32>
    %519 = vector.extract_strided_slice %518 {offsets = [0, 0], sizes = [2, 128], strides = [1, 1]} : vector<2x512xf32> to vector<2x128xf32>
    %520 = arith.negf %519 : vector<2x128xf32>
    %521 = math.exp %520 : vector<2x128xf32>
    %cst_134 = arith.constant 1.000000e+00 : f32
    %522 = vector.broadcast %cst_134 : f32 to vector<2x128xf32>
    %523 = arith.addf %522, %521 : vector<2x128xf32>
    %524 = arith.divf %522, %523 : vector<2x128xf32>
    %525 = vector.extract_strided_slice %518 {offsets = [0, 128], sizes = [2, 128], strides = [1, 1]} : vector<2x512xf32> to vector<2x128xf32>
    %526 = arith.negf %525 : vector<2x128xf32>
    %527 = math.exp %526 : vector<2x128xf32>
    %cst_135 = arith.constant 1.000000e+00 : f32
    %528 = vector.broadcast %cst_135 : f32 to vector<2x128xf32>
    %529 = arith.addf %528, %527 : vector<2x128xf32>
    %530 = arith.divf %528, %529 : vector<2x128xf32>
    %531 = vector.extract_strided_slice %518 {offsets = [0, 256], sizes = [2, 128], strides = [1, 1]} : vector<2x512xf32> to vector<2x128xf32>
    %532 = math.tanh %531 : vector<2x128xf32>
    %533 = vector.extract_strided_slice %518 {offsets = [0, 384], sizes = [2, 128], strides = [1, 1]} : vector<2x512xf32> to vector<2x128xf32>
    %534 = arith.negf %533 : vector<2x128xf32>
    %535 = math.exp %534 : vector<2x128xf32>
    %cst_136 = arith.constant 1.000000e+00 : f32
    %536 = vector.broadcast %cst_136 : f32 to vector<2x128xf32>
    %537 = arith.addf %536, %535 : vector<2x128xf32>
    %538 = arith.divf %536, %537 : vector<2x128xf32>
    %539 = arith.mulf %530, %478 : vector<2x128xf32>
    %540 = arith.mulf %524, %532 : vector<2x128xf32>
    %541 = arith.addf %539, %540 : vector<2x128xf32>
    %542 = math.tanh %541 : vector<2x128xf32>
    %543 = arith.mulf %538, %542 : vector<2x128xf32>
    %c8_i32 = arith.constant 8 : i32
    %c0_137 = arith.constant 0 : index
    %c0_138 = arith.constant 0 : index
    %544 = vector.load %arg6[%c0_137, %c0_138] : memref<1x128xf32, #tpu.memory_space<vmem>>, vector<1x128xf32>
    %545 = vector.broadcast %544 : vector<1x128xf32> to vector<2x128xf32>
    %546 = arith.mulf %543, %545 : vector<2x128xf32>
    %cst_139 = arith.constant dense<0.000000e+00> : vector<2xf32>
    %547 = vector.multi_reduction <add>, %546, %cst_139 [1] : vector<2x128xf32> to vector<2xf32>
    %548 = vector.shape_cast %547 : vector<2xf32> to vector<2x1xf32>
    %c0_140 = arith.constant 0 : index
    %c0_141 = arith.constant 0 : index
    %549 = vector.load %arg7[%c0_140, %c0_141] : memref<1x1xf32, #tpu.memory_space<vmem>>, vector<1x1xf32>
    %550 = vector.broadcast %549 : vector<1x1xf32> to vector<2x1xf32>
    %551 = arith.addf %548, %550 : vector<2x1xf32>
    %c0_142 = arith.constant 0 : index
    %c0_143 = arith.constant 0 : index
    %552 = vector.load %arg8[%c0_142, %c0_143] : memref<2x1xf32, #tpu.memory_space<vmem>>, vector<2x1xf32>
    tpu.vector_store %arg8[%c0_142, %c0_143], %551 {strides = array<i32>} : memref<2x1xf32, #tpu.memory_space<vmem>>, vector<2x1xf32>,
    return
  }
}

</mosaic_0001>

<llo_original>
// kernel: tpu_custom_call.1
$region0: #{tpu_custom_call.1}
  #allocation0 [shape = 'u32[]', space=smem, size = 0x4, offset = 0x4, fixed_abs, tag = 'smem constant byte address 0x4 - core index']
  #allocation1 [shape = 'u32[144,128]{1,0:T(1,128)}', space=vmem, size = 0x12000, scoped, tag = 'internal scratch']
  #allocation2 [shape = 'f32[8,2,512]{2,1,0:T(2,128)}', space=vmem, size = 0x8000, scoped, tag = 'scratch operand']
  #allocation3 [shape = 'f32[1,1]{1,0:T(1,128)S(1)}', space=vmem, size = 0x200, scoped, tag = 'scoped memory for tpu_custom_call.1']
  %s0 = inlined_call_operand.hbm [shape: f32[16,128], index: 0, kind: input, shape index: {}]
  %s1 = inlined_call_operand.hbm [shape: f32[128,512], index: 1, kind: input, shape index: {}]
  %s2 = inlined_call_operand.vmem [shape: f32[1,512], index: 2, kind: input, shape index: {}]
  %s3 = inlined_call_operand.hbm [shape: bf16[128,512], index: 3, kind: input, shape index: {}]
  %s4 = inlined_call_operand.hbm [shape: bf16[256,512], index: 4, kind: input, shape index: {}]
  %s5 = inlined_call_operand.vmem [shape: f32[1,512], index: 5, kind: input, shape index: {}]
  %s6 = inlined_call_operand.vmem [shape: f32[1,128], index: 6, kind: input, shape index: {}]
  %s7 = inlined_call_operand.<no memory space> [shape: f32[1,1], index: 7, kind: input, shape index: {}]
  %s8 = inlined_call_operand.vmem [shape: f32[2,1], index: 8, kind: output, shape index: {}]
  %s9 = sld [smem:[#allocation0]]
  $region58: #{tpu_custom_call.1} parent=0
    _
  %s11 = ssub.s32 1, %s9
  %s12 = scalar_select 0, %s11, %s9
  %v13 = vstv %s7
  %14 = vst [vmem:[#allocation3] sm:$0x1] %v13
  $region1: #{tpu_custom_call.1} parent=0
    #allocation4 [shape = 'u8[8192]{0}', space=vmem, size = 0x2000, scoped, tag = 'input window, operand 0, single buffered']
    #allocation5 [shape = 's32[1]{0}', space=sflag, size = 0x4, scoped, tag = 'scoped memory for tpu_custom_call.1']
    #allocation6 [shape = 'u8[262144]{0}', space=vmem, size = 0x40000, scoped, tag = 'input window, operand 1, single buffered']
    #allocation7 [shape = 's32[1]{0}', space=sflag, size = 0x4, scoped, tag = 'scoped memory for tpu_custom_call.1']
    #allocation8 [shape = 'u8[131072]{0}', space=vmem, size = 0x20000, scoped, tag = 'input window, operand 3, single buffered']
    #allocation9 [shape = 'u8[262144]{0}', space=vmem, size = 0x40000, scoped, tag = 'input window, operand 4, single buffered']
    #allocation10 [shape = 's32[1]{0}', space=sflag, size = 0x4, scoped, tag = 'scoped memory for tpu_custom_call.1']
    %15 = vsyncpa [#allocation5], 0
    %16 = vsyncpa [#allocation7], 0
    %17 = vsyncpa [#allocation10], 0
    // Predicated region
    $region2: #{tpu_custom_call.1} parent=1 // pred_check
      _
    $region3: #{tpu_custom_call.1} parent=1 // pred_check_branch
      %19 = sbr.rel (0) target = $region5
    $region4: #{tpu_custom_call.1} parent=1 // pred_region
      %s21 = ssub.s32 256, 256
      %22 = vsyncadd [#allocation5], %s21
      %s23 = sshll.u32 [#allocation4], 4
      %s24 = int_to_ptr.vmem [resolvable:$true] %s23
      %29 = dma.hbm_to_vmem [thread:$0]  %s0, 256, %s24, [#allocation5], 128, 128, 8
    $region5: #{tpu_custom_call.1} parent=1 // pred_fallthru
      _
    // Predicated region
    $region6: #{tpu_custom_call.1} parent=1 // pred_check
      _
    $region7: #{tpu_custom_call.1} parent=1 // pred_check_branch
      %31 = sbr.rel (0) target = $region9
    $region8: #{tpu_custom_call.1} parent=1 // pred_region
      %s33 = ssub.s32 8192, 8192
      %34 = vsyncadd [#allocation7], %s33
      %s35 = sshll.u32 [#allocation6], 4
      %s36 = int_to_ptr.vmem [resolvable:$true] %s35
      %41 = dma.hbm_to_vmem [thread:$0]  %s1, 8192, %s36, [#allocation7], 512, 512, 32
    $region9: #{tpu_custom_call.1} parent=1 // pred_fallthru
      _
    // Predicated region
    $region10: #{tpu_custom_call.1} parent=1 // pred_check
      _
    $region11: #{tpu_custom_call.1} parent=1 // pred_check_branch
      %43 = sbr.rel (0) target = $region13
    $region12: #{tpu_custom_call.1} parent=1 // pred_region
      _
    $region13: #{tpu_custom_call.1} parent=1 // pred_fallthru
      _
    // Predicated region
    $region14: #{tpu_custom_call.1} parent=1 // pred_check
      _
    $region15: #{tpu_custom_call.1} parent=1 // pred_check_branch
      %45 = sbr.rel (0) target = $region17
    $region16: #{tpu_custom_call.1} parent=1 // pred_region
      %s47 = ssub.s32 4096, 4096
      %48 = vsyncadd [#allocation7], %s47
      %s49 = sshll.u32 [#allocation8], 4
      %s50 = int_to_ptr.vmem [resolvable:$true] %s49
      %55 = dma.hbm_to_vmem [thread:$0]  %s3, 4096, %s50, [#allocation7], 256, 256, 16
    $region17: #{tpu_custom_call.1} parent=1 // pred_fallthru
      _
    // Predicated region
    $region18: #{tpu_custom_call.1} parent=1 // pred_check
      _
    $region19: #{tpu_custom_call.1} parent=1 // pred_check_branch
      %57 = sbr.rel (0) target = $region21
    $region20: #{tpu_custom_call.1} parent=1 // pred_region
      %s59 = ssub.s32 8192, 8192
      %60 = vsyncadd [#allocation10], %s59
      %s61 = sshll.u32 [#allocation9], 4
      %s62 = int_to_ptr.vmem [resolvable:$true] %s61
      %67 = dma.hbm_to_vmem [thread:$0]  %s4, 8192, %s62, [#allocation10], 256, 256, 16
    $region21: #{tpu_custom_call.1} parent=1 // pred_fallthru
      _
    // Predicated region
    $region22: #{tpu_custom_call.1} parent=1 // pred_check
      _
    $region23: #{tpu_custom_call.1} parent=1 // pred_check_branch
      %69 = sbr.rel (0) target = $region25
    $region24: #{tpu_custom_call.1} parent=1 // pred_region
      _
    $region25: #{tpu_custom_call.1} parent=1 // pred_fallthru
      _
    // Predicated region
    $region26: #{tpu_custom_call.1} parent=1 // pred_check
      _
    $region27: #{tpu_custom_call.1} parent=1 // pred_check_branch
      %71 = sbr.rel (0) target = $region29
    $region28: #{tpu_custom_call.1} parent=1 // pred_region
      _
    $region29: #{tpu_custom_call.1} parent=1 // pred_fallthru
      _
    // Predicated region
    $region30: #{tpu_custom_call.1} parent=1 // pred_check
      _
    $region31: #{tpu_custom_call.1} parent=1 // pred_check_branch
      %73 = sbr.rel (0) target = $region33
    $region32: #{tpu_custom_call.1} parent=1 // pred_region
      _
    $region33: #{tpu_custom_call.1} parent=1 // pred_fallthru
      _
    // Predicated region
    $region34: #{tpu_custom_call.1} parent=1 // pred_check
      _
    $region35: #{tpu_custom_call.1} parent=1 // pred_check_branch
      %75 = sbr.rel (0) target = $region37
    $region36: #{tpu_custom_call.1} parent=1 // pred_region
      %76 = dma.done [#allocation5], 256
    $region37: #{tpu_custom_call.1} parent=1 // pred_fallthru
      _
    // Predicated region
    $region38: #{tpu_custom_call.1} parent=1 // pred_check
      _
    $region39: #{tpu_custom_call.1} parent=1 // pred_check_branch
      %78 = sbr.rel (0) target = $region41
    $region40: #{tpu_custom_call.1} parent=1 // pred_region
      %79 = dma.done [#allocation7], 8192
    $region41: #{tpu_custom_call.1} parent=1 // pred_fallthru
      _
    // Predicated region
    $region42: #{tpu_custom_call.1} parent=1 // pred_check
      _
    $region43: #{tpu_custom_call.1} parent=1 // pred_check_branch
      %81 = sbr.rel (0) target = $region45
    $region44: #{tpu_custom_call.1} parent=1 // pred_region
      %82 = dma.done [#allocation7], 4096
    $region45: #{tpu_custom_call.1} parent=1 // pred_fallthru
      _
    // Predicated region
    $region46: #{tpu_custom_call.1} parent=1 // pred_check
      _
    $region47: #{tpu_custom_call.1} parent=1 // pred_check_branch
      %84 = sbr.rel (0) target = $region49
    $region48: #{tpu_custom_call.1} parent=1 // pred_region
      %85 = dma.done [#allocation10], 8192
    $region49: #{tpu_custom_call.1} parent=1 // pred_fallthru
      _
    %v87 = vld [vmem:[#allocation4] sm:$0xff]
    %v88 = vld [vmem:[#allocation4 + $0x8] sm:$0xff]
    %v89 = vld [vmem:[#allocation6] sm:$0xff]
    %v90 = vld [vmem:[#allocation6 + $0x8] sm:$0xff]
    %v91 = vld [vmem:[#allocation6 + $0x10] sm:$0xff]
    %v92 = vld [vmem:[#allocation6 + $0x18] sm:$0xff]
    %v93 = vld [vmem:[#allocation6 + $0x20] sm:$0xff]
    %v94 = vld [vmem:[#allocation6 + $0x28] sm:$0xff]
    %v95 = vld [vmem:[#allocation6 + $0x30] sm:$0xff]
    %v96 = vld [vmem:[#allocation6 + $0x38] sm:$0xff]
    %v97 = vld [vmem:[#allocation6 + $0x40] sm:$0xff]
    %v98 = vld [vmem:[#allocation6 + $0x48] sm:$0xff]
    %v99 = vld [vmem:[#allocation6 + $0x50] sm:$0xff]
    %v100 = vld [vmem:[#allocation6 + $0x58] sm:$0xff]
    %v101 = vld [vmem:[#allocation6 + $0x60] sm:$0xff]
    %v102 = vld [vmem:[#allocation6 + $0x68] sm:$0xff]
    %v103 = vld [vmem:[#allocation6 + $0x70] sm:$0xff]
    %v104 = vld [vmem:[#allocation6 + $0x78] sm:$0xff]
    %v105 = vld [vmem:[#allocation6 + $0x80] sm:$0xff]
    %v106 = vld [vmem:[#allocation6 + $0x88] sm:$0xff]
    %v107 = vld [vmem:[#allocation6 + $0x90] sm:$0xff]
    %v108 = vld [vmem:[#allocation6 + $0x98] sm:$0xff]
    %v109 = vld [vmem:[#allocation6 + $0xa0] sm:$0xff]
    %v110 = vld [vmem:[#allocation6 + $0xa8] sm:$0xff]
    %v111 = vld [vmem:[#allocation6 + $0xb0] sm:$0xff]
    %v112 = vld [vmem:[#allocation6 + $0xb8] sm:$0xff]
    %v113 = vld [vmem:[#allocation6 + $0xc0] sm:$0xff]
    %v114 = vld [vmem:[#allocation6 + $0xc8] sm:$0xff]
    %v115 = vld [vmem:[#allocation6 + $0xd0] sm:$0xff]
    %v116 = vld [vmem:[#allocation6 + $0xd8] sm:$0xff]
    %v117 = vld [vmem:[#allocation6 + $0xe0] sm:$0xff]
    %v118 = vld [vmem:[#allocation6 + $0xe8] sm:$0xff]
    %v119 = vld [vmem:[#allocation6 + $0xf0] sm:$0xff]
    %v120 = vld [vmem:[#allocation6 + $0xf8] sm:$0xff]
    %v121 = vld [vmem:[#allocation6 + $0x100] sm:$0xff]
    %v122 = vld [vmem:[#allocation6 + $0x108] sm:$0xff]
    %v123 = vld [vmem:[#allocation6 + $0x110] sm:$0xff]
    %v124 = vld [vmem:[#allocation6 + $0x118] sm:$0xff]
    %v125 = vld [vmem:[#allocation6 + $0x120] sm:$0xff]
    %v126 = vld [vmem:[#allocation6 + $0x128] sm:$0xff]
    %v127 = vld [vmem:[#allocation6 + $0x130] sm:$0xff]
    %v128 = vld [vmem:[#allocation6 + $0x138] sm:$0xff]
    %v129 = vld [vmem:[#allocation6 + $0x140] sm:$0xff]
    %v130 = vld [vmem:[#allocation6 + $0x148] sm:$0xff]
    %v131 = vld [vmem:[#allocation6 + $0x150] sm:$0xff]
    %v132 = vld [vmem:[#allocation6 + $0x158] sm:$0xff]
    %v133 = vld [vmem:[#allocation6 + $0x160] sm:$0xff]
    %v134 = vld [vmem:[#allocation6 + $0x168] sm:$0xff]
    %v135 = vld [vmem:[#allocation6 + $0x170] sm:$0xff]
    %v136 = vld [vmem:[#allocation6 + $0x178] sm:$0xff]
    %v137 = vld [vmem:[#allocation6 + $0x180] sm:$0xff]
    %v138 = vld [vmem:[#allocation6 + $0x188] sm:$0xff]
    %v139 = vld [vmem:[#allocation6 + $0x190] sm:$0xff]
    %v140 = vld [vmem:[#allocation6 + $0x198] sm:$0xff]
    %v141 = vld [vmem:[#allocation6 + $0x1a0] sm:$0xff]
    %v142 = vld [vmem:[#allocation6 + $0x1a8] sm:$0xff]
    %v143 = vld [vmem:[#allocation6 + $0x1b0] sm:$0xff]
    %v144 = vld [vmem:[#allocation6 + $0x1b8] sm:$0xff]
    %v145 = vld [vmem:[#allocation6 + $0x1c0] sm:$0xff]
    %v146 = vld [vmem:[#allocation6 + $0x1c8] sm:$0xff]
    %v147 = vld [vmem:[#allocation6 + $0x1d0] sm:$0xff]
    %v148 = vld [vmem:[#allocation6 + $0x1d8] sm:$0xff]
    %v149 = vld [vmem:[#allocation6 + $0x1e0] sm:$0xff]
    %v150 = vld [vmem:[#allocation6 + $0x1e8] sm:$0xff]
    %v151 = vld [vmem:[#allocation6 + $0x1f0] sm:$0xff]
    %v152 = vld [vmem:[#allocation6 + $0x1f8] sm:$0xff]
    %v153 = vld [vmem:[%s2] sm:$0xf]
    %v155 = vlaneseq
    %v156 = vshrl.u32 %v155, 7
    %v157 = vsub.s32 0, %v156
    %v158 = vrot.slane %v153, %v157
    %v159 = vlaneseq
    %v160 = vshrl.u32 %v159, 7
    %v161 = vsub.s32 1, %v160
    %v162 = vrot.slane %v153, %v161
    %v163 = vlaneseq
    %v164 = vshrl.u32 %v163, 7
    %v165 = vsub.s32 2, %v164
    %v166 = vrot.slane %v153, %v165
    %v167 = vlaneseq
    %v168 = vshrl.u32 %v167, 7
    %v169 = vsub.s32 3, %v168
    %v170 = vrot.slane %v153, %v169
    %175 = vmatprep.subr.mxu0 %v150
    %176 = vmatpush1.msra.mxu0 %v149
    %177 = vmatprep.subr.mxu0 %v146
    %178 = vmatpush1.msra.mxu0 %v145
    %179 = vmatprep.subr.mxu0 %v142
    %180 = vmatpush1.msra.mxu0 %v141
    %181 = vmatprep.subr.mxu0 %v138
    %182 = vmatpush1.msra.mxu0 %v137
    %183 = vmatprep.subr.mxu0 %v134
    %184 = vmatpush1.msra.mxu0 %v133
    %185 = vmatprep.subr.mxu0 %v130
    %186 = vmatpush1.msra.mxu0 %v129
    %187 = vmatprep.subr.mxu0 %v126
    %188 = vmatpush1.msra.mxu0 %v125
    %189 = vmatprep.subr.mxu0 %v122
    %190 = vmatpush1.msra.mxu0 %v121
    %191 = vmatprep.subr.mxu0 %v118
    %192 = vmatpush1.msra.mxu0 %v117
    %193 = vmatprep.subr.mxu0 %v114
    %194 = vmatpush1.msra.mxu0 %v113
    %195 = vmatprep.subr.mxu0 %v110
    %196 = vmatpush1.msra.mxu0 %v109
    %197 = vmatprep.subr.mxu0 %v106
    %198 = vmatpush1.msra.mxu0 %v105
    %199 = vmatprep.subr.mxu0 %v102
    %200 = vmatpush1.msra.mxu0 %v101
    %201 = vmatprep.subr.mxu0 %v98
    %202 = vmatpush1.msra.mxu0 %v97
    %203 = vmatprep.subr.mxu0 %v94
    %204 = vmatpush1.msra.mxu0 %v93
    %205 = vmatprep.subr.mxu0 %v90
    %206 = vmatpush1.msra.mxu0 %v89
    %207 = vmatprep.subr.mxu0 0.0
    %208 = vmatpush2.msra.mxu0 0.0
    %209 = vmatprep.subr.mxu0 0.0
    %210 = vmatpush2.msra.mxu0 0.0
    %211 = vmatprep.subr.mxu0 0.0
    %212 = vmatpush2.msra.mxu0 0.0
    %213 = vmatprep.subr.mxu0 0.0
    %214 = vmatpush2.msra.mxu0 0.0
    %215 = vmatprep.subr.mxu0 0.0
    %216 = vmatpush2.msra.mxu0 0.0
    %217 = vmatprep.subr.mxu0 0.0
    %218 = vmatpush2.msra.mxu0 0.0
    %219 = vmatprep.subr.mxu0 0.0
    %220 = vmatpush2.msra.mxu0 0.0
    %221 = vmatprep.subr.mxu0 0.0
    %222 = vmatpush2.msra.mxu0 0.0
    %223 = vmatprep.subr.mxu0 0.0
    %224 = vmatpush2.msra.mxu0 0.0
    %225 = vmatprep.subr.mxu0 0.0
    %226 = vmatpush2.msra.mxu0 0.0
    %227 = vmatprep.subr.mxu0 0.0
    %228 = vmatpush2.msra.mxu0 0.0
    %229 = vmatprep.subr.mxu0 0.0
    %230 = vmatpush2.msra.mxu0 0.0
    %231 = vmatprep.subr.mxu0 0.0
    %232 = vmatpush2.msra.mxu0 0.0
    %233 = vmatprep.subr.mxu0 0.0
    %234 = vmatpush2.msra.mxu0 0.0
    %235 = vmatprep.subr.mxu0 0.0
    %236 = vmatpush2.msra.mxu0 0.0
    %237 = vmatprep.subr.mxu0 0.0
    %238 = vmatpush2.msra.mxu0 0.0
    %239 = vmatprep.mubr.f32.mxu0 0.0
    %240 = vmatmul.mubr.f32.gmra.mxu0 %v87
    %v241 = vpop.f32.mrf.mxu0
    %v242 = vadd.f32 %v158, %v241
    %v243 = vpop.f32.mrf.mxu0
    %v244 = vadd.f32 %v162, %v243
    %245 = vmatprep.mubr.f32.mxu0 0.0
    %246 = vmatmul.mubr.f32.gmra.mxu0 %v88
    %v247 = vpop.f32.mrf.mxu0
    %v248 = vadd.f32 %v158, %v247
    %v249 = vpop.f32.mrf.mxu0
    %v250 = vadd.f32 %v162, %v249
    %251 = vdwg.mxu0
    %252 = vmatprep.subr.mxu0 %v152
    %253 = vmatpush1.msra.mxu0 %v151
    %254 = vmatprep.subr.mxu0 %v148
    %255 = vmatpush1.msra.mxu0 %v147
    %256 = vmatprep.subr.mxu0 %v144
    %257 = vmatpush1.msra.mxu0 %v143
    %258 = vmatprep.subr.mxu0 %v140
    %259 = vmatpush1.msra.mxu0 %v139
    %260 = vmatprep.subr.mxu0 %v136
    %261 = vmatpush1.msra.mxu0 %v135
    %262 = vmatprep.subr.mxu0 %v132
    %263 = vmatpush1.msra.mxu0 %v131
    %264 = vmatprep.subr.mxu0 %v128
    %265 = vmatpush1.msra.mxu0 %v127
    %266 = vmatprep.subr.mxu0 %v124
    %267 = vmatpush1.msra.mxu0 %v123
    %268 = vmatprep.subr.mxu0 %v120
    %269 = vmatpush1.msra.mxu0 %v119
    %270 = vmatprep.subr.mxu0 %v116
    %271 = vmatpush1.msra.mxu0 %v115
    %272 = vmatprep.subr.mxu0 %v112
    %273 = vmatpush1.msra.mxu0 %v111
    %274 = vmatprep.subr.mxu0 %v108
    %275 = vmatpush1.msra.mxu0 %v107
    %276 = vmatprep.subr.mxu0 %v104
    %277 = vmatpush1.msra.mxu0 %v103
    %278 = vmatprep.subr.mxu0 %v100
    %279 = vmatpush1.msra.mxu0 %v99
    %280 = vmatprep.subr.mxu0 %v96
    %281 = vmatpush1.msra.mxu0 %v95
    %282 = vmatprep.subr.mxu0 %v92
    %283 = vmatpush1.msra.mxu0 %v91
    %284 = vmatprep.subr.mxu0 0.0
    %285 = vmatpush2.msra.mxu0 0.0
    %286 = vmatprep.subr.mxu0 0.0
    %287 = vmatpush2.msra.mxu0 0.0
    %288 = vmatprep.subr.mxu0 0.0
    %289 = vmatpush2.msra.mxu0 0.0
    %290 = vmatprep.subr.mxu0 0.0
    %291 = vmatpush2.msra.mxu0 0.0
    %292 = vmatprep.subr.mxu0 0.0
    %293 = vmatpush2.msra.mxu0 0.0
    %294 = vmatprep.subr.mxu0 0.0
    %295 = vmatpush2.msra.mxu0 0.0
    %296 = vmatprep.subr.mxu0 0.0
    %297 = vmatpush2.msra.mxu0 0.0
    %298 = vmatprep.subr.mxu0 0.0
    %299 = vmatpush2.msra.mxu0 0.0
    %300 = vmatprep.subr.mxu0 0.0
    %301 = vmatpush2.msra.mxu0 0.0
    %302 = vmatprep.subr.mxu0 0.0
    %303 = vmatpush2.msra.mxu0 0.0
    %304 = vmatprep.subr.mxu0 0.0
    %305 = vmatpush2.msra.mxu0 0.0
    %306 = vmatprep.subr.mxu0 0.0
    %307 = vmatpush2.msra.mxu0 0.0
    %308 = vmatprep.subr.mxu0 0.0
    %309 = vmatpush2.msra.mxu0 0.0
    %310 = vmatprep.subr.mxu0 0.0
    %311 = vmatpush2.msra.mxu0 0.0
    %312 = vmatprep.subr.mxu0 0.0
    %313 = vmatpush2.msra.mxu0 0.0
    %314 = vmatprep.subr.mxu0 0.0
    %315 = vmatpush2.msra.mxu0 0.0
    %316 = vmatprep.mubr.f32.mxu0 0.0
    %317 = vmatmul.mubr.f32.gmra.mxu0 %v87
    %v318 = vpop.f32.mrf.mxu0
    %v319 = vadd.f32 %v166, %v318
    %v320 = vpop.f32.mrf.mxu0
    %v321 = vadd.f32 %v170, %v320
    %322 = vmatprep.mubr.f32.mxu0 0.0
    %323 = vmatmul.mubr.f32.gmra.mxu0 %v88
    %v324 = vpop.f32.mrf.mxu0
    %v325 = vadd.f32 %v166, %v324
    %v326 = vpop.f32.mrf.mxu0
    %v327 = vadd.f32 %v170, %v326
    %328 = vdwg.mxu0
    %v333 = vcombine.low %v242, %v244
    %v334 = vcombine.low %v319, %v321
    %v336 = vunpack.c.l.s4 1983009808
    %v337 = vunpack.c.0.s8 %v336
    %v338 = vlaneseq
    %v339 = vshrl.u32 %v338, 7
    %v340 = vsub.s32 %v337, %v339
    %v341 = vrot.slane %v333, %v340
    %v343 = vunpack.c.l.s4 1983009808
    %v344 = vunpack.c.0.s8 %v343
    %v345 = vlaneseq
    %v346 = vshrl.u32 %v345, 7
    %v347 = vsub.s32 %v344, %v346
    %v348 = vrot.slane %v334, %v347
    %v349 = vcombine.low %v341, %v348
    %351 = vst [vmem:[#allocation2] sm:$0xff] %v349
    %v352 = vcombine.high %v341, %v348
    %s354 = scalar_lea.vmem [#allocation2], 8
    %355 = vst [vmem:[%s354] sm:$0xff] %v352
    %v356 = vcombine.high %v242, %v244
    %v357 = vcombine.high %v319, %v321
    %v359 = vunpack.c.l.s4 1983009808
    %v360 = vunpack.c.0.s8 %v359
    %v361 = vlaneseq
    %v362 = vshrl.u32 %v361, 7
    %v363 = vsub.s32 %v360, %v362
    %v364 = vrot.slane %v356, %v363
    %v366 = vunpack.c.l.s4 1983009808
    %v367 = vunpack.c.0.s8 %v366
    %v368 = vlaneseq
    %v369 = vshrl.u32 %v368, 7
    %v370 = vsub.s32 %v367, %v369
    %v371 = vrot.slane %v357, %v370
    %v372 = vcombine.low %v364, %v371
    %s374 = scalar_lea.vmem [#allocation2], 16
    %375 = vst [vmem:[%s374] sm:$0xff] %v372
    %v376 = vcombine.high %v364, %v371
    %s378 = scalar_lea.vmem [#allocation2], 24
    %379 = vst [vmem:[%s378] sm:$0xff] %v376
    %v384 = vcombine.low %v248, %v250
    %v385 = vcombine.low %v325, %v327
    %v387 = vunpack.c.l.s4 1983009808
    %v388 = vunpack.c.0.s8 %v387
    %v389 = vlaneseq
    %v390 = vshrl.u32 %v389, 7
    %v391 = vsub.s32 %v388, %v390
    %v392 = vrot.slane %v384, %v391
    %v394 = vunpack.c.l.s4 1983009808
    %v395 = vunpack.c.0.s8 %v394
    %v396 = vlaneseq
    %v397 = vshrl.u32 %v396, 7
    %v398 = vsub.s32 %v395, %v397
    %v399 = vrot.slane %v385, %v398
    %v400 = vcombine.low %v392, %v399
    %s402 = scalar_lea.vmem [#allocation2], 32
    %403 = vst [vmem:[%s402] sm:$0xff] %v400
    %v404 = vcombine.high %v392, %v399
    %s406 = scalar_lea.vmem [#allocation2], 40
    %407 = vst [vmem:[%s406] sm:$0xff] %v404
    %v408 = vcombine.high %v248, %v250
    %v409 = vcombine.high %v325, %v327
    %v411 = vunpack.c.l.s4 1983009808
    %v412 = vunpack.c.0.s8 %v411
    %v413 = vlaneseq
    %v414 = vshrl.u32 %v413, 7
    %v415 = vsub.s32 %v412, %v414
    %v416 = vrot.slane %v408, %v415
    %v418 = vunpack.c.l.s4 1983009808
    %v419 = vunpack.c.0.s8 %v418
    %v420 = vlaneseq
    %v421 = vshrl.u32 %v420, 7
    %v422 = vsub.s32 %v419, %v421
    %v423 = vrot.slane %v409, %v422
    %v424 = vcombine.low %v416, %v423
    %s426 = scalar_lea.vmem [#allocation2], 48
    %427 = vst [vmem:[%s426] sm:$0xff] %v424
    %v428 = vcombine.high %v416, %v423
    %s430 = scalar_lea.vmem [#allocation2], 56
    %431 = vst [vmem:[%s430] sm:$0xff] %v428
    %v432 = vld [vmem:[%s5] sm:$0xf]
    %v433 = vld [vmem:[#allocation2] sm:$0xff]
    %v434 = vld [vmem:[#allocation8] sm:$0xff]
    %v435 = vld [vmem:[#allocation8 + $0x8] sm:$0xff]
    %v436 = vld [vmem:[#allocation8 + $0x10] sm:$0xff]
    %v437 = vld [vmem:[#allocation8 + $0x18] sm:$0xff]
    %v438 = vld [vmem:[#allocation8 + $0x20] sm:$0xff]
    %v439 = vld [vmem:[#allocation8 + $0x28] sm:$0xff]
    %v440 = vld [vmem:[#allocation8 + $0x30] sm:$0xff]
    %v441 = vld [vmem:[#allocation8 + $0x38] sm:$0xff]
    %v442 = vld [vmem:[#allocation8 + $0x40] sm:$0xff]
    %v443 = vld [vmem:[#allocation8 + $0x48] sm:$0xff]
    %v444 = vld [vmem:[#allocation8 + $0x50] sm:$0xff]
    %v445 = vld [vmem:[#allocation8 + $0x58] sm:$0xff]
    %v446 = vld [vmem:[#allocation8 + $0x60] sm:$0xff]
    %v447 = vld [vmem:[#allocation8 + $0x68] sm:$0xff]
    %v448 = vld [vmem:[#allocation8 + $0x70] sm:$0xff]
    %v449 = vld [vmem:[#allocation8 + $0x78] sm:$0xff]
    %v450 = vld [vmem:[#allocation8 + $0x80] sm:$0xff]
    %v451 = vld [vmem:[#allocation8 + $0x88] sm:$0xff]
    %v452 = vld [vmem:[#allocation8 + $0x90] sm:$0xff]
    %v453 = vld [vmem:[#allocation8 + $0x98] sm:$0xff]
    %v454 = vld [vmem:[#allocation8 + $0xa0] sm:$0xff]
    %v455 = vld [vmem:[#allocation8 + $0xa8] sm:$0xff]
    %v456 = vld [vmem:[#allocation8 + $0xb0] sm:$0xff]
    %v457 = vld [vmem:[#allocation8 + $0xb8] sm:$0xff]
    %v458 = vld [vmem:[#allocation8 + $0xc0] sm:$0xff]
    %v459 = vld [vmem:[#allocation8 + $0xc8] sm:$0xff]
    %v460 = vld [vmem:[#allocation8 + $0xd0] sm:$0xff]
    %v461 = vld [vmem:[#allocation8 + $0xd8] sm:$0xff]
    %v462 = vld [vmem:[#allocation8 + $0xe0] sm:$0xff]
    %v463 = vld [vmem:[#allocation8 + $0xe8] sm:$0xff]
    %v464 = vld [vmem:[#allocation8 + $0xf0] sm:$0xff]
    %v465 = vld [vmem:[#allocation8 + $0xf8] sm:$0xff]
    %v498 = vunpack.c.l.b16 %v434
    %v499 = vunpack.c.h.b16 %v434
    %v500 = vunpack.c.l.b16 %v435
    %v501 = vunpack.c.h.b16 %v435
    %v502 = vunpack.c.l.b16 %v436
    %v503 = vunpack.c.h.b16 %v436
    %v504 = vunpack.c.l.b16 %v437
    %v505 = vunpack.c.h.b16 %v437
    %v506 = vunpack.c.l.b16 %v438
    %v507 = vunpack.c.h.b16 %v438
    %v508 = vunpack.c.l.b16 %v439
    %v509 = vunpack.c.h.b16 %v439
    %v510 = vunpack.c.l.b16 %v440
    %v511 = vunpack.c.h.b16 %v440
    %v512 = vunpack.c.l.b16 %v441
    %v513 = vunpack.c.h.b16 %v441
    %v514 = vunpack.c.l.b16 %v442
    %v515 = vunpack.c.h.b16 %v442
    %v516 = vunpack.c.l.b16 %v443
    %v517 = vunpack.c.h.b16 %v443
    %v518 = vunpack.c.l.b16 %v444
    %v519 = vunpack.c.h.b16 %v444
    %v520 = vunpack.c.l.b16 %v445
    %v521 = vunpack.c.h.b16 %v445
    %v522 = vunpack.c.l.b16 %v446
    %v523 = vunpack.c.h.b16 %v446
    %v524 = vunpack.c.l.b16 %v447
    %v525 = vunpack.c.h.b16 %v447
    %v526 = vunpack.c.l.b16 %v448
    %v527 = vunpack.c.h.b16 %v448
    %v528 = vunpack.c.l.b16 %v449
    %v529 = vunpack.c.h.b16 %v449
    %v530 = vunpack.c.l.b16 %v450
    %v531 = vunpack.c.h.b16 %v450
    %v532 = vunpack.c.l.b16 %v451
    %v533 = vunpack.c.h.b16 %v451
    %v534 = vunpack.c.l.b16 %v452
    %v535 = vunpack.c.h.b16 %v452
    %v536 = vunpack.c.l.b16 %v453
    %v537 = vunpack.c.h.b16 %v453
    %v538 = vunpack.c.l.b16 %v454
    %v539 = vunpack.c.h.b16 %v454
    %v540 = vunpack.c.l.b16 %v455
    %v541 = vunpack.c.h.b16 %v455
    %v542 = vunpack.c.l.b16 %v456
    %v543 = vunpack.c.h.b16 %v456
    %v544 = vunpack.c.l.b16 %v457
    %v545 = vunpack.c.h.b16 %v457
    %v546 = vunpack.c.l.b16 %v458
    %v547 = vunpack.c.h.b16 %v458
    %v548 = vunpack.c.l.b16 %v459
    %v549 = vunpack.c.h.b16 %v459
    %v550 = vunpack.c.l.b16 %v460
    %v551 = vunpack.c.h.b16 %v460
    %v552 = vunpack.c.l.b16 %v461
    %v553 = vunpack.c.h.b16 %v461
    %v554 = vunpack.c.l.b16 %v462
    %v555 = vunpack.c.h.b16 %v462
    %v556 = vunpack.c.l.b16 %v463
    %v557 = vunpack.c.h.b16 %v463
    %v558 = vunpack.c.l.b16 %v464
    %v559 = vunpack.c.h.b16 %v464
    %v560 = vunpack.c.l.b16 %v465
    %v561 = vunpack.c.h.b16 %v465
    %v562 = vpack.c.b16 %v502, %v498
    %v563 = vpack.c.b16 %v503, %v499
    %v564 = vpack.c.b16 %v504, %v500
    %v565 = vpack.c.b16 %v505, %v501
    %v566 = vpack.c.b16 %v510, %v506
    %v567 = vpack.c.b16 %v511, %v507
    %v568 = vpack.c.b16 %v512, %v508
    %v569 = vpack.c.b16 %v513, %v509
    %v570 = vpack.c.b16 %v518, %v514
    %v571 = vpack.c.b16 %v519, %v515
    %v572 = vpack.c.b16 %v520, %v516
    %v573 = vpack.c.b16 %v521, %v517
    %v574 = vpack.c.b16 %v526, %v522
    %v575 = vpack.c.b16 %v527, %v523
    %v576 = vpack.c.b16 %v528, %v524
    %v577 = vpack.c.b16 %v529, %v525
    %v578 = vpack.c.b16 %v534, %v530
    %v579 = vpack.c.b16 %v535, %v531
    %v580 = vpack.c.b16 %v536, %v532
    %v581 = vpack.c.b16 %v537, %v533
    %v582 = vpack.c.b16 %v542, %v538
    %v583 = vpack.c.b16 %v543, %v539
    %v584 = vpack.c.b16 %v544, %v540
    %v585 = vpack.c.b16 %v545, %v541
    %v586 = vpack.c.b16 %v550, %v546
    %v587 = vpack.c.b16 %v551, %v547
    %v588 = vpack.c.b16 %v552, %v548
    %v589 = vpack.c.b16 %v553, %v549
    %v590 = vpack.c.b16 %v558, %v554
    %v591 = vpack.c.b16 %v559, %v555
    %v592 = vpack.c.b16 %v560, %v556
    %v593 = vpack.c.b16 %v561, %v557
    %626 = vmatprep.subr.bf16.mxu0 %v591
    %627 = vmatpush1.bf16.msra.mxu0 %v590
    %628 = vmatprep.subr.bf16.mxu0 %v587
    %629 = vmatpush1.bf16.msra.mxu0 %v586
    %630 = vmatprep.subr.bf16.mxu0 %v583
    %631 = vmatpush1.bf16.msra.mxu0 %v582
    %632 = vmatprep.subr.bf16.mxu0 %v579
    %633 = vmatpush1.bf16.msra.mxu0 %v578
    %634 = vmatprep.subr.bf16.mxu0 %v575
    %635 = vmatpush1.bf16.msra.mxu0 %v574
    %636 = vmatprep.subr.bf16.mxu0 %v571
    %637 = vmatpush1.bf16.msra.mxu0 %v570
    %638 = vmatprep.subr.bf16.mxu0 %v567
    %639 = vmatpush1.bf16.msra.mxu0 %v566
    %640 = vmatprep.subr.bf16.mxu0 %v563
    %641 = vmatpush1.bf16.msra.mxu0 %v562
    %642 = vmatprep.subr.bf16.mxu0 0
    %643 = vmatpush2.bf16.msra.mxu0 0
    %644 = vmatprep.subr.bf16.mxu0 0
    %645 = vmatpush2.bf16.msra.mxu0 0
    %646 = vmatprep.subr.bf16.mxu0 0
    %647 = vmatpush2.bf16.msra.mxu0 0
    %648 = vmatprep.subr.bf16.mxu0 0
    %649 = vmatpush2.bf16.msra.mxu0 0
    %650 = vmatprep.subr.bf16.mxu0 0
    %651 = vmatpush2.bf16.msra.mxu0 0
    %652 = vmatprep.subr.bf16.mxu0 0
    %653 = vmatpush2.bf16.msra.mxu0 0
    %654 = vmatprep.subr.bf16.mxu0 0
    %655 = vmatpush2.bf16.msra.mxu0 0
    %656 = vmatprep.subr.bf16.mxu0 0
    %657 = vmatpush2.bf16.msra.mxu0 0
    %658 = vmatprep.mubr.bf16.mxu0 0
    %659 = vmatmul.mubr.bf16.gmra.mxu0 0
    %v660 = vpop.f32.mrf.mxu0
    %v661 = vadd.f32 0.0, %v660
    %v662 = vpop.f32.mrf.mxu0
    %v663 = vadd.f32 0.0, %v662
    %v664 = vpop.f32.mrf.mxu0
    %v665 = vpop.f32.mrf.mxu0
    %666 = vdwg.mxu0
    %667 = vmatprep.subr.bf16.mxu0 %v593
    %668 = vmatpush1.bf16.msra.mxu0 %v592
    %669 = vmatprep.subr.bf16.mxu0 %v589
    %670 = vmatpush1.bf16.msra.mxu0 %v588
    %671 = vmatprep.subr.bf16.mxu0 %v585
    %672 = vmatpush1.bf16.msra.mxu0 %v584
    %673 = vmatprep.subr.bf16.mxu0 %v581
    %674 = vmatpush1.bf16.msra.mxu0 %v580
    %675 = vmatprep.subr.bf16.mxu0 %v577
    %676 = vmatpush1.bf16.msra.mxu0 %v576
    %677 = vmatprep.subr.bf16.mxu0 %v573
    %678 = vmatpush1.bf16.msra.mxu0 %v572
    %679 = vmatprep.subr.bf16.mxu0 %v569
    %680 = vmatpush1.bf16.msra.mxu0 %v568
    %681 = vmatprep.subr.bf16.mxu0 %v565
    %682 = vmatpush1.bf16.msra.mxu0 %v564
    %683 = vmatprep.subr.bf16.mxu0 0
    %684 = vmatpush2.bf16.msra.mxu0 0
    %685 = vmatprep.subr.bf16.mxu0 0
    %686 = vmatpush2.bf16.msra.mxu0 0
    %687 = vmatprep.subr.bf16.mxu0 0
    %688 = vmatpush2.bf16.msra.mxu0 0
    %689 = vmatprep.subr.bf16.mxu0 0
    %690 = vmatpush2.bf16.msra.mxu0 0
    %691 = vmatprep.subr.bf16.mxu0 0
    %692 = vmatpush2.bf16.msra.mxu0 0
    %693 = vmatprep.subr.bf16.mxu0 0
    %694 = vmatpush2.bf16.msra.mxu0 0
    %695 = vmatprep.subr.bf16.mxu0 0
    %696 = vmatpush2.bf16.msra.mxu0 0
    %697 = vmatprep.subr.bf16.mxu0 0
    %698 = vmatpush2.bf16.msra.mxu0 0
    %699 = vmatprep.mubr.bf16.mxu0 0
    %700 = vmatmul.mubr.bf16.gmra.mxu0 0
    %v701 = vpop.f32.mrf.mxu0
    %v702 = vadd.f32 0.0, %v701
    %v703 = vpop.f32.mrf.mxu0
    %v704 = vadd.f32 0.0, %v703
    %v705 = vpop.f32.mrf.mxu0
    %v706 = vpop.f32.mrf.mxu0
    %707 = vdwg.mxu0
    %v712 = vcombine.low %v661, %v663
    %v713 = vcombine.low %v702, %v704
    %v715 = vunpack.c.l.s4 1983009808
    %v716 = vunpack.c.0.s8 %v715
    %v717 = vlaneseq
    %v718 = vshrl.u32 %v717, 7
    %v719 = vsub.s32 %v716, %v718
    %v720 = vrot.slane %v712, %v719
    %v722 = vunpack.c.l.s4 1983009808
    %v723 = vunpack.c.0.s8 %v722
    %v724 = vlaneseq
    %v725 = vshrl.u32 %v724, 7
    %v726 = vsub.s32 %v723, %v725
    %v727 = vrot.slane %v713, %v726
    %v728 = vcombine.low %v720, %v727
    %v730 = vadd.f32 %v433, %v728
    %v731 = vxor.u32 %v730, 2147483648
    %v732 = vmul.f32 %v731, 1.442695
    %v733 = vpow.pop %v732
    %v734 = vadd.f32 %v733, 1.0
    %v735 = vrcp.pop %v734
    %v736 = vmul.f32 1.0, %v735
    %v738 = vrot.slane %v730, 2
    %v740 = vxor.u32 %v738, 2147483648
    %v741 = vmul.f32 %v740, 1.442695
    %v742 = vpow.pop %v741
    %v743 = vadd.f32 %v742, 1.0
    %v744 = vrcp.pop %v743
    %v745 = vmul.f32 1.0, %v744
    %v746 = vrot.slane %v730, 4
    %v748 = vtanh.pop %v746
    %v749 = vrot.slane %v730, 6
    %v751 = vxor.u32 %v749, 2147483648
    %v752 = vmul.f32 %v751, 1.442695
    %v753 = vpow.pop %v752
    %v754 = vadd.f32 %v753, 1.0
    %v755 = vrcp.pop %v754
    %v756 = vmul.f32 1.0, %v755
    %v757 = vmul.f32 %v745, 0.0
    %v758 = vmul.f32 %v736, %v748
    %v759 = vadd.f32 %v757, %v758
    %v760 = vtanh.pop %v759
    %v761 = vmul.f32 %v756, %v760
    %v762 = vpack.c.bf16 %v761, %v761
    %v763 = vpack.c.bf16 0.0, 0.0
    %v764 = vld [vmem:[#allocation9] sm:$0xff]
    %v765 = vld [vmem:[#allocation9 + $0x8] sm:$0xff]
    %v766 = vld [vmem:[#allocation9 + $0x10] sm:$0xff]
    %v767 = vld [vmem:[#allocation9 + $0x18] sm:$0xff]
    %v768 = vld [vmem:[#allocation9 + $0x20] sm:$0xff]
    %v769 = vld [vmem:[#allocation9 + $0x28] sm:$0xff]
    %v770 = vld [vmem:[#allocation9 + $0x30] sm:$0xff]
    %v771 = vld [vmem:[#allocation9 + $0x38] sm:$0xff]
    %v772 = vld [vmem:[#allocation9 + $0x40] sm:$0xff]
    %v773 = vld [vmem:[#allocation9 + $0x48] sm:$0xff]
    %v774 = vld [vmem:[#allocation9 + $0x50] sm:$0xff]
    %v775 = vld [vmem:[#allocation9 + $0x58] sm:$0xff]
    %v776 = vld [vmem:[#allocation9 + $0x60] sm:$0xff]
    %v777 = vld [vmem:[#allocation9 + $0x68] sm:$0xff]
    %v778 = vld [vmem:[#allocation9 + $0x70] sm:$0xff]
    %v779 = vld [vmem:[#allocation9 + $0x78] sm:$0xff]
    %v780 = vld [vmem:[#allocation9 + $0x80] sm:$0xff]
    %v781 = vld [vmem:[#allocation9 + $0x88] sm:$0xff]
    %v782 = vld [vmem:[#allocation9 + $0x90] sm:$0xff]
    %v783 = vld [vmem:[#allocation9 + $0x98] sm:$0xff]
    %v784 = vld [vmem:[#allocation9 + $0xa0] sm:$0xff]
    %v785 = vld [vmem:[#allocation9 + $0xa8] sm:$0xff]
    %v786 = vld [vmem:[#allocation9 + $0xb0] sm:$0xff]
    %v787 = vld [vmem:[#allocation9 + $0xb8] sm:$0xff]
    %v788 = vld [vmem:[#allocation9 + $0xc0] sm:$0xff]
    %v789 = vld [vmem:[#allocation9 + $0xc8] sm:$0xff]
    %v790 = vld [vmem:[#allocation9 + $0xd0] sm:$0xff]
    %v791 = vld [vmem:[#allocation9 + $0xd8] sm:$0xff]
    %v792 = vld [vmem:[#allocation9 + $0xe0] sm:$0xff]
    %v793 = vld [vmem:[#allocation9 + $0xe8] sm:$0xff]
    %v794 = vld [vmem:[#allocation9 + $0xf0] sm:$0xff]
    %v795 = vld [vmem:[#allocation9 + $0xf8] sm:$0xff]
    %v796 = vld [vmem:[#allocation9 + $0x100] sm:$0xff]
    %v797 = vld [vmem:[#allocation9 + $0x108] sm:$0xff]
    %v798 = vld [vmem:[#allocation9 + $0x110] sm:$0xff]
    %v799 = vld [vmem:[#allocation9 + $0x118] sm:$0xff]
    %v800 = vld [vmem:[#allocation9 + $0x120] sm:$0xff]
    %v801 = vld [vmem:[#allocation9 + $0x128] sm:$0xff]
    %v802 = vld [vmem:[#allocation9 + $0x130] sm:$0xff]
    %v803 = vld [vmem:[#allocation9 + $0x138] sm:$0xff]
    %v804 = vld [vmem:[#allocation9 + $0x140] sm:$0xff]
    %v805 = vld [vmem:[#allocation9 + $0x148] sm:$0xff]
    %v806 = vld [vmem:[#allocation9 + $0x150] sm:$0xff]
    %v807 = vld [vmem:[#allocation9 + $0x158] sm:$0xff]
    %v808 = vld [vmem:[#allocation9 + $0x160] sm:$0xff]
    %v809 = vld [vmem:[#allocation9 + $0x168] sm:$0xff]
    %v810 = vld [vmem:[#allocation9 + $0x170] sm:$0xff]
    %v811 = vld [vmem:[#allocation9 + $0x178] sm:$0xff]
    %v812 = vld [vmem:[#allocation9 + $0x180] sm:$0xff]
    %v813 = vld [vmem:[#allocation9 + $0x188] sm:$0xff]
    %v814 = vld [vmem:[#allocation9 + $0x190] sm:$0xff]
    %v815 = vld [vmem:[#allocation9 + $0x198] sm:$0xff]
    %v816 = vld [vmem:[#allocation9 + $0x1a0] sm:$0xff]
    %v817 = vld [vmem:[#allocation9 + $0x1a8] sm:$0xff]
    %v818 = vld [vmem:[#allocation9 + $0x1b0] sm:$0xff]
    %v819 = vld [vmem:[#allocation9 + $0x1b8] sm:$0xff]
    %v820 = vld [vmem:[#allocation9 + $0x1c0] sm:$0xff]
    %v821 = vld [vmem:[#allocation9 + $0x1c8] sm:$0xff]
    %v822 = vld [vmem:[#allocation9 + $0x1d0] sm:$0xff]
    %v823 = vld [vmem:[#allocation9 + $0x1d8] sm:$0xff]
    %v824 = vld [vmem:[#allocation9 + $0x1e0] sm:$0xff]
    %v825 = vld [vmem:[#allocation9 + $0x1e8] sm:$0xff]
    %v826 = vld [vmem:[#allocation9 + $0x1f0] sm:$0xff]
    %v827 = vld [vmem:[#allocation9 + $0x1f8] sm:$0xff]
    %v829 = vlaneseq
    %v830 = vshrl.u32 %v829, 7
    %v831 = vsub.s32 0, %v830
    %v832 = vrot.slane %v432, %v831
    %v833 = vlaneseq
    %v834 = vshrl.u32 %v833, 7
    %v835 = vsub.s32 1, %v834
    %v836 = vrot.slane %v432, %v835
    %v837 = vlaneseq
    %v838 = vshrl.u32 %v837, 7
    %v839 = vsub.s32 2, %v838
    %v840 = vrot.slane %v432, %v839
    %v841 = vlaneseq
    %v842 = vshrl.u32 %v841, 7
    %v843 = vsub.s32 3, %v842
    %v844 = vrot.slane %v432, %v843
    %v913 = vunpack.c.l.b16 %v764
    %v914 = vunpack.c.h.b16 %v764
    %v915 = vunpack.c.l.b16 %v765
    %v916 = vunpack.c.h.b16 %v765
    %v917 = vunpack.c.l.b16 %v766
    %v918 = vunpack.c.h.b16 %v766
    %v919 = vunpack.c.l.b16 %v767
    %v920 = vunpack.c.h.b16 %v767
    %v921 = vunpack.c.l.b16 %v768
    %v922 = vunpack.c.h.b16 %v768
    %v923 = vunpack.c.l.b16 %v769
    %v924 = vunpack.c.h.b16 %v769
    %v925 = vunpack.c.l.b16 %v770
    %v926 = vunpack.c.h.b16 %v770
    %v927 = vunpack.c.l.b16 %v771
    %v928 = vunpack.c.h.b16 %v771
    %v929 = vunpack.c.l.b16 %v772
    %v930 = vunpack.c.h.b16 %v772
    %v931 = vunpack.c.l.b16 %v773
    %v932 = vunpack.c.h.b16 %v773
    %v933 = vunpack.c.l.b16 %v774
    %v934 = vunpack.c.h.b16 %v774
    %v935 = vunpack.c.l.b16 %v775
    %v936 = vunpack.c.h.b16 %v775
    %v937 = vunpack.c.l.b16 %v776
    %v938 = vunpack.c.h.b16 %v776
    %v939 = vunpack.c.l.b16 %v777
    %v940 = vunpack.c.h.b16 %v777
    %v941 = vunpack.c.l.b16 %v778
    %v942 = vunpack.c.h.b16 %v778
    %v943 = vunpack.c.l.b16 %v779
    %v944 = vunpack.c.h.b16 %v779
    %v945 = vunpack.c.l.b16 %v780
    %v946 = vunpack.c.h.b16 %v780
    %v947 = vunpack.c.l.b16 %v781
    %v948 = vunpack.c.h.b16 %v781
    %v949 = vunpack.c.l.b16 %v782
    %v950 = vunpack.c.h.b16 %v782
    %v951 = vunpack.c.l.b16 %v783
    %v952 = vunpack.c.h.b16 %v783
    %v953 = vunpack.c.l.b16 %v784
    %v954 = vunpack.c.h.b16 %v784
    %v955 = vunpack.c.l.b16 %v785
    %v956 = vunpack.c.h.b16 %v785
    %v957 = vunpack.c.l.b16 %v786
    %v958 = vunpack.c.h.b16 %v786
    %v959 = vunpack.c.l.b16 %v787
    %v960 = vunpack.c.h.b16 %v787
    %v961 = vunpack.c.l.b16 %v788
    %v962 = vunpack.c.h.b16 %v788
    %v963 = vunpack.c.l.b16 %v789
    %v964 = vunpack.c.h.b16 %v789
    %v965 = vunpack.c.l.b16 %v790
    %v966 = vunpack.c.h.b16 %v790
    %v967 = vunpack.c.l.b16 %v791
    %v968 = vunpack.c.h.b16 %v791
    %v969 = vunpack.c.l.b16 %v792
    %v970 = vunpack.c.h.b16 %v792
    %v971 = vunpack.c.l.b16 %v793
    %v972 = vunpack.c.h.b16 %v793
    %v973 = vunpack.c.l.b16 %v794
    %v974 = vunpack.c.h.b16 %v794
    %v975 = vunpack.c.l.b16 %v795
    %v976 = vunpack.c.h.b16 %v795
    %v977 = vunpack.c.l.b16 %v796
    %v978 = vunpack.c.h.b16 %v796
    %v979 = vunpack.c.l.b16 %v797
    %v980 = vunpack.c.h.b16 %v797
    %v981 = vunpack.c.l.b16 %v798
    %v982 = vunpack.c.h.b16 %v798
    %v983 = vunpack.c.l.b16 %v799
    %v984 = vunpack.c.h.b16 %v799
    %v985 = vunpack.c.l.b16 %v800
    %v986 = vunpack.c.h.b16 %v800
    %v987 = vunpack.c.l.b16 %v801
    %v988 = vunpack.c.h.b16 %v801
    %v989 = vunpack.c.l.b16 %v802
    %v990 = vunpack.c.h.b16 %v802
    %v991 = vunpack.c.l.b16 %v803
    %v992 = vunpack.c.h.b16 %v803
    %v993 = vunpack.c.l.b16 %v804
    %v994 = vunpack.c.h.b16 %v804
    %v995 = vunpack.c.l.b16 %v805
    %v996 = vunpack.c.h.b16 %v805
    %v997 = vunpack.c.l.b16 %v806
    %v998 = vunpack.c.h.b16 %v806
    %v999 = vunpack.c.l.b16 %v807
    %v1000 = vunpack.c.h.b16 %v807
    %v1001 = vunpack.c.l.b16 %v808
    %v1002 = vunpack.c.h.b16 %v808
    %v1003 = vunpack.c.l.b16 %v809
    %v1004 = vunpack.c.h.b16 %v809
    %v1005 = vunpack.c.l.b16 %v810
    %v1006 = vunpack.c.h.b16 %v810
    %v1007 = vunpack.c.l.b16 %v811
    %v1008 = vunpack.c.h.b16 %v811
    %v1009 = vunpack.c.l.b16 %v812
    %v1010 = vunpack.c.h.b16 %v812
    %v1011 = vunpack.c.l.b16 %v813
    %v1012 = vunpack.c.h.b16 %v813
    %v1013 = vunpack.c.l.b16 %v814
    %v1014 = vunpack.c.h.b16 %v814
    %v1015 = vunpack.c.l.b16 %v815
    %v1016 = vunpack.c.h.b16 %v815
    %v1017 = vunpack.c.l.b16 %v816
    %v1018 = vunpack.c.h.b16 %v816
    %v1019 = vunpack.c.l.b16 %v817
    %v1020 = vunpack.c.h.b16 %v817
    %v1021 = vunpack.c.l.b16 %v818
    %v1022 = vunpack.c.h.b16 %v818
    %v1023 = vunpack.c.l.b16 %v819
    %v1024 = vunpack.c.h.b16 %v819
    %v1025 = vunpack.c.l.b16 %v820
    %v1026 = vunpack.c.h.b16 %v820
    %v1027 = vunpack.c.l.b16 %v821
    %v1028 = vunpack.c.h.b16 %v821
    %v1029 = vunpack.c.l.b16 %v822
    %v1030 = vunpack.c.h.b16 %v822
    %v1031 = vunpack.c.l.b16 %v823
    %v1032 = vunpack.c.h.b16 %v823
    %v1033 = vunpack.c.l.b16 %v824
    %v1034 = vunpack.c.h.b16 %v824
    %v1035 = vunpack.c.l.b16 %v825
    %v1036 = vunpack.c.h.b16 %v825
    %v1037 = vunpack.c.l.b16 %v826
    %v1038 = vunpack.c.h.b16 %v826
    %v1039 = vunpack.c.l.b16 %v827
    %v1040 = vunpack.c.h.b16 %v827
    %v1041 = vpack.c.b16 %v917, %v913
    %v1042 = vpack.c.b16 %v918, %v914
    %v1043 = vpack.c.b16 %v919, %v915
    %v1044 = vpack.c.b16 %v920, %v916
    %v1045 = vpack.c.b16 %v925, %v921
    %v1046 = vpack.c.b16 %v926, %v922
    %v1047 = vpack.c.b16 %v927, %v923
    %v1048 = vpack.c.b16 %v928, %v924
    %v1049 = vpack.c.b16 %v933, %v929
    %v1050 = vpack.c.b16 %v934, %v930
    %v1051 = vpack.c.b16 %v935, %v931
    %v1052 = vpack.c.b16 %v936, %v932
    %v1053 = vpack.c.b16 %v941, %v937
    %v1054 = vpack.c.b16 %v942, %v938
    %v1055 = vpack.c.b16 %v943, %v939
    %v1056 = vpack.c.b16 %v944, %v940
    %v1057 = vpack.c.b16 %v949, %v945
    %v1058 = vpack.c.b16 %v950, %v946
    %v1059 = vpack.c.b16 %v951, %v947
    %v1060 = vpack.c.b16 %v952, %v948
    %v1061 = vpack.c.b16 %v957, %v953
    %v1062 = vpack.c.b16 %v958, %v954
    %v1063 = vpack.c.b16 %v959, %v955
    %v1064 = vpack.c.b16 %v960, %v956
    %v1065 = vpack.c.b16 %v965, %v961
    %v1066 = vpack.c.b16 %v966, %v962
    %v1067 = vpack.c.b16 %v967, %v963
    %v1068 = vpack.c.b16 %v968, %v964
    %v1069 = vpack.c.b16 %v973, %v969
    %v1070 = vpack.c.b16 %v974, %v970
    %v1071 = vpack.c.b16 %v975, %v971
    %v1072 = vpack.c.b16 %v976, %v972
    %v1073 = vpack.c.b16 %v981, %v977
    %v1074 = vpack.c.b16 %v982, %v978
    %v1075 = vpack.c.b16 %v983, %v979
    %v1076 = vpack.c.b16 %v984, %v980
    %v1077 = vpack.c.b16 %v989, %v985
    %v1078 = vpack.c.b16 %v990, %v986
    %v1079 = vpack.c.b16 %v991, %v987
    %v1080 = vpack.c.b16 %v992, %v988
    %v1081 = vpack.c.b16 %v997, %v993
    %v1082 = vpack.c.b16 %v998, %v994
    %v1083 = vpack.c.b16 %v999, %v995
    %v1084 = vpack.c.b16 %v1000, %v996
    %v1085 = vpack.c.b16 %v1005, %v1001
    %v1086 = vpack.c.b16 %v1006, %v1002
    %v1087 = vpack.c.b16 %v1007, %v1003
    %v1088 = vpack.c.b16 %v1008, %v1004
    %v1089 = vpack.c.b16 %v1013, %v1009
    %v1090 = vpack.c.b16 %v1014, %v1010
    %v1091 = vpack.c.b16 %v1015, %v1011
    %v1092 = vpack.c.b16 %v1016, %v1012
    %v1093 = vpack.c.b16 %v1021, %v1017
    %v1094 = vpack.c.b16 %v1022, %v1018
    %v1095 = vpack.c.b16 %v1023, %v1019
    %v1096 = vpack.c.b16 %v1024, %v1020
    %v1097 = vpack.c.b16 %v1029, %v1025
    %v1098 = vpack.c.b16 %v1030, %v1026
    %v1099 = vpack.c.b16 %v1031, %v1027
    %v1100 = vpack.c.b16 %v1032, %v1028
    %v1101 = vpack.c.b16 %v1037, %v1033
    %v1102 = vpack.c.b16 %v1038, %v1034
    %v1103 = vpack.c.b16 %v1039, %v1035
    %v1104 = vpack.c.b16 %v1040, %v1036
    %1169 = vmatprep.subr.bf16.mxu0 %v1070
    %1170 = vmatpush1.bf16.msra.mxu0 %v1069
    %1171 = vmatprep.subr.bf16.mxu0 %v1066
    %1172 = vmatpush1.bf16.msra.mxu0 %v1065
    %1173 = vmatprep.subr.bf16.mxu0 %v1062
    %1174 = vmatpush1.bf16.msra.mxu0 %v1061
    %1175 = vmatprep.subr.bf16.mxu0 %v1058
    %1176 = vmatpush1.bf16.msra.mxu0 %v1057
    %1177 = vmatprep.subr.bf16.mxu0 %v1054
    %1178 = vmatpush1.bf16.msra.mxu0 %v1053
    %1179 = vmatprep.subr.bf16.mxu0 %v1050
    %1180 = vmatpush1.bf16.msra.mxu0 %v1049
    %1181 = vmatprep.subr.bf16.mxu0 %v1046
    %1182 = vmatpush1.bf16.msra.mxu0 %v1045
    %1183 = vmatprep.subr.bf16.mxu0 %v1042
    %1184 = vmatpush1.bf16.msra.mxu0 %v1041
    %1185 = vmatprep.subr.bf16.mxu0 %v1102
    %1186 = vmatpush2.bf16.msra.mxu0 %v1101
    %1187 = vmatprep.subr.bf16.mxu0 %v1098
    %1188 = vmatpush2.bf16.msra.mxu0 %v1097
    %1189 = vmatprep.subr.bf16.mxu0 %v1094
    %1190 = vmatpush2.bf16.msra.mxu0 %v1093
    %1191 = vmatprep.subr.bf16.mxu0 %v1090
    %1192 = vmatpush2.bf16.msra.mxu0 %v1089
    %1193 = vmatprep.subr.bf16.mxu0 %v1086
    %1194 = vmatpush2.bf16.msra.mxu0 %v1085
    %1195 = vmatprep.subr.bf16.mxu0 %v1082
    %1196 = vmatpush2.bf16.msra.mxu0 %v1081
    %1197 = vmatprep.subr.bf16.mxu0 %v1078
    %1198 = vmatpush2.bf16.msra.mxu0 %v1077
    %1199 = vmatprep.subr.bf16.mxu0 %v1074
    %1200 = vmatpush2.bf16.msra.mxu0 %v1073
    %1201 = vmatprep.mubr.bf16.mxu0 %v763
    %1202 = vmatmul.mubr.bf16.gmra.mxu0 %v762
    %v1203 = vpop.f32.mrf.mxu0
    %v1204 = vadd.f32 %v832, %v1203
    %v1205 = vpop.f32.mrf.mxu0
    %v1206 = vadd.f32 %v836, %v1205
    %v1207 = vpop.f32.mrf.mxu0
    %v1208 = vpop.f32.mrf.mxu0
    %1209 = vdwg.mxu0
    %1210 = vmatprep.subr.bf16.mxu0 %v1072
    %1211 = vmatpush1.bf16.msra.mxu0 %v1071
    %1212 = vmatprep.subr.bf16.mxu0 %v1068
    %1213 = vmatpush1.bf16.msra.mxu0 %v1067
    %1214 = vmatprep.subr.bf16.mxu0 %v1064
    %1215 = vmatpush1.bf16.msra.mxu0 %v1063
    %1216 = vmatprep.subr.bf16.mxu0 %v1060
    %1217 = vmatpush1.bf16.msra.mxu0 %v1059
    %1218 = vmatprep.subr.bf16.mxu0 %v1056
    %1219 = vmatpush1.bf16.msra.mxu0 %v1055
    %1220 = vmatprep.subr.bf16.mxu0 %v1052
    %1221 = vmatpush1.bf16.msra.mxu0 %v1051
    %1222 = vmatprep.subr.bf16.mxu0 %v1048
    %1223 = vmatpush1.bf16.msra.mxu0 %v1047
    %1224 = vmatprep.subr.bf16.mxu0 %v1044
    %1225 = vmatpush1.bf16.msra.mxu0 %v1043
    %1226 = vmatprep.subr.bf16.mxu0 %v1104
    %1227 = vmatpush2.bf16.msra.mxu0 %v1103
    %1228 = vmatprep.subr.bf16.mxu0 %v1100
    %1229 = vmatpush2.bf16.msra.mxu0 %v1099
    %1230 = vmatprep.subr.bf16.mxu0 %v1096
    %1231 = vmatpush2.bf16.msra.mxu0 %v1095
    %1232 = vmatprep.subr.bf16.mxu0 %v1092
    %1233 = vmatpush2.bf16.msra.mxu0 %v1091
    %1234 = vmatprep.subr.bf16.mxu0 %v1088
    %1235 = vmatpush2.bf16.msra.mxu0 %v1087
    %1236 = vmatprep.subr.bf16.mxu0 %v1084
    %1237 = vmatpush2.bf16.msra.mxu0 %v1083
    %1238 = vmatprep.subr.bf16.mxu0 %v1080
    %1239 = vmatpush2.bf16.msra.mxu0 %v1079
    %1240 = vmatprep.subr.bf16.mxu0 %v1076
    %1241 = vmatpush2.bf16.msra.mxu0 %v1075
    %1242 = vmatprep.mubr.bf16.mxu0 %v763
    %1243 = vmatmul.mubr.bf16.gmra.mxu0 %v762
    %v1244 = vpop.f32.mrf.mxu0
    %v1245 = vadd.f32 %v840, %v1244
    %v1246 = vpop.f32.mrf.mxu0
    %v1247 = vadd.f32 %v844, %v1246
    %v1248 = vpop.f32.mrf.mxu0
    %v1249 = vpop.f32.mrf.mxu0
    %1250 = vdwg.mxu0
    %v1251 = vxor.u32 %v1204, 2147483648
    %v1252 = vmul.f32 %v1251, 1.442695
    %v1253 = vpow.pop %v1252
    %v1254 = vadd.f32 %v1253, 1.0
    %v1255 = vrcp.pop %v1254
    %v1256 = vmul.f32 1.0, %v1255
    %v1257 = vxor.u32 %v1206, 2147483648
    %v1258 = vmul.f32 %v1257, 1.442695
    %v1259 = vpow.pop %v1258
    %v1260 = vadd.f32 %v1259, 1.0
    %v1261 = vrcp.pop %v1260
    %v1262 = vmul.f32 1.0, %v1261
    %v1263 = vtanh.pop %v1245
    %v1264 = vxor.u32 %v1247, 2147483648
    %v1265 = vmul.f32 %v1264, 1.442695
    %v1266 = vpow.pop %v1265
    %v1267 = vadd.f32 %v1266, 1.0
    %v1268 = vrcp.pop %v1267
    %v1269 = vmul.f32 1.0, %v1268
    %v1270 = vmul.f32 %v1262, 0.0
    %v1271 = vmul.f32 %v1256, %v1263
    %v1272 = vadd.f32 %v1270, %v1271
    %v1273 = vtanh.pop %v1272
    %v1274 = vmul.f32 %v1269, %v1273
    %v1275 = vld [vmem:[%s354] sm:$0xff]
    %1276 = vmatprep.subr.bf16.mxu0 %v591
    %1277 = vmatpush1.bf16.msra.mxu0 %v590
    %1278 = vmatprep.subr.bf16.mxu0 %v587
    %1279 = vmatpush1.bf16.msra.mxu0 %v586
    %1280 = vmatprep.subr.bf16.mxu0 %v583
    %1281 = vmatpush1.bf16.msra.mxu0 %v582
    %1282 = vmatprep.subr.bf16.mxu0 %v579
    %1283 = vmatpush1.bf16.msra.mxu0 %v578
    %1284 = vmatprep.subr.bf16.mxu0 %v575
    %1285 = vmatpush1.bf16.msra.mxu0 %v574
    %1286 = vmatprep.subr.bf16.mxu0 %v571
    %1287 = vmatpush1.bf16.msra.mxu0 %v570
    %1288 = vmatprep.subr.bf16.mxu0 %v567
    %1289 = vmatpush1.bf16.msra.mxu0 %v566
    %1290 = vmatprep.subr.bf16.mxu0 %v563
    %1291 = vmatpush1.bf16.msra.mxu0 %v562
    %1292 = vmatprep.subr.bf16.mxu0 0
    %1293 = vmatpush2.bf16.msra.mxu0 0
    %1294 = vmatprep.subr.bf16.mxu0 0
    %1295 = vmatpush2.bf16.msra.mxu0 0
    %1296 = vmatprep.subr.bf16.mxu0 0
    %1297 = vmatpush2.bf16.msra.mxu0 0
    %1298 = vmatprep.subr.bf16.mxu0 0
    %1299 = vmatpush2.bf16.msra.mxu0 0
    %1300 = vmatprep.subr.bf16.mxu0 0
    %1301 = vmatpush2.bf16.msra.mxu0 0
    %1302 = vmatprep.subr.bf16.mxu0 0
    %1303 = vmatpush2.bf16.msra.mxu0 0
    %1304 = vmatprep.subr.bf16.mxu0 0
    %1305 = vmatpush2.bf16.msra.mxu0 0
    %1306 = vmatprep.subr.bf16.mxu0 0
    %1307 = vmatpush2.bf16.msra.mxu0 0
    %1308 = vmatprep.mubr.bf16.mxu0 0
    %1309 = vmatmul.mubr.bf16.gmra.mxu0 %v762
    %v1310 = vpop.f32.mrf.mxu0
    %v1311 = vadd.f32 0.0, %v1310
    %v1312 = vpop.f32.mrf.mxu0
    %v1313 = vadd.f32 0.0, %v1312
    %v1314 = vpop.f32.mrf.mxu0
    %v1315 = vpop.f32.mrf.mxu0
    %1316 = vdwg.mxu0
    %1317 = vmatprep.subr.bf16.mxu0 %v593
    %1318 = vmatpush1.bf16.msra.mxu0 %v592
    %1319 = vmatprep.subr.bf16.mxu0 %v589
    %1320 = vmatpush1.bf16.msra.mxu0 %v588
    %1321 = vmatprep.subr.bf16.mxu0 %v585
    %1322 = vmatpush1.bf16.msra.mxu0 %v584
    %1323 = vmatprep.subr.bf16.mxu0 %v581
    %1324 = vmatpush1.bf16.msra.mxu0 %v580
    %1325 = vmatprep.subr.bf16.mxu0 %v577
    %1326 = vmatpush1.bf16.msra.mxu0 %v576
    %1327 = vmatprep.subr.bf16.mxu0 %v573
    %1328 = vmatpush1.bf16.msra.mxu0 %v572
    %1329 = vmatprep.subr.bf16.mxu0 %v569
    %1330 = vmatpush1.bf16.msra.mxu0 %v568
    %1331 = vmatprep.subr.bf16.mxu0 %v565
    %1332 = vmatpush1.bf16.msra.mxu0 %v564
    %1333 = vmatprep.subr.bf16.mxu0 0
    %1334 = vmatpush2.bf16.msra.mxu0 0
    %1335 = vmatprep.subr.bf16.mxu0 0
    %1336 = vmatpush2.bf16.msra.mxu0 0
    %1337 = vmatprep.subr.bf16.mxu0 0
    %1338 = vmatpush2.bf16.msra.mxu0 0
    %1339 = vmatprep.subr.bf16.mxu0 0
    %1340 = vmatpush2.bf16.msra.mxu0 0
    %1341 = vmatprep.subr.bf16.mxu0 0
    %1342 = vmatpush2.bf16.msra.mxu0 0
    %1343 = vmatprep.subr.bf16.mxu0 0
    %1344 = vmatpush2.bf16.msra.mxu0 0
    %1345 = vmatprep.subr.bf16.mxu0 0
    %1346 = vmatpush2.bf16.msra.mxu0 0
    %1347 = vmatprep.subr.bf16.mxu0 0
    %1348 = vmatpush2.bf16.msra.mxu0 0
    %1349 = vmatprep.mubr.bf16.mxu0 0
    %1350 = vmatmul.mubr.bf16.gmra.mxu0 %v762
    %v1351 = vpop.f32.mrf.mxu0
    %v1352 = vadd.f32 0.0, %v1351
    %v1353 = vpop.f32.mrf.mxu0
    %v1354 = vadd.f32 0.0, %v1353
    %v1355 = vpop.f32.mrf.mxu0
    %v1356 = vpop.f32.mrf.mxu0
    %1357 = vdwg.mxu0
    %v1362 = vcombine.low %v1311, %v1313
    %v1363 = vcombine.low %v1352, %v1354
    %v1365 = vunpack.c.l.s4 1983009808
    %v1366 = vunpack.c.0.s8 %v1365
    %v1367 = vlaneseq
    %v1368 = vshrl.u32 %v1367, 7
    %v1369 = vsub.s32 %v1366, %v1368
    %v1370 = vrot.slane %v1362, %v1369
    %v1372 = vunpack.c.l.s4 1983009808
    %v1373 = vunpack.c.0.s8 %v1372
    %v1374 = vlaneseq
    %v1375 = vshrl.u32 %v1374, 7
    %v1376 = vsub.s32 %v1373, %v1375
    %v1377 = vrot.slane %v1363, %v1376
    %v1378 = vcombine.low %v1370, %v1377
    %v1380 = vadd.f32 %v1275, %v1378
    %v1381 = vxor.u32 %v1380, 2147483648
    %v1382 = vmul.f32 %v1381, 1.442695
    %v1383 = vpow.pop %v1382
    %v1384 = vadd.f32 %v1383, 1.0
    %v1385 = vrcp.pop %v1384
    %v1386 = vmul.f32 1.0, %v1385
    %v1388 = vrot.slane %v1380, 2
    %v1390 = vxor.u32 %v1388, 2147483648
    %v1391 = vmul.f32 %v1390, 1.442695
    %v1392 = vpow.pop %v1391
    %v1393 = vadd.f32 %v1392, 1.0
    %v1394 = vrcp.pop %v1393
    %v1395 = vmul.f32 1.0, %v1394
    %v1396 = vrot.slane %v1380, 4
    %v1398 = vtanh.pop %v1396
    %v1399 = vrot.slane %v1380, 6
    %v1401 = vxor.u32 %v1399, 2147483648
    %v1402 = vmul.f32 %v1401, 1.442695
    %v1403 = vpow.pop %v1402
    %v1404 = vadd.f32 %v1403, 1.0
    %v1405 = vrcp.pop %v1404
    %v1406 = vmul.f32 1.0, %v1405
    %v1407 = vmul.f32 %v1395, %v759
    %v1408 = vmul.f32 %v1386, %v1398
    %v1409 = vadd.f32 %v1407, %v1408
    %v1410 = vtanh.pop %v1409
    %v1411 = vmul.f32 %v1406, %v1410
    %v1412 = vpack.c.bf16 %v1411, %v1411
    %v1413 = vpack.c.bf16 %v1274, %v1274
    %1414 = vmatprep.subr.bf16.mxu0 %v1070
    %1415 = vmatpush1.bf16.msra.mxu0 %v1069
    %1416 = vmatprep.subr.bf16.mxu0 %v1066
    %1417 = vmatpush1.bf16.msra.mxu0 %v1065
    %1418 = vmatprep.subr.bf16.mxu0 %v1062
    %1419 = vmatpush1.bf16.msra.mxu0 %v1061
    %1420 = vmatprep.subr.bf16.mxu0 %v1058
    %1421 = vmatpush1.bf16.msra.mxu0 %v1057
    %1422 = vmatprep.subr.bf16.mxu0 %v1054
    %1423 = vmatpush1.bf16.msra.mxu0 %v1053
    %1424 = vmatprep.subr.bf16.mxu0 %v1050
    %1425 = vmatpush1.bf16.msra.mxu0 %v1049
    %1426 = vmatprep.subr.bf16.mxu0 %v1046
    %1427 = vmatpush1.bf16.msra.mxu0 %v1045
    %1428 = vmatprep.subr.bf16.mxu0 %v1042
    %1429 = vmatpush1.bf16.msra.mxu0 %v1041
    %1430 = vmatprep.subr.bf16.mxu0 %v1102
    %1431 = vmatpush2.bf16.msra.mxu0 %v1101
    %1432 = vmatprep.subr.bf16.mxu0 %v1098
    %1433 = vmatpush2.bf16.msra.mxu0 %v1097
    %1434 = vmatprep.subr.bf16.mxu0 %v1094
    %1435 = vmatpush2.bf16.msra.mxu0 %v1093
    %1436 = vmatprep.subr.bf16.mxu0 %v1090
    %1437 = vmatpush2.bf16.msra.mxu0 %v1089
    %1438 = vmatprep.subr.bf16.mxu0 %v1086
    %1439 = vmatpush2.bf16.msra.mxu0 %v1085
    %1440 = vmatprep.subr.bf16.mxu0 %v1082
    %1441 = vmatpush2.bf16.msra.mxu0 %v1081
    %1442 = vmatprep.subr.bf16.mxu0 %v1078
    %1443 = vmatpush2.bf16.msra.mxu0 %v1077
    %1444 = vmatprep.subr.bf16.mxu0 %v1074
    %1445 = vmatpush2.bf16.msra.mxu0 %v1073
    %1446 = vmatprep.mubr.bf16.mxu0 %v1413
    %1447 = vmatmul.mubr.bf16.gmra.mxu0 %v1412
    %v1448 = vpop.f32.mrf.mxu0
    %v1449 = vadd.f32 %v832, %v1448
    %v1450 = vpop.f32.mrf.mxu0
    %v1451 = vadd.f32 %v836, %v1450
    %v1452 = vpop.f32.mrf.mxu0
    %v1453 = vpop.f32.mrf.mxu0
    %1454 = vdwg.mxu0
    %1455 = vmatprep.subr.bf16.mxu0 %v1072
    %1456 = vmatpush1.bf16.msra.mxu0 %v1071
    %1457 = vmatprep.subr.bf16.mxu0 %v1068
    %1458 = vmatpush1.bf16.msra.mxu0 %v1067
    %1459 = vmatprep.subr.bf16.mxu0 %v1064
    %1460 = vmatpush1.bf16.msra.mxu0 %v1063
    %1461 = vmatprep.subr.bf16.mxu0 %v1060
    %1462 = vmatpush1.bf16.msra.mxu0 %v1059
    %1463 = vmatprep.subr.bf16.mxu0 %v1056
    %1464 = vmatpush1.bf16.msra.mxu0 %v1055
    %1465 = vmatprep.subr.bf16.mxu0 %v1052
    %1466 = vmatpush1.bf16.msra.mxu0 %v1051
    %1467 = vmatprep.subr.bf16.mxu0 %v1048
    %1468 = vmatpush1.bf16.msra.mxu0 %v1047
    %1469 = vmatprep.subr.bf16.mxu0 %v1044
    %1470 = vmatpush1.bf16.msra.mxu0 %v1043
    %1471 = vmatprep.subr.bf16.mxu0 %v1104
    %1472 = vmatpush2.bf16.msra.mxu0 %v1103
    %1473 = vmatprep.subr.bf16.mxu0 %v1100
    %1474 = vmatpush2.bf16.msra.mxu0 %v1099
    %1475 = vmatprep.subr.bf16.mxu0 %v1096
    %1476 = vmatpush2.bf16.msra.mxu0 %v1095
    %1477 = vmatprep.subr.bf16.mxu0 %v1092
    %1478 = vmatpush2.bf16.msra.mxu0 %v1091
    %1479 = vmatprep.subr.bf16.mxu0 %v1088
    %1480 = vmatpush2.bf16.msra.mxu0 %v1087
    %1481 = vmatprep.subr.bf16.mxu0 %v1084
    %1482 = vmatpush2.bf16.msra.mxu0 %v1083
    %1483 = vmatprep.subr.bf16.mxu0 %v1080
    %1484 = vmatpush2.bf16.msra.mxu0 %v1079
    %1485 = vmatprep.subr.bf16.mxu0 %v1076
    %1486 = vmatpush2.bf16.msra.mxu0 %v1075
    %1487 = vmatprep.mubr.bf16.mxu0 %v1413
    %1488 = vmatmul.mubr.bf16.gmra.mxu0 %v1412
    %v1489 = vpop.f32.mrf.mxu0
    %v1490 = vadd.f32 %v840, %v1489
    %v1491 = vpop.f32.mrf.mxu0
    %v1492 = vadd.f32 %v844, %v1491
    %v1493 = vpop.f32.mrf.mxu0
    %v1494 = vpop.f32.mrf.mxu0
    %1495 = vdwg.mxu0
    %v1496 = vxor.u32 %v1449, 2147483648
    %v1497 = vmul.f32 %v1496, 1.442695
    %v1498 = vpow.pop %v1497
    %v1499 = vadd.f32 %v1498, 1.0
    %v1500 = vrcp.pop %v1499
    %v1501 = vmul.f32 1.0, %v1500
    %v1502 = vxor.u32 %v1451, 2147483648
    %v1503 = vmul.f32 %v1502, 1.442695
    %v1504 = vpow.pop %v1503
    %v1505 = vadd.f32 %v1504, 1.0
    %v1506 = vrcp.pop %v1505
    %v1507 = vmul.f32 1.0, %v1506
    %v1508 = vtanh.pop %v1490
    %v1509 = vxor.u32 %v1492, 2147483648
    %v1510 = vmul.f32 %v1509, 1.442695
    %v1511 = vpow.pop %v1510
    %v1512 = vadd.f32 %v1511, 1.0
    %v1513 = vrcp.pop %v1512
    %v1514 = vmul.f32 1.0, %v1513
    %v1515 = vmul.f32 %v1507, %v1272
    %v1516 = vmul.f32 %v1501, %v1508
    %v1517 = vadd.f32 %v1515, %v1516
    %v1518 = vtanh.pop %v1517
    %v1519 = vmul.f32 %v1514, %v1518
    %v1520 = vld [vmem:[%s374] sm:$0xff]
    %1521 = vmatprep.subr.bf16.mxu0 %v591
    %1522 = vmatpush1.bf16.msra.mxu0 %v590
    %1523 = vmatprep.subr.bf16.mxu0 %v587
    %1524 = vmatpush1.bf16.msra.mxu0 %v586
    %1525 = vmatprep.subr.bf16.mxu0 %v583
    %1526 = vmatpush1.bf16.msra.mxu0 %v582
    %1527 = vmatprep.subr.bf16.mxu0 %v579
    %1528 = vmatpush1.bf16.msra.mxu0 %v578
    %1529 = vmatprep.subr.bf16.mxu0 %v575
    %1530 = vmatpush1.bf16.msra.mxu0 %v574
    %1531 = vmatprep.subr.bf16.mxu0 %v571
    %1532 = vmatpush1.bf16.msra.mxu0 %v570
    %1533 = vmatprep.subr.bf16.mxu0 %v567
    %1534 = vmatpush1.bf16.msra.mxu0 %v566
    %1535 = vmatprep.subr.bf16.mxu0 %v563
    %1536 = vmatpush1.bf16.msra.mxu0 %v562
    %1537 = vmatprep.subr.bf16.mxu0 0
    %1538 = vmatpush2.bf16.msra.mxu0 0
    %1539 = vmatprep.subr.bf16.mxu0 0
    %1540 = vmatpush2.bf16.msra.mxu0 0
    %1541 = vmatprep.subr.bf16.mxu0 0
    %1542 = vmatpush2.bf16.msra.mxu0 0
    %1543 = vmatprep.subr.bf16.mxu0 0
    %1544 = vmatpush2.bf16.msra.mxu0 0
    %1545 = vmatprep.subr.bf16.mxu0 0
    %1546 = vmatpush2.bf16.msra.mxu0 0
    %1547 = vmatprep.subr.bf16.mxu0 0
    %1548 = vmatpush2.bf16.msra.mxu0 0
    %1549 = vmatprep.subr.bf16.mxu0 0
    %1550 = vmatpush2.bf16.msra.mxu0 0
    %1551 = vmatprep.subr.bf16.mxu0 0
    %1552 = vmatpush2.bf16.msra.mxu0 0
    %1553 = vmatprep.mubr.bf16.mxu0 0
    %1554 = vmatmul.mubr.bf16.gmra.mxu0 %v1412
    %v1555 = vpop.f32.mrf.mxu0
    %v1556 = vadd.f32 0.0, %v1555
    %v1557 = vpop.f32.mrf.mxu0
    %v1558 = vadd.f32 0.0, %v1557
    %v1559 = vpop.f32.mrf.mxu0
    %v1560 = vpop.f32.mrf.mxu0
    %1561 = vdwg.mxu0
    %1562 = vmatprep.subr.bf16.mxu0 %v593
    %1563 = vmatpush1.bf16.msra.mxu0 %v592
    %1564 = vmatprep.subr.bf16.mxu0 %v589
    %1565 = vmatpush1.bf16.msra.mxu0 %v588
    %1566 = vmatprep.subr.bf16.mxu0 %v585
    %1567 = vmatpush1.bf16.msra.mxu0 %v584
    %1568 = vmatprep.subr.bf16.mxu0 %v581
    %1569 = vmatpush1.bf16.msra.mxu0 %v580
    %1570 = vmatprep.subr.bf16.mxu0 %v577
    %1571 = vmatpush1.bf16.msra.mxu0 %v576
    %1572 = vmatprep.subr.bf16.mxu0 %v573
    %1573 = vmatpush1.bf16.msra.mxu0 %v572
    %1574 = vmatprep.subr.bf16.mxu0 %v569
    %1575 = vmatpush1.bf16.msra.mxu0 %v568
    %1576 = vmatprep.subr.bf16.mxu0 %v565
    %1577 = vmatpush1.bf16.msra.mxu0 %v564
    %1578 = vmatprep.subr.bf16.mxu0 0
    %1579 = vmatpush2.bf16.msra.mxu0 0
    %1580 = vmatprep.subr.bf16.mxu0 0
    %1581 = vmatpush2.bf16.msra.mxu0 0
    %1582 = vmatprep.subr.bf16.mxu0 0
    %1583 = vmatpush2.bf16.msra.mxu0 0
    %1584 = vmatprep.subr.bf16.mxu0 0
    %1585 = vmatpush2.bf16.msra.mxu0 0
    %1586 = vmatprep.subr.bf16.mxu0 0
    %1587 = vmatpush2.bf16.msra.mxu0 0
    %1588 = vmatprep.subr.bf16.mxu0 0
    %1589 = vmatpush2.bf16.msra.mxu0 0
    %1590 = vmatprep.subr.bf16.mxu0 0
    %1591 = vmatpush2.bf16.msra.mxu0 0
    %1592 = vmatprep.subr.bf16.mxu0 0
    %1593 = vmatpush2.bf16.msra.mxu0 0
    %1594 = vmatprep.mubr.bf16.mxu0 0
    %1595 = vmatmul.mubr.bf16.gmra.mxu0 %v1412
    %v1596 = vpop.f32.mrf.mxu0
    %v1597 = vadd.f32 0.0, %v1596
    %v1598 = vpop.f32.mrf.mxu0
    %v1599 = vadd.f32 0.0, %v1598
    %v1600 = vpop.f32.mrf.mxu0
    %v1601 = vpop.f32.mrf.mxu0
    %1602 = vdwg.mxu0
    %v1607 = vcombine.low %v1556, %v1558
    %v1608 = vcombine.low %v1597, %v1599
    %v1610 = vunpack.c.l.s4 1983009808
    %v1611 = vunpack.c.0.s8 %v1610
    %v1612 = vlaneseq
    %v1613 = vshrl.u32 %v1612, 7
    %v1614 = vsub.s32 %v1611, %v1613
    %v1615 = vrot.slane %v1607, %v1614
    %v1617 = vunpack.c.l.s4 1983009808
    %v1618 = vunpack.c.0.s8 %v1617
    %v1619 = vlaneseq
    %v1620 = vshrl.u32 %v1619, 7
    %v1621 = vsub.s32 %v1618, %v1620
    %v1622 = vrot.slane %v1608, %v1621
    %v1623 = vcombine.low %v1615, %v1622
    %v1625 = vadd.f32 %v1520, %v1623
    %v1626 = vxor.u32 %v1625, 2147483648
    %v1627 = vmul.f32 %v1626, 1.442695
    %v1628 = vpow.pop %v1627
    %v1629 = vadd.f32 %v1628, 1.0
    %v1630 = vrcp.pop %v1629
    %v1631 = vmul.f32 1.0, %v1630
    %v1633 = vrot.slane %v1625, 2
    %v1635 = vxor.u32 %v1633, 2147483648
    %v1636 = vmul.f32 %v1635, 1.442695
    %v1637 = vpow.pop %v1636
    %v1638 = vadd.f32 %v1637, 1.0
    %v1639 = vrcp.pop %v1638
    %v1640 = vmul.f32 1.0, %v1639
    %v1641 = vrot.slane %v1625, 4
    %v1643 = vtanh.pop %v1641
    %v1644 = vrot.slane %v1625, 6
    %v1646 = vxor.u32 %v1644, 2147483648
    %v1647 = vmul.f32 %v1646, 1.442695
    %v1648 = vpow.pop %v1647
    %v1649 = vadd.f32 %v1648, 1.0
    %v1650 = vrcp.pop %v1649
    %v1651 = vmul.f32 1.0, %v1650
    %v1652 = vmul.f32 %v1640, %v1409
    %v1653 = vmul.f32 %v1631, %v1643
    %v1654 = vadd.f32 %v1652, %v1653
    %v1655 = vtanh.pop %v1654
    %v1656 = vmul.f32 %v1651, %v1655
    %v1657 = vpack.c.bf16 %v1656, %v1656
    %v1658 = vpack.c.bf16 %v1519, %v1519
    %1659 = vmatprep.subr.bf16.mxu0 %v1070
    %1660 = vmatpush1.bf16.msra.mxu0 %v1069
    %1661 = vmatprep.subr.bf16.mxu0 %v1066
    %1662 = vmatpush1.bf16.msra.mxu0 %v1065
    %1663 = vmatprep.subr.bf16.mxu0 %v1062
    %1664 = vmatpush1.bf16.msra.mxu0 %v1061
    %1665 = vmatprep.subr.bf16.mxu0 %v1058
    %1666 = vmatpush1.bf16.msra.mxu0 %v1057
    %1667 = vmatprep.subr.bf16.mxu0 %v1054
    %1668 = vmatpush1.bf16.msra.mxu0 %v1053
    %1669 = vmatprep.subr.bf16.mxu0 %v1050
    %1670 = vmatpush1.bf16.msra.mxu0 %v1049
    %1671 = vmatprep.subr.bf16.mxu0 %v1046
    %1672 = vmatpush1.bf16.msra.mxu0 %v1045
    %1673 = vmatprep.subr.bf16.mxu0 %v1042
    %1674 = vmatpush1.bf16.msra.mxu0 %v1041
    %1675 = vmatprep.subr.bf16.mxu0 %v1102
    %1676 = vmatpush2.bf16.msra.mxu0 %v1101
    %1677 = vmatprep.subr.bf16.mxu0 %v1098
    %1678 = vmatpush2.bf16.msra.mxu0 %v1097
    %1679 = vmatprep.subr.bf16.mxu0 %v1094
    %1680 = vmatpush2.bf16.msra.mxu0 %v1093
    %1681 = vmatprep.subr.bf16.mxu0 %v1090
    %1682 = vmatpush2.bf16.msra.mxu0 %v1089
    %1683 = vmatprep.subr.bf16.mxu0 %v1086
    %1684 = vmatpush2.bf16.msra.mxu0 %v1085
    %1685 = vmatprep.subr.bf16.mxu0 %v1082
    %1686 = vmatpush2.bf16.msra.mxu0 %v1081
    %1687 = vmatprep.subr.bf16.mxu0 %v1078
    %1688 = vmatpush2.bf16.msra.mxu0 %v1077
    %1689 = vmatprep.subr.bf16.mxu0 %v1074
    %1690 = vmatpush2.bf16.msra.mxu0 %v1073
    %1691 = vmatprep.mubr.bf16.mxu0 %v1658
    %1692 = vmatmul.mubr.bf16.gmra.mxu0 %v1657
    %v1693 = vpop.f32.mrf.mxu0
    %v1694 = vadd.f32 %v832, %v1693
    %v1695 = vpop.f32.mrf.mxu0
    %v1696 = vadd.f32 %v836, %v1695
    %v1697 = vpop.f32.mrf.mxu0
    %v1698 = vpop.f32.mrf.mxu0
    %1699 = vdwg.mxu0
    %1700 = vmatprep.subr.bf16.mxu0 %v1072
    %1701 = vmatpush1.bf16.msra.mxu0 %v1071
    %1702 = vmatprep.subr.bf16.mxu0 %v1068
    %1703 = vmatpush1.bf16.msra.mxu0 %v1067
    %1704 = vmatprep.subr.bf16.mxu0 %v1064
    %1705 = vmatpush1.bf16.msra.mxu0 %v1063
    %1706 = vmatprep.subr.bf16.mxu0 %v1060
    %1707 = vmatpush1.bf16.msra.mxu0 %v1059
    %1708 = vmatprep.subr.bf16.mxu0 %v1056
    %1709 = vmatpush1.bf16.msra.mxu0 %v1055
    %1710 = vmatprep.subr.bf16.mxu0 %v1052
    %1711 = vmatpush1.bf16.msra.mxu0 %v1051
    %1712 = vmatprep.subr.bf16.mxu0 %v1048
    %1713 = vmatpush1.bf16.msra.mxu0 %v1047
    %1714 = vmatprep.subr.bf16.mxu0 %v1044
    %1715 = vmatpush1.bf16.msra.mxu0 %v1043
    %1716 = vmatprep.subr.bf16.mxu0 %v1104
    %1717 = vmatpush2.bf16.msra.mxu0 %v1103
    %1718 = vmatprep.subr.bf16.mxu0 %v1100
    %1719 = vmatpush2.bf16.msra.mxu0 %v1099
    %1720 = vmatprep.subr.bf16.mxu0 %v1096
    %1721 = vmatpush2.bf16.msra.mxu0 %v1095
    %1722 = vmatprep.subr.bf16.mxu0 %v1092
    %1723 = vmatpush2.bf16.msra.mxu0 %v1091
    %1724 = vmatprep.subr.bf16.mxu0 %v1088
    %1725 = vmatpush2.bf16.msra.mxu0 %v1087
    %1726 = vmatprep.subr.bf16.mxu0 %v1084
    %1727 = vmatpush2.bf16.msra.mxu0 %v1083
    %1728 = vmatprep.subr.bf16.mxu0 %v1080
    %1729 = vmatpush2.bf16.msra.mxu0 %v1079
    %1730 = vmatprep.subr.bf16.mxu0 %v1076
    %1731 = vmatpush2.bf16.msra.mxu0 %v1075
    %1732 = vmatprep.mubr.bf16.mxu0 %v1658
    %1733 = vmatmul.mubr.bf16.gmra.mxu0 %v1657
    %v1734 = vpop.f32.mrf.mxu0
    %v1735 = vadd.f32 %v840, %v1734
    %v1736 = vpop.f32.mrf.mxu0
    %v1737 = vadd.f32 %v844, %v1736
    %v1738 = vpop.f32.mrf.mxu0
    %v1739 = vpop.f32.mrf.mxu0
    %1740 = vdwg.mxu0
    %v1741 = vxor.u32 %v1694, 2147483648
    %v1742 = vmul.f32 %v1741, 1.442695
    %v1743 = vpow.pop %v1742
    %v1744 = vadd.f32 %v1743, 1.0
    %v1745 = vrcp.pop %v1744
    %v1746 = vmul.f32 1.0, %v1745
    %v1747 = vxor.u32 %v1696, 2147483648
    %v1748 = vmul.f32 %v1747, 1.442695
    %v1749 = vpow.pop %v1748
    %v1750 = vadd.f32 %v1749, 1.0
    %v1751 = vrcp.pop %v1750
    %v1752 = vmul.f32 1.0, %v1751
    %v1753 = vtanh.pop %v1735
    %v1754 = vxor.u32 %v1737, 2147483648
    %v1755 = vmul.f32 %v1754, 1.442695
    %v1756 = vpow.pop %v1755
    %v1757 = vadd.f32 %v1756, 1.0
    %v1758 = vrcp.pop %v1757
    %v1759 = vmul.f32 1.0, %v1758
    %v1760 = vmul.f32 %v1752, %v1517
    %v1761 = vmul.f32 %v1746, %v1753
    %v1762 = vadd.f32 %v1760, %v1761
    %v1763 = vtanh.pop %v1762
    %v1764 = vmul.f32 %v1759, %v1763
    %v1765 = vld [vmem:[%s378] sm:$0xff]
    %1766 = vmatprep.subr.bf16.mxu0 %v591
    %1767 = vmatpush1.bf16.msra.mxu0 %v590
    %1768 = vmatprep.subr.bf16.mxu0 %v587
    %1769 = vmatpush1.bf16.msra.mxu0 %v586
    %1770 = vmatprep.subr.bf16.mxu0 %v583
    %1771 = vmatpush1.bf16.msra.mxu0 %v582
    %1772 = vmatprep.subr.bf16.mxu0 %v579
    %1773 = vmatpush1.bf16.msra.mxu0 %v578
    %1774 = vmatprep.subr.bf16.mxu0 %v575
    %1775 = vmatpush1.bf16.msra.mxu0 %v574
    %1776 = vmatprep.subr.bf16.mxu0 %v571
    %1777 = vmatpush1.bf16.msra.mxu0 %v570
    %1778 = vmatprep.subr.bf16.mxu0 %v567
    %1779 = vmatpush1.bf16.msra.mxu0 %v566
    %1780 = vmatprep.subr.bf16.mxu0 %v563
    %1781 = vmatpush1.bf16.msra.mxu0 %v562
    %1782 = vmatprep.subr.bf16.mxu0 0
    %1783 = vmatpush2.bf16.msra.mxu0 0
    %1784 = vmatprep.subr.bf16.mxu0 0
    %1785 = vmatpush2.bf16.msra.mxu0 0
    %1786 = vmatprep.subr.bf16.mxu0 0
    %1787 = vmatpush2.bf16.msra.mxu0 0
    %1788 = vmatprep.subr.bf16.mxu0 0
    %1789 = vmatpush2.bf16.msra.mxu0 0
    %1790 = vmatprep.subr.bf16.mxu0 0
    %1791 = vmatpush2.bf16.msra.mxu0 0
    %1792 = vmatprep.subr.bf16.mxu0 0
    %1793 = vmatpush2.bf16.msra.mxu0 0
    %1794 = vmatprep.subr.bf16.mxu0 0
    %1795 = vmatpush2.bf16.msra.mxu0 0
    %1796 = vmatprep.subr.bf16.mxu0 0
    %1797 = vmatpush2.bf16.msra.mxu0 0
    %1798 = vmatprep.mubr.bf16.mxu0 0
    %1799 = vmatmul.mubr.bf16.gmra.mxu0 %v1657
    %v1800 = vpop.f32.mrf.mxu0
    %v1801 = vadd.f32 0.0, %v1800
    %v1802 = vpop.f32.mrf.mxu0
    %v1803 = vadd.f32 0.0, %v1802
    %v1804 = vpop.f32.mrf.mxu0
    %v1805 = vpop.f32.mrf.mxu0
    %1806 = vdwg.mxu0
    %1807 = vmatprep.subr.bf16.mxu0 %v593
    %1808 = vmatpush1.bf16.msra.mxu0 %v592
    %1809 = vmatprep.subr.bf16.mxu0 %v589
    %1810 = vmatpush1.bf16.msra.mxu0 %v588
    %1811 = vmatprep.subr.bf16.mxu0 %v585
    %1812 = vmatpush1.bf16.msra.mxu0 %v584
    %1813 = vmatprep.subr.bf16.mxu0 %v581
    %1814 = vmatpush1.bf16.msra.mxu0 %v580
    %1815 = vmatprep.subr.bf16.mxu0 %v577
    %1816 = vmatpush1.bf16.msra.mxu0 %v576
    %1817 = vmatprep.subr.bf16.mxu0 %v573
    %1818 = vmatpush1.bf16.msra.mxu0 %v572
    %1819 = vmatprep.subr.bf16.mxu0 %v569
    %1820 = vmatpush1.bf16.msra.mxu0 %v568
    %1821 = vmatprep.subr.bf16.mxu0 %v565
    %1822 = vmatpush1.bf16.msra.mxu0 %v564
    %1823 = vmatprep.subr.bf16.mxu0 0
    %1824 = vmatpush2.bf16.msra.mxu0 0
    %1825 = vmatprep.subr.bf16.mxu0 0
    %1826 = vmatpush2.bf16.msra.mxu0 0
    %1827 = vmatprep.subr.bf16.mxu0 0
    %1828 = vmatpush2.bf16.msra.mxu0 0
    %1829 = vmatprep.subr.bf16.mxu0 0
    %1830 = vmatpush2.bf16.msra.mxu0 0
    %1831 = vmatprep.subr.bf16.mxu0 0
    %1832 = vmatpush2.bf16.msra.mxu0 0
    %1833 = vmatprep.subr.bf16.mxu0 0
    %1834 = vmatpush2.bf16.msra.mxu0 0
    %1835 = vmatprep.subr.bf16.mxu0 0
    %1836 = vmatpush2.bf16.msra.mxu0 0
    %1837 = vmatprep.subr.bf16.mxu0 0
    %1838 = vmatpush2.bf16.msra.mxu0 0
    %1839 = vmatprep.mubr.bf16.mxu0 0
    %1840 = vmatmul.mubr.bf16.gmra.mxu0 %v1657
    %v1841 = vpop.f32.mrf.mxu0
    %v1842 = vadd.f32 0.0, %v1841
    %v1843 = vpop.f32.mrf.mxu0
    %v1844 = vadd.f32 0.0, %v1843
    %v1845 = vpop.f32.mrf.mxu0
    %v1846 = vpop.f32.mrf.mxu0
    %1847 = vdwg.mxu0
    %v1852 = vcombine.low %v1801, %v1803
    %v1853 = vcombine.low %v1842, %v1844
    %v1855 = vunpack.c.l.s4 1983009808
    %v1856 = vunpack.c.0.s8 %v1855
    %v1857 = vlaneseq
    %v1858 = vshrl.u32 %v1857, 7
    %v1859 = vsub.s32 %v1856, %v1858
    %v1860 = vrot.slane %v1852, %v1859
    %v1862 = vunpack.c.l.s4 1983009808
    %v1863 = vunpack.c.0.s8 %v1862
    %v1864 = vlaneseq
    %v1865 = vshrl.u32 %v1864, 7
    %v1866 = vsub.s32 %v1863, %v1865
    %v1867 = vrot.slane %v1853, %v1866
    %v1868 = vcombine.low %v1860, %v1867
    %v1870 = vadd.f32 %v1765, %v1868
    %v1871 = vxor.u32 %v1870, 2147483648
    %v1872 = vmul.f32 %v1871, 1.442695
    %v1873 = vpow.pop %v1872
    %v1874 = vadd.f32 %v1873, 1.0
    %v1875 = vrcp.pop %v1874
    %v1876 = vmul.f32 1.0, %v1875
    %v1878 = vrot.slane %v1870, 2
    %v1880 = vxor.u32 %v1878, 2147483648
    %v1881 = vmul.f32 %v1880, 1.442695
    %v1882 = vpow.pop %v1881
    %v1883 = vadd.f32 %v1882, 1.0
    %v1884 = vrcp.pop %v1883
    %v1885 = vmul.f32 1.0, %v1884
    %v1886 = vrot.slane %v1870, 4
    %v1888 = vtanh.pop %v1886
    %v1889 = vrot.slane %v1870, 6
    %v1891 = vxor.u32 %v1889, 2147483648
    %v1892 = vmul.f32 %v1891, 1.442695
    %v1893 = vpow.pop %v1892
    %v1894 = vadd.f32 %v1893, 1.0
    %v1895 = vrcp.pop %v1894
    %v1896 = vmul.f32 1.0, %v1895
    %v1897 = vmul.f32 %v1885, %v1654
    %v1898 = vmul.f32 %v1876, %v1888
    %v1899 = vadd.f32 %v1897, %v1898
    %v1900 = vtanh.pop %v1899
    %v1901 = vmul.f32 %v1896, %v1900
    %v1902 = vpack.c.bf16 %v1901, %v1901
    %v1903 = vpack.c.bf16 %v1764, %v1764
    %1904 = vmatprep.subr.bf16.mxu0 %v1070
    %1905 = vmatpush1.bf16.msra.mxu0 %v1069
    %1906 = vmatprep.subr.bf16.mxu0 %v1066
    %1907 = vmatpush1.bf16.msra.mxu0 %v1065
    %1908 = vmatprep.subr.bf16.mxu0 %v1062
    %1909 = vmatpush1.bf16.msra.mxu0 %v1061
    %1910 = vmatprep.subr.bf16.mxu0 %v1058
    %1911 = vmatpush1.bf16.msra.mxu0 %v1057
    %1912 = vmatprep.subr.bf16.mxu0 %v1054
    %1913 = vmatpush1.bf16.msra.mxu0 %v1053
    %1914 = vmatprep.subr.bf16.mxu0 %v1050
    %1915 = vmatpush1.bf16.msra.mxu0 %v1049
    %1916 = vmatprep.subr.bf16.mxu0 %v1046
    %1917 = vmatpush1.bf16.msra.mxu0 %v1045
    %1918 = vmatprep.subr.bf16.mxu0 %v1042
    %1919 = vmatpush1.bf16.msra.mxu0 %v1041
    %1920 = vmatprep.subr.bf16.mxu0 %v1102
    %1921 = vmatpush2.bf16.msra.mxu0 %v1101
    %1922 = vmatprep.subr.bf16.mxu0 %v1098
    %1923 = vmatpush2.bf16.msra.mxu0 %v1097
    %1924 = vmatprep.subr.bf16.mxu0 %v1094
    %1925 = vmatpush2.bf16.msra.mxu0 %v1093
    %1926 = vmatprep.subr.bf16.mxu0 %v1090
    %1927 = vmatpush2.bf16.msra.mxu0 %v1089
    %1928 = vmatprep.subr.bf16.mxu0 %v1086
    %1929 = vmatpush2.bf16.msra.mxu0 %v1085
    %1930 = vmatprep.subr.bf16.mxu0 %v1082
    %1931 = vmatpush2.bf16.msra.mxu0 %v1081
    %1932 = vmatprep.subr.bf16.mxu0 %v1078
    %1933 = vmatpush2.bf16.msra.mxu0 %v1077
    %1934 = vmatprep.subr.bf16.mxu0 %v1074
    %1935 = vmatpush2.bf16.msra.mxu0 %v1073
    %1936 = vmatprep.mubr.bf16.mxu0 %v1903
    %1937 = vmatmul.mubr.bf16.gmra.mxu0 %v1902
    %v1938 = vpop.f32.mrf.mxu0
    %v1939 = vadd.f32 %v832, %v1938
    %v1940 = vpop.f32.mrf.mxu0
    %v1941 = vadd.f32 %v836, %v1940
    %v1942 = vpop.f32.mrf.mxu0
    %v1943 = vpop.f32.mrf.mxu0
    %1944 = vdwg.mxu0
    %1945 = vmatprep.subr.bf16.mxu0 %v1072
    %1946 = vmatpush1.bf16.msra.mxu0 %v1071
    %1947 = vmatprep.subr.bf16.mxu0 %v1068
    %1948 = vmatpush1.bf16.msra.mxu0 %v1067
    %1949 = vmatprep.subr.bf16.mxu0 %v1064
    %1950 = vmatpush1.bf16.msra.mxu0 %v1063
    %1951 = vmatprep.subr.bf16.mxu0 %v1060
    %1952 = vmatpush1.bf16.msra.mxu0 %v1059
    %1953 = vmatprep.subr.bf16.mxu0 %v1056
    %1954 = vmatpush1.bf16.msra.mxu0 %v1055
    %1955 = vmatprep.subr.bf16.mxu0 %v1052
    %1956 = vmatpush1.bf16.msra.mxu0 %v1051
    %1957 = vmatprep.subr.bf16.mxu0 %v1048
    %1958 = vmatpush1.bf16.msra.mxu0 %v1047
    %1959 = vmatprep.subr.bf16.mxu0 %v1044
    %1960 = vmatpush1.bf16.msra.mxu0 %v1043
    %1961 = vmatprep.subr.bf16.mxu0 %v1104
    %1962 = vmatpush2.bf16.msra.mxu0 %v1103
    %1963 = vmatprep.subr.bf16.mxu0 %v1100
    %1964 = vmatpush2.bf16.msra.mxu0 %v1099
    %1965 = vmatprep.subr.bf16.mxu0 %v1096
    %1966 = vmatpush2.bf16.msra.mxu0 %v1095
    %1967 = vmatprep.subr.bf16.mxu0 %v1092
    %1968 = vmatpush2.bf16.msra.mxu0 %v1091
    %1969 = vmatprep.subr.bf16.mxu0 %v1088
    %1970 = vmatpush2.bf16.msra.mxu0 %v1087
    %1971 = vmatprep.subr.bf16.mxu0 %v1084
    %1972 = vmatpush2.bf16.msra.mxu0 %v1083
    %1973 = vmatprep.subr.bf16.mxu0 %v1080
    %1974 = vmatpush2.bf16.msra.mxu0 %v1079
    %1975 = vmatprep.subr.bf16.mxu0 %v1076
    %1976 = vmatpush2.bf16.msra.mxu0 %v1075
    %1977 = vmatprep.mubr.bf16.mxu0 %v1903
    %1978 = vmatmul.mubr.bf16.gmra.mxu0 %v1902
    %v1979 = vpop.f32.mrf.mxu0
    %v1980 = vadd.f32 %v840, %v1979
    %v1981 = vpop.f32.mrf.mxu0
    %v1982 = vadd.f32 %v844, %v1981
    %v1983 = vpop.f32.mrf.mxu0
    %v1984 = vpop.f32.mrf.mxu0
    %1985 = vdwg.mxu0
    %v1986 = vxor.u32 %v1939, 2147483648
    %v1987 = vmul.f32 %v1986, 1.442695
    %v1988 = vpow.pop %v1987
    %v1989 = vadd.f32 %v1988, 1.0
    %v1990 = vrcp.pop %v1989
    %v1991 = vmul.f32 1.0, %v1990
    %v1992 = vxor.u32 %v1941, 2147483648
    %v1993 = vmul.f32 %v1992, 1.442695
    %v1994 = vpow.pop %v1993
    %v1995 = vadd.f32 %v1994, 1.0
    %v1996 = vrcp.pop %v1995
    %v1997 = vmul.f32 1.0, %v1996
    %v1998 = vtanh.pop %v1980
    %v1999 = vxor.u32 %v1982, 2147483648
    %v2000 = vmul.f32 %v1999, 1.442695
    %v2001 = vpow.pop %v2000
    %v2002 = vadd.f32 %v2001, 1.0
    %v2003 = vrcp.pop %v2002
    %v2004 = vmul.f32 1.0, %v2003
    %v2005 = vmul.f32 %v1997, %v1762
    %v2006 = vmul.f32 %v1991, %v1998
    %v2007 = vadd.f32 %v2005, %v2006
    %v2008 = vtanh.pop %v2007
    %v2009 = vmul.f32 %v2004, %v2008
    %v2010 = vld [vmem:[%s402] sm:$0xff]
    %2011 = vmatprep.subr.bf16.mxu0 %v591
    %2012 = vmatpush1.bf16.msra.mxu0 %v590
    %2013 = vmatprep.subr.bf16.mxu0 %v587
    %2014 = vmatpush1.bf16.msra.mxu0 %v586
    %2015 = vmatprep.subr.bf16.mxu0 %v583
    %2016 = vmatpush1.bf16.msra.mxu0 %v582
    %2017 = vmatprep.subr.bf16.mxu0 %v579
    %2018 = vmatpush1.bf16.msra.mxu0 %v578
    %2019 = vmatprep.subr.bf16.mxu0 %v575
    %2020 = vmatpush1.bf16.msra.mxu0 %v574
    %2021 = vmatprep.subr.bf16.mxu0 %v571
    %2022 = vmatpush1.bf16.msra.mxu0 %v570
    %2023 = vmatprep.subr.bf16.mxu0 %v567
    %2024 = vmatpush1.bf16.msra.mxu0 %v566
    %2025 = vmatprep.subr.bf16.mxu0 %v563
    %2026 = vmatpush1.bf16.msra.mxu0 %v562
    %2027 = vmatprep.subr.bf16.mxu0 0
    %2028 = vmatpush2.bf16.msra.mxu0 0
    %2029 = vmatprep.subr.bf16.mxu0 0
    %2030 = vmatpush2.bf16.msra.mxu0 0
    %2031 = vmatprep.subr.bf16.mxu0 0
    %2032 = vmatpush2.bf16.msra.mxu0 0
    %2033 = vmatprep.subr.bf16.mxu0 0
    %2034 = vmatpush2.bf16.msra.mxu0 0
    %2035 = vmatprep.subr.bf16.mxu0 0
    %2036 = vmatpush2.bf16.msra.mxu0 0
    %2037 = vmatprep.subr.bf16.mxu0 0
    %2038 = vmatpush2.bf16.msra.mxu0 0
    %2039 = vmatprep.subr.bf16.mxu0 0
    %2040 = vmatpush2.bf16.msra.mxu0 0
    %2041 = vmatprep.subr.bf16.mxu0 0
    %2042 = vmatpush2.bf16.msra.mxu0 0
    %2043 = vmatprep.mubr.bf16.mxu0 0
    %2044 = vmatmul.mubr.bf16.gmra.mxu0 %v1902
    %v2045 = vpop.f32.mrf.mxu0
    %v2046 = vadd.f32 0.0, %v2045
    %v2047 = vpop.f32.mrf.mxu0
    %v2048 = vadd.f32 0.0, %v2047
    %v2049 = vpop.f32.mrf.mxu0
    %v2050 = vpop.f32.mrf.mxu0
    %2051 = vdwg.mxu0
    %2052 = vmatprep.subr.bf16.mxu0 %v593
    %2053 = vmatpush1.bf16.msra.mxu0 %v592
    %2054 = vmatprep.subr.bf16.mxu0 %v589
    %2055 = vmatpush1.bf16.msra.mxu0 %v588
    %2056 = vmatprep.subr.bf16.mxu0 %v585
    %2057 = vmatpush1.bf16.msra.mxu0 %v584
    %2058 = vmatprep.subr.bf16.mxu0 %v581
    %2059 = vmatpush1.bf16.msra.mxu0 %v580
    %2060 = vmatprep.subr.bf16.mxu0 %v577
    %2061 = vmatpush1.bf16.msra.mxu0 %v576
    %2062 = vmatprep.subr.bf16.mxu0 %v573
    %2063 = vmatpush1.bf16.msra.mxu0 %v572
    %2064 = vmatprep.subr.bf16.mxu0 %v569
    %2065 = vmatpush1.bf16.msra.mxu0 %v568
    %2066 = vmatprep.subr.bf16.mxu0 %v565
    %2067 = vmatpush1.bf16.msra.mxu0 %v564
    %2068 = vmatprep.subr.bf16.mxu0 0
    %2069 = vmatpush2.bf16.msra.mxu0 0
    %2070 = vmatprep.subr.bf16.mxu0 0
    %2071 = vmatpush2.bf16.msra.mxu0 0
    %2072 = vmatprep.subr.bf16.mxu0 0
    %2073 = vmatpush2.bf16.msra.mxu0 0
    %2074 = vmatprep.subr.bf16.mxu0 0
    %2075 = vmatpush2.bf16.msra.mxu0 0
    %2076 = vmatprep.subr.bf16.mxu0 0
    %2077 = vmatpush2.bf16.msra.mxu0 0
    %2078 = vmatprep.subr.bf16.mxu0 0
    %2079 = vmatpush2.bf16.msra.mxu0 0
    %2080 = vmatprep.subr.bf16.mxu0 0
    %2081 = vmatpush2.bf16.msra.mxu0 0
    %2082 = vmatprep.subr.bf16.mxu0 0
    %2083 = vmatpush2.bf16.msra.mxu0 0
    %2084 = vmatprep.mubr.bf16.mxu0 0
    %2085 = vmatmul.mubr.bf16.gmra.mxu0 %v1902
    %v2086 = vpop.f32.mrf.mxu0
    %v2087 = vadd.f32 0.0, %v2086
    %v2088 = vpop.f32.mrf.mxu0
    %v2089 = vadd.f32 0.0, %v2088
    %v2090 = vpop.f32.mrf.mxu0
    %v2091 = vpop.f32.mrf.mxu0
    %2092 = vdwg.mxu0
    %v2097 = vcombine.low %v2046, %v2048
    %v2098 = vcombine.low %v2087, %v2089
    %v2100 = vunpack.c.l.s4 1983009808
    %v2101 = vunpack.c.0.s8 %v2100
    %v2102 = vlaneseq
    %v2103 = vshrl.u32 %v2102, 7
    %v2104 = vsub.s32 %v2101, %v2103
    %v2105 = vrot.slane %v2097, %v2104
    %v2107 = vunpack.c.l.s4 1983009808
    %v2108 = vunpack.c.0.s8 %v2107
    %v2109 = vlaneseq
    %v2110 = vshrl.u32 %v2109, 7
    %v2111 = vsub.s32 %v2108, %v2110
    %v2112 = vrot.slane %v2098, %v2111
    %v2113 = vcombine.low %v2105, %v2112
    %v2115 = vadd.f32 %v2010, %v2113
    %v2116 = vxor.u32 %v2115, 2147483648
    %v2117 = vmul.f32 %v2116, 1.442695
    %v2118 = vpow.pop %v2117
    %v2119 = vadd.f32 %v2118, 1.0
    %v2120 = vrcp.pop %v2119
    %v2121 = vmul.f32 1.0, %v2120
    %v2123 = vrot.slane %v2115, 2
    %v2125 = vxor.u32 %v2123, 2147483648
    %v2126 = vmul.f32 %v2125, 1.442695
    %v2127 = vpow.pop %v2126
    %v2128 = vadd.f32 %v2127, 1.0
    %v2129 = vrcp.pop %v2128
    %v2130 = vmul.f32 1.0, %v2129
    %v2131 = vrot.slane %v2115, 4
    %v2133 = vtanh.pop %v2131
    %v2134 = vrot.slane %v2115, 6
    %v2136 = vxor.u32 %v2134, 2147483648
    %v2137 = vmul.f32 %v2136, 1.442695
    %v2138 = vpow.pop %v2137
    %v2139 = vadd.f32 %v2138, 1.0
    %v2140 = vrcp.pop %v2139
    %v2141 = vmul.f32 1.0, %v2140
    %v2142 = vmul.f32 %v2130, %v1899
    %v2143 = vmul.f32 %v2121, %v2133
    %v2144 = vadd.f32 %v2142, %v2143
    %v2145 = vtanh.pop %v2144
    %v2146 = vmul.f32 %v2141, %v2145
    %v2147 = vpack.c.bf16 %v2146, %v2146
    %v2148 = vpack.c.bf16 %v2009, %v2009
    %2149 = vmatprep.subr.bf16.mxu0 %v1070
    %2150 = vmatpush1.bf16.msra.mxu0 %v1069
    %2151 = vmatprep.subr.bf16.mxu0 %v1066
    %2152 = vmatpush1.bf16.msra.mxu0 %v1065
    %2153 = vmatprep.subr.bf16.mxu0 %v1062
    %2154 = vmatpush1.bf16.msra.mxu0 %v1061
    %2155 = vmatprep.subr.bf16.mxu0 %v1058
    %2156 = vmatpush1.bf16.msra.mxu0 %v1057
    %2157 = vmatprep.subr.bf16.mxu0 %v1054
    %2158 = vmatpush1.bf16.msra.mxu0 %v1053
    %2159 = vmatprep.subr.bf16.mxu0 %v1050
    %2160 = vmatpush1.bf16.msra.mxu0 %v1049
    %2161 = vmatprep.subr.bf16.mxu0 %v1046
    %2162 = vmatpush1.bf16.msra.mxu0 %v1045
    %2163 = vmatprep.subr.bf16.mxu0 %v1042
    %2164 = vmatpush1.bf16.msra.mxu0 %v1041
    %2165 = vmatprep.subr.bf16.mxu0 %v1102
    %2166 = vmatpush2.bf16.msra.mxu0 %v1101
    %2167 = vmatprep.subr.bf16.mxu0 %v1098
    %2168 = vmatpush2.bf16.msra.mxu0 %v1097
    %2169 = vmatprep.subr.bf16.mxu0 %v1094
    %2170 = vmatpush2.bf16.msra.mxu0 %v1093
    %2171 = vmatprep.subr.bf16.mxu0 %v1090
    %2172 = vmatpush2.bf16.msra.mxu0 %v1089
    %2173 = vmatprep.subr.bf16.mxu0 %v1086
    %2174 = vmatpush2.bf16.msra.mxu0 %v1085
    %2175 = vmatprep.subr.bf16.mxu0 %v1082
    %2176 = vmatpush2.bf16.msra.mxu0 %v1081
    %2177 = vmatprep.subr.bf16.mxu0 %v1078
    %2178 = vmatpush2.bf16.msra.mxu0 %v1077
    %2179 = vmatprep.subr.bf16.mxu0 %v1074
    %2180 = vmatpush2.bf16.msra.mxu0 %v1073
    %2181 = vmatprep.mubr.bf16.mxu0 %v2148
    %2182 = vmatmul.mubr.bf16.gmra.mxu0 %v2147
    %v2183 = vpop.f32.mrf.mxu0
    %v2184 = vadd.f32 %v832, %v2183
    %v2185 = vpop.f32.mrf.mxu0
    %v2186 = vadd.f32 %v836, %v2185
    %v2187 = vpop.f32.mrf.mxu0
    %v2188 = vpop.f32.mrf.mxu0
    %2189 = vdwg.mxu0
    %2190 = vmatprep.subr.bf16.mxu0 %v1072
    %2191 = vmatpush1.bf16.msra.mxu0 %v1071
    %2192 = vmatprep.subr.bf16.mxu0 %v1068
    %2193 = vmatpush1.bf16.msra.mxu0 %v1067
    %2194 = vmatprep.subr.bf16.mxu0 %v1064
    %2195 = vmatpush1.bf16.msra.mxu0 %v1063
    %2196 = vmatprep.subr.bf16.mxu0 %v1060
    %2197 = vmatpush1.bf16.msra.mxu0 %v1059
    %2198 = vmatprep.subr.bf16.mxu0 %v1056
    %2199 = vmatpush1.bf16.msra.mxu0 %v1055
    %2200 = vmatprep.subr.bf16.mxu0 %v1052
    %2201 = vmatpush1.bf16.msra.mxu0 %v1051
    %2202 = vmatprep.subr.bf16.mxu0 %v1048
    %2203 = vmatpush1.bf16.msra.mxu0 %v1047
    %2204 = vmatprep.subr.bf16.mxu0 %v1044
    %2205 = vmatpush1.bf16.msra.mxu0 %v1043
    %2206 = vmatprep.subr.bf16.mxu0 %v1104
    %2207 = vmatpush2.bf16.msra.mxu0 %v1103
    %2208 = vmatprep.subr.bf16.mxu0 %v1100
    %2209 = vmatpush2.bf16.msra.mxu0 %v1099
    %2210 = vmatprep.subr.bf16.mxu0 %v1096
    %2211 = vmatpush2.bf16.msra.mxu0 %v1095
    %2212 = vmatprep.subr.bf16.mxu0 %v1092
    %2213 = vmatpush2.bf16.msra.mxu0 %v1091
    %2214 = vmatprep.subr.bf16.mxu0 %v1088
    %2215 = vmatpush2.bf16.msra.mxu0 %v1087
    %2216 = vmatprep.subr.bf16.mxu0 %v1084
    %2217 = vmatpush2.bf16.msra.mxu0 %v1083
    %2218 = vmatprep.subr.bf16.mxu0 %v1080
    %2219 = vmatpush2.bf16.msra.mxu0 %v1079
    %2220 = vmatprep.subr.bf16.mxu0 %v1076
    %2221 = vmatpush2.bf16.msra.mxu0 %v1075
    %2222 = vmatprep.mubr.bf16.mxu0 %v2148
    %2223 = vmatmul.mubr.bf16.gmra.mxu0 %v2147
    %v2224 = vpop.f32.mrf.mxu0
    %v2225 = vadd.f32 %v840, %v2224
    %v2226 = vpop.f32.mrf.mxu0
    %v2227 = vadd.f32 %v844, %v2226
    %v2228 = vpop.f32.mrf.mxu0
    %v2229 = vpop.f32.mrf.mxu0
    %2230 = vdwg.mxu0
    %v2231 = vxor.u32 %v2184, 2147483648
    %v2232 = vmul.f32 %v2231, 1.442695
    %v2233 = vpow.pop %v2232
    %v2234 = vadd.f32 %v2233, 1.0
    %v2235 = vrcp.pop %v2234
    %v2236 = vmul.f32 1.0, %v2235
    %v2237 = vxor.u32 %v2186, 2147483648
    %v2238 = vmul.f32 %v2237, 1.442695
    %v2239 = vpow.pop %v2238
    %v2240 = vadd.f32 %v2239, 1.0
    %v2241 = vrcp.pop %v2240
    %v2242 = vmul.f32 1.0, %v2241
    %v2243 = vtanh.pop %v2225
    %v2244 = vxor.u32 %v2227, 2147483648
    %v2245 = vmul.f32 %v2244, 1.442695
    %v2246 = vpow.pop %v2245
    %v2247 = vadd.f32 %v2246, 1.0
    %v2248 = vrcp.pop %v2247
    %v2249 = vmul.f32 1.0, %v2248
    %v2250 = vmul.f32 %v2242, %v2007
    %v2251 = vmul.f32 %v2236, %v2243
    %v2252 = vadd.f32 %v2250, %v2251
    %v2253 = vtanh.pop %v2252
    %v2254 = vmul.f32 %v2249, %v2253
    %v2255 = vld [vmem:[%s406] sm:$0xff]
    %2256 = vmatprep.subr.bf16.mxu0 %v591
    %2257 = vmatpush1.bf16.msra.mxu0 %v590
    %2258 = vmatprep.subr.bf16.mxu0 %v587
    %2259 = vmatpush1.bf16.msra.mxu0 %v586
    %2260 = vmatprep.subr.bf16.mxu0 %v583
    %2261 = vmatpush1.bf16.msra.mxu0 %v582
    %2262 = vmatprep.subr.bf16.mxu0 %v579
    %2263 = vmatpush1.bf16.msra.mxu0 %v578
    %2264 = vmatprep.subr.bf16.mxu0 %v575
    %2265 = vmatpush1.bf16.msra.mxu0 %v574
    %2266 = vmatprep.subr.bf16.mxu0 %v571
    %2267 = vmatpush1.bf16.msra.mxu0 %v570
    %2268 = vmatprep.subr.bf16.mxu0 %v567
    %2269 = vmatpush1.bf16.msra.mxu0 %v566
    %2270 = vmatprep.subr.bf16.mxu0 %v563
    %2271 = vmatpush1.bf16.msra.mxu0 %v562
    %2272 = vmatprep.subr.bf16.mxu0 0
    %2273 = vmatpush2.bf16.msra.mxu0 0
    %2274 = vmatprep.subr.bf16.mxu0 0
    %2275 = vmatpush2.bf16.msra.mxu0 0
    %2276 = vmatprep.subr.bf16.mxu0 0
    %2277 = vmatpush2.bf16.msra.mxu0 0
    %2278 = vmatprep.subr.bf16.mxu0 0
    %2279 = vmatpush2.bf16.msra.mxu0 0
    %2280 = vmatprep.subr.bf16.mxu0 0
    %2281 = vmatpush2.bf16.msra.mxu0 0
    %2282 = vmatprep.subr.bf16.mxu0 0
    %2283 = vmatpush2.bf16.msra.mxu0 0
    %2284 = vmatprep.subr.bf16.mxu0 0
    %2285 = vmatpush2.bf16.msra.mxu0 0
    %2286 = vmatprep.subr.bf16.mxu0 0
    %2287 = vmatpush2.bf16.msra.mxu0 0
    %2288 = vmatprep.mubr.bf16.mxu0 0
    %2289 = vmatmul.mubr.bf16.gmra.mxu0 %v2147
    %v2290 = vpop.f32.mrf.mxu0
    %v2291 = vadd.f32 0.0, %v2290
    %v2292 = vpop.f32.mrf.mxu0
    %v2293 = vadd.f32 0.0, %v2292
    %v2294 = vpop.f32.mrf.mxu0
    %v2295 = vpop.f32.mrf.mxu0
    %2296 = vdwg.mxu0
    %2297 = vmatprep.subr.bf16.mxu0 %v593
    %2298 = vmatpush1.bf16.msra.mxu0 %v592
    %2299 = vmatprep.subr.bf16.mxu0 %v589
    %2300 = vmatpush1.bf16.msra.mxu0 %v588
    %2301 = vmatprep.subr.bf16.mxu0 %v585
    %2302 = vmatpush1.bf16.msra.mxu0 %v584
    %2303 = vmatprep.subr.bf16.mxu0 %v581
    %2304 = vmatpush1.bf16.msra.mxu0 %v580
    %2305 = vmatprep.subr.bf16.mxu0 %v577
    %2306 = vmatpush1.bf16.msra.mxu0 %v576
    %2307 = vmatprep.subr.bf16.mxu0 %v573
    %2308 = vmatpush1.bf16.msra.mxu0 %v572
    %2309 = vmatprep.subr.bf16.mxu0 %v569
    %2310 = vmatpush1.bf16.msra.mxu0 %v568
    %2311 = vmatprep.subr.bf16.mxu0 %v565
    %2312 = vmatpush1.bf16.msra.mxu0 %v564
    %2313 = vmatprep.subr.bf16.mxu0 0
    %2314 = vmatpush2.bf16.msra.mxu0 0
    %2315 = vmatprep.subr.bf16.mxu0 0
    %2316 = vmatpush2.bf16.msra.mxu0 0
    %2317 = vmatprep.subr.bf16.mxu0 0
    %2318 = vmatpush2.bf16.msra.mxu0 0
    %2319 = vmatprep.subr.bf16.mxu0 0
    %2320 = vmatpush2.bf16.msra.mxu0 0
    %2321 = vmatprep.subr.bf16.mxu0 0
    %2322 = vmatpush2.bf16.msra.mxu0 0
    %2323 = vmatprep.subr.bf16.mxu0 0
    %2324 = vmatpush2.bf16.msra.mxu0 0
    %2325 = vmatprep.subr.bf16.mxu0 0
    %2326 = vmatpush2.bf16.msra.mxu0 0
    %2327 = vmatprep.subr.bf16.mxu0 0
    %2328 = vmatpush2.bf16.msra.mxu0 0
    %2329 = vmatprep.mubr.bf16.mxu0 0
    %2330 = vmatmul.mubr.bf16.gmra.mxu0 %v2147
    %v2331 = vpop.f32.mrf.mxu0
    %v2332 = vadd.f32 0.0, %v2331
    %v2333 = vpop.f32.mrf.mxu0
    %v2334 = vadd.f32 0.0, %v2333
    %v2335 = vpop.f32.mrf.mxu0
    %v2336 = vpop.f32.mrf.mxu0
    %2337 = vdwg.mxu0
    %v2342 = vcombine.low %v2291, %v2293
    %v2343 = vcombine.low %v2332, %v2334
    %v2345 = vunpack.c.l.s4 1983009808
    %v2346 = vunpack.c.0.s8 %v2345
    %v2347 = vlaneseq
    %v2348 = vshrl.u32 %v2347, 7
    %v2349 = vsub.s32 %v2346, %v2348
    %v2350 = vrot.slane %v2342, %v2349
    %v2352 = vunpack.c.l.s4 1983009808
    %v2353 = vunpack.c.0.s8 %v2352
    %v2354 = vlaneseq
    %v2355 = vshrl.u32 %v2354, 7
    %v2356 = vsub.s32 %v2353, %v2355
    %v2357 = vrot.slane %v2343, %v2356
    %v2358 = vcombine.low %v2350, %v2357
    %v2360 = vadd.f32 %v2255, %v2358
    %v2361 = vxor.u32 %v2360, 2147483648
    %v2362 = vmul.f32 %v2361, 1.442695
    %v2363 = vpow.pop %v2362
    %v2364 = vadd.f32 %v2363, 1.0
    %v2365 = vrcp.pop %v2364
    %v2366 = vmul.f32 1.0, %v2365
    %v2368 = vrot.slane %v2360, 2
    %v2370 = vxor.u32 %v2368, 2147483648
    %v2371 = vmul.f32 %v2370, 1.442695
    %v2372 = vpow.pop %v2371
    %v2373 = vadd.f32 %v2372, 1.0
    %v2374 = vrcp.pop %v2373
    %v2375 = vmul.f32 1.0, %v2374
    %v2376 = vrot.slane %v2360, 4
    %v2378 = vtanh.pop %v2376
    %v2379 = vrot.slane %v2360, 6
    %v2381 = vxor.u32 %v2379, 2147483648
    %v2382 = vmul.f32 %v2381, 1.442695
    %v2383 = vpow.pop %v2382
    %v2384 = vadd.f32 %v2383, 1.0
    %v2385 = vrcp.pop %v2384
    %v2386 = vmul.f32 1.0, %v2385
    %v2387 = vmul.f32 %v2375, %v2144
    %v2388 = vmul.f32 %v2366, %v2378
    %v2389 = vadd.f32 %v2387, %v2388
    %v2390 = vtanh.pop %v2389
    %v2391 = vmul.f32 %v2386, %v2390
    %v2392 = vpack.c.bf16 %v2391, %v2391
    %v2393 = vpack.c.bf16 %v2254, %v2254
    %2394 = vmatprep.subr.bf16.mxu0 %v1070
    %2395 = vmatpush1.bf16.msra.mxu0 %v1069
    %2396 = vmatprep.subr.bf16.mxu0 %v1066
    %2397 = vmatpush1.bf16.msra.mxu0 %v1065
    %2398 = vmatprep.subr.bf16.mxu0 %v1062
    %2399 = vmatpush1.bf16.msra.mxu0 %v1061
    %2400 = vmatprep.subr.bf16.mxu0 %v1058
    %2401 = vmatpush1.bf16.msra.mxu0 %v1057
    %2402 = vmatprep.subr.bf16.mxu0 %v1054
    %2403 = vmatpush1.bf16.msra.mxu0 %v1053
    %2404 = vmatprep.subr.bf16.mxu0 %v1050
    %2405 = vmatpush1.bf16.msra.mxu0 %v1049
    %2406 = vmatprep.subr.bf16.mxu0 %v1046
    %2407 = vmatpush1.bf16.msra.mxu0 %v1045
    %2408 = vmatprep.subr.bf16.mxu0 %v1042
    %2409 = vmatpush1.bf16.msra.mxu0 %v1041
    %2410 = vmatprep.subr.bf16.mxu0 %v1102
    %2411 = vmatpush2.bf16.msra.mxu0 %v1101
    %2412 = vmatprep.subr.bf16.mxu0 %v1098
    %2413 = vmatpush2.bf16.msra.mxu0 %v1097
    %2414 = vmatprep.subr.bf16.mxu0 %v1094
    %2415 = vmatpush2.bf16.msra.mxu0 %v1093
    %2416 = vmatprep.subr.bf16.mxu0 %v1090
    %2417 = vmatpush2.bf16.msra.mxu0 %v1089
    %2418 = vmatprep.subr.bf16.mxu0 %v1086
    %2419 = vmatpush2.bf16.msra.mxu0 %v1085
    %2420 = vmatprep.subr.bf16.mxu0 %v1082
    %2421 = vmatpush2.bf16.msra.mxu0 %v1081
    %2422 = vmatprep.subr.bf16.mxu0 %v1078
    %2423 = vmatpush2.bf16.msra.mxu0 %v1077
    %2424 = vmatprep.subr.bf16.mxu0 %v1074
    %2425 = vmatpush2.bf16.msra.mxu0 %v1073
    %2426 = vmatprep.mubr.bf16.mxu0 %v2393
    %2427 = vmatmul.mubr.bf16.gmra.mxu0 %v2392
    %v2428 = vpop.f32.mrf.mxu0
    %v2429 = vadd.f32 %v832, %v2428
    %v2430 = vpop.f32.mrf.mxu0
    %v2431 = vadd.f32 %v836, %v2430
    %v2432 = vpop.f32.mrf.mxu0
    %v2433 = vpop.f32.mrf.mxu0
    %2434 = vdwg.mxu0
    %2435 = vmatprep.subr.bf16.mxu0 %v1072
    %2436 = vmatpush1.bf16.msra.mxu0 %v1071
    %2437 = vmatprep.subr.bf16.mxu0 %v1068
    %2438 = vmatpush1.bf16.msra.mxu0 %v1067
    %2439 = vmatprep.subr.bf16.mxu0 %v1064
    %2440 = vmatpush1.bf16.msra.mxu0 %v1063
    %2441 = vmatprep.subr.bf16.mxu0 %v1060
    %2442 = vmatpush1.bf16.msra.mxu0 %v1059
    %2443 = vmatprep.subr.bf16.mxu0 %v1056
    %2444 = vmatpush1.bf16.msra.mxu0 %v1055
    %2445 = vmatprep.subr.bf16.mxu0 %v1052
    %2446 = vmatpush1.bf16.msra.mxu0 %v1051
    %2447 = vmatprep.subr.bf16.mxu0 %v1048
    %2448 = vmatpush1.bf16.msra.mxu0 %v1047
    %2449 = vmatprep.subr.bf16.mxu0 %v1044
    %2450 = vmatpush1.bf16.msra.mxu0 %v1043
    %2451 = vmatprep.subr.bf16.mxu0 %v1104
    %2452 = vmatpush2.bf16.msra.mxu0 %v1103
    %2453 = vmatprep.subr.bf16.mxu0 %v1100
    %2454 = vmatpush2.bf16.msra.mxu0 %v1099
    %2455 = vmatprep.subr.bf16.mxu0 %v1096
    %2456 = vmatpush2.bf16.msra.mxu0 %v1095
    %2457 = vmatprep.subr.bf16.mxu0 %v1092
    %2458 = vmatpush2.bf16.msra.mxu0 %v1091
    %2459 = vmatprep.subr.bf16.mxu0 %v1088
    %2460 = vmatpush2.bf16.msra.mxu0 %v1087
    %2461 = vmatprep.subr.bf16.mxu0 %v1084
    %2462 = vmatpush2.bf16.msra.mxu0 %v1083
    %2463 = vmatprep.subr.bf16.mxu0 %v1080
    %2464 = vmatpush2.bf16.msra.mxu0 %v1079
    %2465 = vmatprep.subr.bf16.mxu0 %v1076
    %2466 = vmatpush2.bf16.msra.mxu0 %v1075
    %2467 = vmatprep.mubr.bf16.mxu0 %v2393
    %2468 = vmatmul.mubr.bf16.gmra.mxu0 %v2392
    %v2469 = vpop.f32.mrf.mxu0
    %v2470 = vadd.f32 %v840, %v2469
    %v2471 = vpop.f32.mrf.mxu0
    %v2472 = vadd.f32 %v844, %v2471
    %v2473 = vpop.f32.mrf.mxu0
    %v2474 = vpop.f32.mrf.mxu0
    %2475 = vdwg.mxu0
    %v2476 = vxor.u32 %v2429, 2147483648
    %v2477 = vmul.f32 %v2476, 1.442695
    %v2478 = vpow.pop %v2477
    %v2479 = vadd.f32 %v2478, 1.0
    %v2480 = vrcp.pop %v2479
    %v2481 = vmul.f32 1.0, %v2480
    %v2482 = vxor.u32 %v2431, 2147483648
    %v2483 = vmul.f32 %v2482, 1.442695
    %v2484 = vpow.pop %v2483
    %v2485 = vadd.f32 %v2484, 1.0
    %v2486 = vrcp.pop %v2485
    %v2487 = vmul.f32 1.0, %v2486
    %v2488 = vtanh.pop %v2470
    %v2489 = vxor.u32 %v2472, 2147483648
    %v2490 = vmul.f32 %v2489, 1.442695
    %v2491 = vpow.pop %v2490
    %v2492 = vadd.f32 %v2491, 1.0
    %v2493 = vrcp.pop %v2492
    %v2494 = vmul.f32 1.0, %v2493
    %v2495 = vmul.f32 %v2487, %v2252
    %v2496 = vmul.f32 %v2481, %v2488
    %v2497 = vadd.f32 %v2495, %v2496
    %v2498 = vtanh.pop %v2497
    %v2499 = vmul.f32 %v2494, %v2498
    %v2500 = vld [vmem:[%s426] sm:$0xff]
    %2501 = vmatprep.subr.bf16.mxu0 %v591
    %2502 = vmatpush1.bf16.msra.mxu0 %v590
    %2503 = vmatprep.subr.bf16.mxu0 %v587
    %2504 = vmatpush1.bf16.msra.mxu0 %v586
    %2505 = vmatprep.subr.bf16.mxu0 %v583
    %2506 = vmatpush1.bf16.msra.mxu0 %v582
    %2507 = vmatprep.subr.bf16.mxu0 %v579
    %2508 = vmatpush1.bf16.msra.mxu0 %v578
    %2509 = vmatprep.subr.bf16.mxu0 %v575
    %2510 = vmatpush1.bf16.msra.mxu0 %v574
    %2511 = vmatprep.subr.bf16.mxu0 %v571
    %2512 = vmatpush1.bf16.msra.mxu0 %v570
    %2513 = vmatprep.subr.bf16.mxu0 %v567
    %2514 = vmatpush1.bf16.msra.mxu0 %v566
    %2515 = vmatprep.subr.bf16.mxu0 %v563
    %2516 = vmatpush1.bf16.msra.mxu0 %v562
    %2517 = vmatprep.subr.bf16.mxu0 0
    %2518 = vmatpush2.bf16.msra.mxu0 0
    %2519 = vmatprep.subr.bf16.mxu0 0
    %2520 = vmatpush2.bf16.msra.mxu0 0
    %2521 = vmatprep.subr.bf16.mxu0 0
    %2522 = vmatpush2.bf16.msra.mxu0 0
    %2523 = vmatprep.subr.bf16.mxu0 0
    %2524 = vmatpush2.bf16.msra.mxu0 0
    %2525 = vmatprep.subr.bf16.mxu0 0
    %2526 = vmatpush2.bf16.msra.mxu0 0
    %2527 = vmatprep.subr.bf16.mxu0 0
    %2528 = vmatpush2.bf16.msra.mxu0 0
    %2529 = vmatprep.subr.bf16.mxu0 0
    %2530 = vmatpush2.bf16.msra.mxu0 0
    %2531 = vmatprep.subr.bf16.mxu0 0
    %2532 = vmatpush2.bf16.msra.mxu0 0
    %2533 = vmatprep.mubr.bf16.mxu0 0
    %2534 = vmatmul.mubr.bf16.gmra.mxu0 %v2392
    %v2535 = vpop.f32.mrf.mxu0
    %v2536 = vadd.f32 0.0, %v2535
    %v2537 = vpop.f32.mrf.mxu0
    %v2538 = vadd.f32 0.0, %v2537
    %v2539 = vpop.f32.mrf.mxu0
    %v2540 = vpop.f32.mrf.mxu0
    %2541 = vdwg.mxu0
    %2542 = vmatprep.subr.bf16.mxu0 %v593
    %2543 = vmatpush1.bf16.msra.mxu0 %v592
    %2544 = vmatprep.subr.bf16.mxu0 %v589
    %2545 = vmatpush1.bf16.msra.mxu0 %v588
    %2546 = vmatprep.subr.bf16.mxu0 %v585
    %2547 = vmatpush1.bf16.msra.mxu0 %v584
    %2548 = vmatprep.subr.bf16.mxu0 %v581
    %2549 = vmatpush1.bf16.msra.mxu0 %v580
    %2550 = vmatprep.subr.bf16.mxu0 %v577
    %2551 = vmatpush1.bf16.msra.mxu0 %v576
    %2552 = vmatprep.subr.bf16.mxu0 %v573
    %2553 = vmatpush1.bf16.msra.mxu0 %v572
    %2554 = vmatprep.subr.bf16.mxu0 %v569
    %2555 = vmatpush1.bf16.msra.mxu0 %v568
    %2556 = vmatprep.subr.bf16.mxu0 %v565
    %2557 = vmatpush1.bf16.msra.mxu0 %v564
    %2558 = vmatprep.subr.bf16.mxu0 0
    %2559 = vmatpush2.bf16.msra.mxu0 0
    %2560 = vmatprep.subr.bf16.mxu0 0
    %2561 = vmatpush2.bf16.msra.mxu0 0
    %2562 = vmatprep.subr.bf16.mxu0 0
    %2563 = vmatpush2.bf16.msra.mxu0 0
    %2564 = vmatprep.subr.bf16.mxu0 0
    %2565 = vmatpush2.bf16.msra.mxu0 0
    %2566 = vmatprep.subr.bf16.mxu0 0
    %2567 = vmatpush2.bf16.msra.mxu0 0
    %2568 = vmatprep.subr.bf16.mxu0 0
    %2569 = vmatpush2.bf16.msra.mxu0 0
    %2570 = vmatprep.subr.bf16.mxu0 0
    %2571 = vmatpush2.bf16.msra.mxu0 0
    %2572 = vmatprep.subr.bf16.mxu0 0
    %2573 = vmatpush2.bf16.msra.mxu0 0
    %2574 = vmatprep.mubr.bf16.mxu0 0
    %2575 = vmatmul.mubr.bf16.gmra.mxu0 %v2392
    %v2576 = vpop.f32.mrf.mxu0
    %v2577 = vadd.f32 0.0, %v2576
    %v2578 = vpop.f32.mrf.mxu0
    %v2579 = vadd.f32 0.0, %v2578
    %v2580 = vpop.f32.mrf.mxu0
    %v2581 = vpop.f32.mrf.mxu0
    %2582 = vdwg.mxu0
    %v2587 = vcombine.low %v2536, %v2538
    %v2588 = vcombine.low %v2577, %v2579
    %v2590 = vunpack.c.l.s4 1983009808
    %v2591 = vunpack.c.0.s8 %v2590
    %v2592 = vlaneseq
    %v2593 = vshrl.u32 %v2592, 7
    %v2594 = vsub.s32 %v2591, %v2593
    %v2595 = vrot.slane %v2587, %v2594
    %v2597 = vunpack.c.l.s4 1983009808
    %v2598 = vunpack.c.0.s8 %v2597
    %v2599 = vlaneseq
    %v2600 = vshrl.u32 %v2599, 7
    %v2601 = vsub.s32 %v2598, %v2600
    %v2602 = vrot.slane %v2588, %v2601
    %v2603 = vcombine.low %v2595, %v2602
    %v2605 = vadd.f32 %v2500, %v2603
    %v2606 = vxor.u32 %v2605, 2147483648
    %v2607 = vmul.f32 %v2606, 1.442695
    %v2608 = vpow.pop %v2607
    %v2609 = vadd.f32 %v2608, 1.0
    %v2610 = vrcp.pop %v2609
    %v2611 = vmul.f32 1.0, %v2610
    %v2613 = vrot.slane %v2605, 2
    %v2615 = vxor.u32 %v2613, 2147483648
    %v2616 = vmul.f32 %v2615, 1.442695
    %v2617 = vpow.pop %v2616
    %v2618 = vadd.f32 %v2617, 1.0
    %v2619 = vrcp.pop %v2618
    %v2620 = vmul.f32 1.0, %v2619
    %v2621 = vrot.slane %v2605, 4
    %v2623 = vtanh.pop %v2621
    %v2624 = vrot.slane %v2605, 6
    %v2626 = vxor.u32 %v2624, 2147483648
    %v2627 = vmul.f32 %v2626, 1.442695
    %v2628 = vpow.pop %v2627
    %v2629 = vadd.f32 %v2628, 1.0
    %v2630 = vrcp.pop %v2629
    %v2631 = vmul.f32 1.0, %v2630
    %v2632 = vmul.f32 %v2620, %v2389
    %v2633 = vmul.f32 %v2611, %v2623
    %v2634 = vadd.f32 %v2632, %v2633
    %v2635 = vtanh.pop %v2634
    %v2636 = vmul.f32 %v2631, %v2635
    %v2637 = vpack.c.bf16 %v2636, %v2636
    %v2638 = vpack.c.bf16 %v2499, %v2499
    %2639 = vmatprep.subr.bf16.mxu0 %v1070
    %2640 = vmatpush1.bf16.msra.mxu0 %v1069
    %2641 = vmatprep.subr.bf16.mxu0 %v1066
    %2642 = vmatpush1.bf16.msra.mxu0 %v1065
    %2643 = vmatprep.subr.bf16.mxu0 %v1062
    %2644 = vmatpush1.bf16.msra.mxu0 %v1061
    %2645 = vmatprep.subr.bf16.mxu0 %v1058
    %2646 = vmatpush1.bf16.msra.mxu0 %v1057
    %2647 = vmatprep.subr.bf16.mxu0 %v1054
    %2648 = vmatpush1.bf16.msra.mxu0 %v1053
    %2649 = vmatprep.subr.bf16.mxu0 %v1050
    %2650 = vmatpush1.bf16.msra.mxu0 %v1049
    %2651 = vmatprep.subr.bf16.mxu0 %v1046
    %2652 = vmatpush1.bf16.msra.mxu0 %v1045
    %2653 = vmatprep.subr.bf16.mxu0 %v1042
    %2654 = vmatpush1.bf16.msra.mxu0 %v1041
    %2655 = vmatprep.subr.bf16.mxu0 %v1102
    %2656 = vmatpush2.bf16.msra.mxu0 %v1101
    %2657 = vmatprep.subr.bf16.mxu0 %v1098
    %2658 = vmatpush2.bf16.msra.mxu0 %v1097
    %2659 = vmatprep.subr.bf16.mxu0 %v1094
    %2660 = vmatpush2.bf16.msra.mxu0 %v1093
    %2661 = vmatprep.subr.bf16.mxu0 %v1090
    %2662 = vmatpush2.bf16.msra.mxu0 %v1089
    %2663 = vmatprep.subr.bf16.mxu0 %v1086
    %2664 = vmatpush2.bf16.msra.mxu0 %v1085
    %2665 = vmatprep.subr.bf16.mxu0 %v1082
    %2666 = vmatpush2.bf16.msra.mxu0 %v1081
    %2667 = vmatprep.subr.bf16.mxu0 %v1078
    %2668 = vmatpush2.bf16.msra.mxu0 %v1077
    %2669 = vmatprep.subr.bf16.mxu0 %v1074
    %2670 = vmatpush2.bf16.msra.mxu0 %v1073
    %2671 = vmatprep.mubr.bf16.mxu0 %v2638
    %2672 = vmatmul.mubr.bf16.gmra.mxu0 %v2637
    %v2673 = vpop.f32.mrf.mxu0
    %v2674 = vadd.f32 %v832, %v2673
    %v2675 = vpop.f32.mrf.mxu0
    %v2676 = vadd.f32 %v836, %v2675
    %v2677 = vpop.f32.mrf.mxu0
    %v2678 = vpop.f32.mrf.mxu0
    %2679 = vdwg.mxu0
    %2680 = vmatprep.subr.bf16.mxu0 %v1072
    %2681 = vmatpush1.bf16.msra.mxu0 %v1071
    %2682 = vmatprep.subr.bf16.mxu0 %v1068
    %2683 = vmatpush1.bf16.msra.mxu0 %v1067
    %2684 = vmatprep.subr.bf16.mxu0 %v1064
    %2685 = vmatpush1.bf16.msra.mxu0 %v1063
    %2686 = vmatprep.subr.bf16.mxu0 %v1060
    %2687 = vmatpush1.bf16.msra.mxu0 %v1059
    %2688 = vmatprep.subr.bf16.mxu0 %v1056
    %2689 = vmatpush1.bf16.msra.mxu0 %v1055
    %2690 = vmatprep.subr.bf16.mxu0 %v1052
    %2691 = vmatpush1.bf16.msra.mxu0 %v1051
    %2692 = vmatprep.subr.bf16.mxu0 %v1048
    %2693 = vmatpush1.bf16.msra.mxu0 %v1047
    %2694 = vmatprep.subr.bf16.mxu0 %v1044
    %2695 = vmatpush1.bf16.msra.mxu0 %v1043
    %2696 = vmatprep.subr.bf16.mxu0 %v1104
    %2697 = vmatpush2.bf16.msra.mxu0 %v1103
    %2698 = vmatprep.subr.bf16.mxu0 %v1100
    %2699 = vmatpush2.bf16.msra.mxu0 %v1099
    %2700 = vmatprep.subr.bf16.mxu0 %v1096
    %2701 = vmatpush2.bf16.msra.mxu0 %v1095
    %2702 = vmatprep.subr.bf16.mxu0 %v1092
    %2703 = vmatpush2.bf16.msra.mxu0 %v1091
    %2704 = vmatprep.subr.bf16.mxu0 %v1088
    %2705 = vmatpush2.bf16.msra.mxu0 %v1087
    %2706 = vmatprep.subr.bf16.mxu0 %v1084
    %2707 = vmatpush2.bf16.msra.mxu0 %v1083
    %2708 = vmatprep.subr.bf16.mxu0 %v1080
    %2709 = vmatpush2.bf16.msra.mxu0 %v1079
    %2710 = vmatprep.subr.bf16.mxu0 %v1076
    %2711 = vmatpush2.bf16.msra.mxu0 %v1075
    %2712 = vmatprep.mubr.bf16.mxu0 %v2638
    %2713 = vmatmul.mubr.bf16.gmra.mxu0 %v2637
    %v2714 = vpop.f32.mrf.mxu0
    %v2715 = vadd.f32 %v840, %v2714
    %v2716 = vpop.f32.mrf.mxu0
    %v2717 = vadd.f32 %v844, %v2716
    %v2718 = vpop.f32.mrf.mxu0
    %v2719 = vpop.f32.mrf.mxu0
    %2720 = vdwg.mxu0
    %v2721 = vxor.u32 %v2674, 2147483648
    %v2722 = vmul.f32 %v2721, 1.442695
    %v2723 = vpow.pop %v2722
    %v2724 = vadd.f32 %v2723, 1.0
    %v2725 = vrcp.pop %v2724
    %v2726 = vmul.f32 1.0, %v2725
    %v2727 = vxor.u32 %v2676, 2147483648
    %v2728 = vmul.f32 %v2727, 1.442695
    %v2729 = vpow.pop %v2728
    %v2730 = vadd.f32 %v2729, 1.0
    %v2731 = vrcp.pop %v2730
    %v2732 = vmul.f32 1.0, %v2731
    %v2733 = vtanh.pop %v2715
    %v2734 = vxor.u32 %v2717, 2147483648
    %v2735 = vmul.f32 %v2734, 1.442695
    %v2736 = vpow.pop %v2735
    %v2737 = vadd.f32 %v2736, 1.0
    %v2738 = vrcp.pop %v2737
    %v2739 = vmul.f32 1.0, %v2738
    %v2740 = vmul.f32 %v2732, %v2497
    %v2741 = vmul.f32 %v2726, %v2733
    %v2742 = vadd.f32 %v2740, %v2741
    %v2743 = vtanh.pop %v2742
    %v2744 = vmul.f32 %v2739, %v2743
    %v2745 = vld [vmem:[%s430] sm:$0xff]
    %2746 = vmatprep.subr.bf16.mxu0 %v591
    %2747 = vmatpush1.bf16.msra.mxu0 %v590
    %2748 = vmatprep.subr.bf16.mxu0 %v587
    %2749 = vmatpush1.bf16.msra.mxu0 %v586
    %2750 = vmatprep.subr.bf16.mxu0 %v583
    %2751 = vmatpush1.bf16.msra.mxu0 %v582
    %2752 = vmatprep.subr.bf16.mxu0 %v579
    %2753 = vmatpush1.bf16.msra.mxu0 %v578
    %2754 = vmatprep.subr.bf16.mxu0 %v575
    %2755 = vmatpush1.bf16.msra.mxu0 %v574
    %2756 = vmatprep.subr.bf16.mxu0 %v571
    %2757 = vmatpush1.bf16.msra.mxu0 %v570
    %2758 = vmatprep.subr.bf16.mxu0 %v567
    %2759 = vmatpush1.bf16.msra.mxu0 %v566
    %2760 = vmatprep.subr.bf16.mxu0 %v563
    %2761 = vmatpush1.bf16.msra.mxu0 %v562
    %2762 = vmatprep.subr.bf16.mxu0 0
    %2763 = vmatpush2.bf16.msra.mxu0 0
    %2764 = vmatprep.subr.bf16.mxu0 0
    %2765 = vmatpush2.bf16.msra.mxu0 0
    %2766 = vmatprep.subr.bf16.mxu0 0
    %2767 = vmatpush2.bf16.msra.mxu0 0
    %2768 = vmatprep.subr.bf16.mxu0 0
    %2769 = vmatpush2.bf16.msra.mxu0 0
    %2770 = vmatprep.subr.bf16.mxu0 0
    %2771 = vmatpush2.bf16.msra.mxu0 0
    %2772 = vmatprep.subr.bf16.mxu0 0
    %2773 = vmatpush2.bf16.msra.mxu0 0
    %2774 = vmatprep.subr.bf16.mxu0 0
    %2775 = vmatpush2.bf16.msra.mxu0 0
    %2776 = vmatprep.subr.bf16.mxu0 0
    %2777 = vmatpush2.bf16.msra.mxu0 0
    %2778 = vmatprep.mubr.bf16.mxu0 0
    %2779 = vmatmul.mubr.bf16.gmra.mxu0 %v2637
    %v2780 = vpop.f32.mrf.mxu0
    %v2781 = vadd.f32 0.0, %v2780
    %v2782 = vpop.f32.mrf.mxu0
    %v2783 = vadd.f32 0.0, %v2782
    %v2784 = vpop.f32.mrf.mxu0
    %v2785 = vpop.f32.mrf.mxu0
    %2786 = vdwg.mxu0
    %2787 = vmatprep.subr.bf16.mxu0 %v593
    %2788 = vmatpush1.bf16.msra.mxu0 %v592
    %2789 = vmatprep.subr.bf16.mxu0 %v589
    %2790 = vmatpush1.bf16.msra.mxu0 %v588
    %2791 = vmatprep.subr.bf16.mxu0 %v585
    %2792 = vmatpush1.bf16.msra.mxu0 %v584
    %2793 = vmatprep.subr.bf16.mxu0 %v581
    %2794 = vmatpush1.bf16.msra.mxu0 %v580
    %2795 = vmatprep.subr.bf16.mxu0 %v577
    %2796 = vmatpush1.bf16.msra.mxu0 %v576
    %2797 = vmatprep.subr.bf16.mxu0 %v573
    %2798 = vmatpush1.bf16.msra.mxu0 %v572
    %2799 = vmatprep.subr.bf16.mxu0 %v569
    %2800 = vmatpush1.bf16.msra.mxu0 %v568
    %2801 = vmatprep.subr.bf16.mxu0 %v565
    %2802 = vmatpush1.bf16.msra.mxu0 %v564
    %2803 = vmatprep.subr.bf16.mxu0 0
    %2804 = vmatpush2.bf16.msra.mxu0 0
    %2805 = vmatprep.subr.bf16.mxu0 0
    %2806 = vmatpush2.bf16.msra.mxu0 0
    %2807 = vmatprep.subr.bf16.mxu0 0
    %2808 = vmatpush2.bf16.msra.mxu0 0
    %2809 = vmatprep.subr.bf16.mxu0 0
    %2810 = vmatpush2.bf16.msra.mxu0 0
    %2811 = vmatprep.subr.bf16.mxu0 0
    %2812 = vmatpush2.bf16.msra.mxu0 0
    %2813 = vmatprep.subr.bf16.mxu0 0
    %2814 = vmatpush2.bf16.msra.mxu0 0
    %2815 = vmatprep.subr.bf16.mxu0 0
    %2816 = vmatpush2.bf16.msra.mxu0 0
    %2817 = vmatprep.subr.bf16.mxu0 0
    %2818 = vmatpush2.bf16.msra.mxu0 0
    %2819 = vmatprep.mubr.bf16.mxu0 0
    %2820 = vmatmul.mubr.bf16.gmra.mxu0 %v2637
    %v2821 = vpop.f32.mrf.mxu0
    %v2822 = vadd.f32 0.0, %v2821
    %v2823 = vpop.f32.mrf.mxu0
    %v2824 = vadd.f32 0.0, %v2823
    %v2825 = vpop.f32.mrf.mxu0
    %v2826 = vpop.f32.mrf.mxu0
    %2827 = vdwg.mxu0
    %v2832 = vcombine.low %v2781, %v2783
    %v2833 = vcombine.low %v2822, %v2824
    %v2835 = vunpack.c.l.s4 1983009808
    %v2836 = vunpack.c.0.s8 %v2835
    %v2837 = vlaneseq
    %v2838 = vshrl.u32 %v2837, 7
    %v2839 = vsub.s32 %v2836, %v2838
    %v2840 = vrot.slane %v2832, %v2839
    %v2842 = vunpack.c.l.s4 1983009808
    %v2843 = vunpack.c.0.s8 %v2842
    %v2844 = vlaneseq
    %v2845 = vshrl.u32 %v2844, 7
    %v2846 = vsub.s32 %v2843, %v2845
    %v2847 = vrot.slane %v2833, %v2846
    %v2848 = vcombine.low %v2840, %v2847
    %v2850 = vadd.f32 %v2745, %v2848
    %v2851 = vxor.u32 %v2850, 2147483648
    %v2852 = vmul.f32 %v2851, 1.442695
    %v2853 = vpow.pop %v2852
    %v2854 = vadd.f32 %v2853, 1.0
    %v2855 = vrcp.pop %v2854
    %v2856 = vmul.f32 1.0, %v2855
    %v2858 = vrot.slane %v2850, 2
    %v2860 = vxor.u32 %v2858, 2147483648
    %v2861 = vmul.f32 %v2860, 1.442695
    %v2862 = vpow.pop %v2861
    %v2863 = vadd.f32 %v2862, 1.0
    %v2864 = vrcp.pop %v2863
    %v2865 = vmul.f32 1.0, %v2864
    %v2866 = vrot.slane %v2850, 4
    %v2868 = vtanh.pop %v2866
    %v2869 = vrot.slane %v2850, 6
    %v2871 = vxor.u32 %v2869, 2147483648
    %v2872 = vmul.f32 %v2871, 1.442695
    %v2873 = vpow.pop %v2872
    %v2874 = vadd.f32 %v2873, 1.0
    %v2875 = vrcp.pop %v2874
    %v2876 = vmul.f32 1.0, %v2875
    %v2877 = vmul.f32 %v2865, %v2634
    %v2878 = vmul.f32 %v2856, %v2868
    %v2879 = vadd.f32 %v2877, %v2878
    %v2880 = vtanh.pop %v2879
    %v2881 = vmul.f32 %v2876, %v2880
    %v2882 = vpack.c.bf16 %v2881, %v2881
    %v2883 = vpack.c.bf16 %v2744, %v2744
    %2884 = vmatprep.subr.bf16.mxu0 %v1070
    %2885 = vmatpush1.bf16.msra.mxu0 %v1069
    %2886 = vmatprep.subr.bf16.mxu0 %v1066
    %2887 = vmatpush1.bf16.msra.mxu0 %v1065
    %2888 = vmatprep.subr.bf16.mxu0 %v1062
    %2889 = vmatpush1.bf16.msra.mxu0 %v1061
    %2890 = vmatprep.subr.bf16.mxu0 %v1058
    %2891 = vmatpush1.bf16.msra.mxu0 %v1057
    %2892 = vmatprep.subr.bf16.mxu0 %v1054
    %2893 = vmatpush1.bf16.msra.mxu0 %v1053
    %2894 = vmatprep.subr.bf16.mxu0 %v1050
    %2895 = vmatpush1.bf16.msra.mxu0 %v1049
    %2896 = vmatprep.subr.bf16.mxu0 %v1046
    %2897 = vmatpush1.bf16.msra.mxu0 %v1045
    %2898 = vmatprep.subr.bf16.mxu0 %v1042
    %2899 = vmatpush1.bf16.msra.mxu0 %v1041
    %2900 = vmatprep.subr.bf16.mxu0 %v1102
    %2901 = vmatpush2.bf16.msra.mxu0 %v1101
    %2902 = vmatprep.subr.bf16.mxu0 %v1098
    %2903 = vmatpush2.bf16.msra.mxu0 %v1097
    %2904 = vmatprep.subr.bf16.mxu0 %v1094
    %2905 = vmatpush2.bf16.msra.mxu0 %v1093
    %2906 = vmatprep.subr.bf16.mxu0 %v1090
    %2907 = vmatpush2.bf16.msra.mxu0 %v1089
    %2908 = vmatprep.subr.bf16.mxu0 %v1086
    %2909 = vmatpush2.bf16.msra.mxu0 %v1085
    %2910 = vmatprep.subr.bf16.mxu0 %v1082
    %2911 = vmatpush2.bf16.msra.mxu0 %v1081
    %2912 = vmatprep.subr.bf16.mxu0 %v1078
    %2913 = vmatpush2.bf16.msra.mxu0 %v1077
    %2914 = vmatprep.subr.bf16.mxu0 %v1074
    %2915 = vmatpush2.bf16.msra.mxu0 %v1073
    %2916 = vmatprep.mubr.bf16.mxu0 %v2883
    %2917 = vmatmul.mubr.bf16.gmra.mxu0 %v2882
    %v2918 = vpop.f32.mrf.mxu0
    %v2919 = vadd.f32 %v832, %v2918
    %v2920 = vpop.f32.mrf.mxu0
    %v2921 = vadd.f32 %v836, %v2920
    %v2922 = vpop.f32.mrf.mxu0
    %v2923 = vpop.f32.mrf.mxu0
    %2924 = vdwg.mxu0
    %2925 = vmatprep.subr.bf16.mxu0 %v1072
    %2926 = vmatpush1.bf16.msra.mxu0 %v1071
    %2927 = vmatprep.subr.bf16.mxu0 %v1068
    %2928 = vmatpush1.bf16.msra.mxu0 %v1067
    %2929 = vmatprep.subr.bf16.mxu0 %v1064
    %2930 = vmatpush1.bf16.msra.mxu0 %v1063
    %2931 = vmatprep.subr.bf16.mxu0 %v1060
    %2932 = vmatpush1.bf16.msra.mxu0 %v1059
    %2933 = vmatprep.subr.bf16.mxu0 %v1056
    %2934 = vmatpush1.bf16.msra.mxu0 %v1055
    %2935 = vmatprep.subr.bf16.mxu0 %v1052
    %2936 = vmatpush1.bf16.msra.mxu0 %v1051
    %2937 = vmatprep.subr.bf16.mxu0 %v1048
    %2938 = vmatpush1.bf16.msra.mxu0 %v1047
    %2939 = vmatprep.subr.bf16.mxu0 %v1044
    %2940 = vmatpush1.bf16.msra.mxu0 %v1043
    %2941 = vmatprep.subr.bf16.mxu0 %v1104
    %2942 = vmatpush2.bf16.msra.mxu0 %v1103
    %2943 = vmatprep.subr.bf16.mxu0 %v1100
    %2944 = vmatpush2.bf16.msra.mxu0 %v1099
    %2945 = vmatprep.subr.bf16.mxu0 %v1096
    %2946 = vmatpush2.bf16.msra.mxu0 %v1095
    %2947 = vmatprep.subr.bf16.mxu0 %v1092
    %2948 = vmatpush2.bf16.msra.mxu0 %v1091
    %2949 = vmatprep.subr.bf16.mxu0 %v1088
    %2950 = vmatpush2.bf16.msra.mxu0 %v1087
    %2951 = vmatprep.subr.bf16.mxu0 %v1084
    %2952 = vmatpush2.bf16.msra.mxu0 %v1083
    %2953 = vmatprep.subr.bf16.mxu0 %v1080
    %2954 = vmatpush2.bf16.msra.mxu0 %v1079
    %2955 = vmatprep.subr.bf16.mxu0 %v1076
    %2956 = vmatpush2.bf16.msra.mxu0 %v1075
    %2957 = vmatprep.mubr.bf16.mxu0 %v2883
    %2958 = vmatmul.mubr.bf16.gmra.mxu0 %v2882
    %v2959 = vpop.f32.mrf.mxu0
    %v2960 = vadd.f32 %v840, %v2959
    %v2961 = vpop.f32.mrf.mxu0
    %v2962 = vadd.f32 %v844, %v2961
    %v2963 = vpop.f32.mrf.mxu0
    %v2964 = vpop.f32.mrf.mxu0
    %2965 = vdwg.mxu0
    %v2966 = vxor.u32 %v2919, 2147483648
    %v2967 = vmul.f32 %v2966, 1.442695
    %v2968 = vpow.pop %v2967
    %v2969 = vadd.f32 %v2968, 1.0
    %v2970 = vrcp.pop %v2969
    %v2971 = vmul.f32 1.0, %v2970
    %v2972 = vxor.u32 %v2921, 2147483648
    %v2973 = vmul.f32 %v2972, 1.442695
    %v2974 = vpow.pop %v2973
    %v2975 = vadd.f32 %v2974, 1.0
    %v2976 = vrcp.pop %v2975
    %v2977 = vmul.f32 1.0, %v2976
    %v2978 = vtanh.pop %v2960
    %v2979 = vxor.u32 %v2962, 2147483648
    %v2980 = vmul.f32 %v2979, 1.442695
    %v2981 = vpow.pop %v2980
    %v2982 = vadd.f32 %v2981, 1.0
    %v2983 = vrcp.pop %v2982
    %v2984 = vmul.f32 1.0, %v2983
    %v2985 = vmul.f32 %v2977, %v2742
    %v2986 = vmul.f32 %v2971, %v2978
    %v2987 = vadd.f32 %v2985, %v2986
    %v2988 = vtanh.pop %v2987
    %v2989 = vmul.f32 %v2984, %v2988
    %v2990 = vld [vmem:[%s6] sm:$0x1]
    %v2992 = vlaneseq
    %v2993 = vshrl.u32 %v2992, 7
    %v2994 = vsub.s32 0, %v2993
    %v2995 = vrot.slane %v2990, %v2994
    %v2997 = vmul.f32 %v2989, %v2995
    %vm2998 = vcmask 1041408
    %v2999 = vsel %vm2998, %v2997, 0.0
    %3000 = vadd.xlane.f32.xlu0 %v2999
    %v3001 = vpop.xlane.xlu0 %3000
    %v3002 = vld [vmem:[#allocation3] sm:$0x1]
    %v3004 = vlaneseq
    %v3005 = vshrl.u32 %v3004, 7
    %v3006 = vsub.s32 0, %v3005
    %v3007 = vrot.slane %v3002, %v3006
    %v3009 = vadd.f32 %v3001, %v3007
    %vm3010 = vcmask 1024
    %3011 = vst.msk [vmem:[%s8] sm:$0x3] %vm3010, %v3009
    // Predicated region
    $region50: #{tpu_custom_call.1} parent=1 // pred_check
      _
    $region51: #{tpu_custom_call.1} parent=1 // pred_check_branch
      %3013 = sbr.rel (0) target = $region53
    $region52: #{tpu_custom_call.1} parent=1 // pred_region
      _
    $region53: #{tpu_custom_call.1} parent=1 // pred_fallthru
      _
    // Predicated region
    $region54: #{tpu_custom_call.1} parent=1 // pred_check
      _
    $region55: #{tpu_custom_call.1} parent=1 // pred_check_branch
      %3015 = sbr.rel (0) target = $region57
    $region56: #{tpu_custom_call.1} parent=1 // pred_region
      _
    $region57: #{tpu_custom_call.1} parent=1 // pred_fallthru
      _
    %3016 = vsyncpa [#allocation5], 1
    %3017 = vsyncpa [#allocation7], 1
    %3018 = vsyncpa [#allocation10], 1

</llo_original>
